<compile_context>
chip_gen: v5e
topology: v5e:2x2
jax: 0.10.0
libtpu: 0.0.40
codegen_flags: <defaults>
</compile_context>

<pallas_src>
import jax
import jax.numpy as jnp
from jax.experimental import pallas as pl
from jax.experimental.pallas import tpu as pltpu


def lstm_kernel(xtm_ref, wih0_ref, whh0_ref, b0_ref,
                w1_ref, b1_ref, fcw_ref, fcb_ref, out_ref):
    # xtm_ref: (T*B, D_in)  time-major flat input rows [t0 b0, t0 b1, t1 b0, ...]
    # wih0:    (D_in, 4H)   gate-fused (i,f,g,o along columns), pre-transposed
    # whh0:    (H, 4H)
    # b0:      (1, 4H)      b_ih + b_hh combined (layer 0)
    # w1:      (2H, 4H)     stacked [W_ih_l1^T ; W_hh_l1^T], gate-fused
    # b1:      (1, 4H)      b_ih + b_hh combined (layer 1)
    # fcw:     (1, H)  fc weight row;  fcb: (1, 1)
    # out_ref: (B, 1)
    TB, _ = xtm_ref.shape
    B = out_ref.shape[0]
    T = TB // B
    H = whh0_ref.shape[0]
    f32 = jnp.float32
    HIGHEST = jax.lax.Precision.HIGHEST

    # Hoist weight loads and bias broadcasts out of the time loop.
    whh0 = whh0_ref[...]
    w1 = w1_ref[...]
    b1 = jnp.broadcast_to(b1_ref[...], (B, 4 * H))

    # Layer-0 input projection for ALL timesteps in one MXU matmul, off the
    # serial critical chain.  (T*B, 4H)
    xw0 = (jnp.dot(xtm_ref[...], wih0_ref[...],
                   preferred_element_type=f32, precision=HIGHEST)
           + jnp.broadcast_to(b0_ref[...], (TB, 4 * H)))

    def gates(pre):
        # One sigmoid over all 4H lanes (i/f/o slices used), one tanh for g.
        sg = jax.nn.sigmoid(pre)
        g = jnp.tanh(pre[:, 2 * H:3 * H])
        return sg[:, 0:H], sg[:, H:2 * H], g, sg[:, 3 * H:4 * H]

    def cell(pre, h, c):
        i, f, g, o = gates(pre)
        c_new = f * c + i * g
        h_new = o * jnp.tanh(c_new)
        return h_new, c_new

    zero = jnp.zeros((B, H), f32)
    h0, c0, h1, c1 = zero, zero, zero, zero

    # TODO(synk): inter-layer dropout only applies in PyTorch training mode;
    # eval-mode semantics (no dropout) are implemented here.
    for t in range(T):  # static unroll: T is small; state stays in vregs
        # layer 0: single on-chain matmul (h0 @ whh0); x-path was hoisted.
        pre0 = xw0[t * B:(t + 1) * B, :] + jnp.dot(
            h0, whh0, preferred_element_type=f32, precision=HIGHEST)
        h0, c0 = cell(pre0, h0, c0)

        # layer 1: fused single matmul over concatenated [h0 | h1] (B, 2H).
        hcat = jnp.concatenate([h0, h1], axis=-1)
        pre1 = jnp.dot(hcat, w1,
                       preferred_element_type=f32, precision=HIGHEST) + b1
        h1, c1 = cell(pre1, h1, c1)

    # fc on the last timestep's top-layer hidden state: VPU multiply + lane
    # reduction instead of an N=1 MXU matmul.
    out_ref[...] = (jnp.sum(h1 * fcw_ref[...], axis=-1, keepdims=True)
                    + fcb_ref[...])


def lstm_forward(x, params):
    """x: (B, T, D_in) float32 (PyTorch batch_first). Returns (B,) like out.squeeze()."""
    B, T, D = x.shape
    H = params["whh0"].shape[0]

    # Time-major flat input so the in-kernel per-step read of the precomputed
    # projection is a contiguous leading-row block.
    x_tm = jnp.transpose(x, (1, 0, 2)).reshape(T * B, D)
    # Stack layer-1 x-path and h-path weights so layer 1 is one matmul/step.
    w1 = jnp.concatenate([params["wih1"], params["whh1"]], axis=0)  # (2H, 4H)

    out = pl.pallas_call(
        lstm_kernel,
        out_shape=jax.ShapeDtypeStruct((B, 1), jnp.float32),
        in_specs=[pl.BlockSpec(memory_space=pltpu.MemorySpace.VMEM)] * 8,
        out_specs=pl.BlockSpec(memory_space=pltpu.MemorySpace.VMEM),
    )(x_tm,
      params["wih0"], params["whh0"], params["b0"],
      w1, params["b1"],
      params["fcw"], params["fcb"])

    return out.squeeze()  # matches torch .squeeze(): (B,) for output_dim=1, B>1


def lstm_reference(x, p):
    """Pure-JAX reference of the same forward pass (for verification)."""
    B, T, D = x.shape
    H = p["whh0"].shape[0]
    HIGHEST = jax.lax.Precision.HIGHEST

    def cell(x_t, h, c, wih, whh, b):
        pre = (jnp.dot(x_t, wih, precision=HIGHEST)
               + jnp.dot(h, whh, precision=HIGHEST) + b)
        i = jax.nn.sigmoid(pre[:, 0:H])
        f = jax.nn.sigmoid(pre[:, H:2 * H])
        g = jnp.tanh(pre[:, 2 * H:3 * H])
        o = jax.nn.sigmoid(pre[:, 3 * H:4 * H])
        c = f * c + i * g
        h = o * jnp.tanh(c)
        return h, c

    init = tuple(jnp.zeros((B, H), jnp.float32) for _ in range(4))

    def step(carry, x_t):
        h0, c0, h1, c1 = carry
        h0, c0 = cell(x_t, h0, c0, p["wih0"], p["whh0"], p["b0"])
        h1, c1 = cell(h0, h1, c1, p["wih1"], p["whh1"], p["b1"])
        return (h0, c0, h1, c1), None

    (h0, c0, h1, c1), _ = jax.lax.scan(step, init, jnp.transpose(x, (1, 0, 2)))
    return jnp.sum(h1 * p["fcw"], axis=-1) + p["fcb"][0, 0]


if __name__ == "__main__":
    # Shapes implied by the module: input_dim=5 features, hidden_dim=20,
    # num_layers=2, output_dim=1; small batch=2, seq=8.
    B, T, D, H = 2, 8, 5, 20

    key = jax.random.PRNGKey(0)
    keys = jax.random.split(key, 9)
    bound = 1.0 / jnp.sqrt(jnp.float32(H))

    def u(kk, shape):
        return jax.random.uniform(kk, shape, jnp.float32, -bound, bound)

    # Gate-fused layout: columns are [i | f | g | o] blocks of width H
    # (a torch checkpoint's W_ih_l0 (4H, D) maps here via transpose).
    params = dict(
        wih0=u(keys[0], (D, 4 * H)),        # layer 0: W_ih^T, gates fused
        whh0=u(keys[1], (H, 4 * H)),        # layer 0: W_hh^T, gates fused
        b0=u(keys[2], (1, 4 * H)) * 2.0,    # layer 0: b_ih + b_hh combined
        wih1=u(keys[3], (H, 4 * H)),        # layer 1: W_ih^T, gates fused
        whh1=u(keys[4], (H, 4 * H)),        # layer 1: W_hh^T, gates fused
        b1=u(keys[5], (1, 4 * H)) * 2.0,    # layer 1: b_ih + b_hh combined
        fcw=u(keys[6], (1, H)),             # fc weight row
        fcb=u(keys[7], (1, 1)),             # fc bias
    )

    x = jax.random.normal(keys[8], (B, T, D), jnp.float32)

    y = lstm_forward(x, params)
    jax.block_until_ready(y)

    y_ref = lstm_reference(x, params)
    assert y.shape == (B,), y.shape
    assert jnp.allclose(y, y_ref, atol=1e-4, rtol=1e-4), (y, y_ref)

    print("KERNEL_OK")
</pallas_src>

<mosaic_0001>
module attributes {stable_mosaic.version = 11 : i64} {
  func.func @lstm_kernel(%arg0: memref<16x5xf32, #tpu.memory_space<vmem>>, %arg1: memref<5x80xf32, #tpu.memory_space<vmem>>, %arg2: memref<20x80xf32, #tpu.memory_space<vmem>>, %arg3: memref<1x80xf32, #tpu.memory_space<vmem>>, %arg4: memref<40x80xf32, #tpu.memory_space<vmem>>, %arg5: memref<1x80xf32, #tpu.memory_space<vmem>>, %arg6: memref<1x20xf32, #tpu.memory_space<vmem>>, %arg7: memref<1x1xf32, #tpu.memory_space<vmem>>, %arg8: memref<2x1xf32, #tpu.memory_space<vmem>>) attributes {dimension_semantics = [], scalar_prefetch = 0 : i64, scratch_operands = 0 : i64, tpu.core_type = #tpu.core_type<tc>} {
    %c0 = arith.constant 0 : index
    %c0_0 = arith.constant 0 : index
    %0 = vector.load %arg2[%c0, %c0_0] : memref<20x80xf32, #tpu.memory_space<vmem>>, vector<20x80xf32>
    %c0_1 = arith.constant 0 : index
    %c0_2 = arith.constant 0 : index
    %1 = vector.load %arg4[%c0_1, %c0_2] : memref<40x80xf32, #tpu.memory_space<vmem>>, vector<40x80xf32>
    %c0_3 = arith.constant 0 : index
    %c0_4 = arith.constant 0 : index
    %2 = vector.load %arg5[%c0_3, %c0_4] : memref<1x80xf32, #tpu.memory_space<vmem>>, vector<1x80xf32>
    %3 = vector.shape_cast %2 : vector<1x80xf32> to vector<1x80xf32>
    %4 = vector.broadcast %3 : vector<1x80xf32> to vector<2x80xf32>
    %c0_5 = arith.constant 0 : index
    %c0_6 = arith.constant 0 : index
    %5 = vector.load %arg0[%c0_5, %c0_6] : memref<16x5xf32, #tpu.memory_space<vmem>>, vector<16x5xf32>
    %c0_7 = arith.constant 0 : index
    %c0_8 = arith.constant 0 : index
    %6 = vector.load %arg1[%c0_7, %c0_8] : memref<5x80xf32, #tpu.memory_space<vmem>>, vector<5x80xf32>
    %cst = arith.constant dense<0.000000e+00> : vector<16x80xf32>
    %7 = tpu.matmul %5, %6, %cst {dimension_numbers = #tpu.dot_dimension_numbers<[1], [0], [0], [1], [0, 0, 1, 1], [], []>, precision = #tpu.contract_precision<fp32>} : vector<16x5xf32>, vector<5x80xf32>, vector<16x80xf32> -> vector<16x80xf32>
    %c0_9 = arith.constant 0 : index
    %c0_10 = arith.constant 0 : index
    %8 = vector.load %arg3[%c0_9, %c0_10] : memref<1x80xf32, #tpu.memory_space<vmem>>, vector<1x80xf32>
    %9 = vector.shape_cast %8 : vector<1x80xf32> to vector<1x80xf32>
    %10 = vector.broadcast %9 : vector<1x80xf32> to vector<16x80xf32>
    %11 = arith.addf %7, %10 : vector<16x80xf32>
    %cst_11 = arith.constant 0.000000e+00 : f32
    %12 = vector.broadcast %cst_11 : f32 to vector<2x20xf32>
    %13 = vector.extract_strided_slice %11 {offsets = [0, 0], sizes = [2, 80], strides = [1, 1]} : vector<16x80xf32> to vector<2x80xf32>
    %cst_12 = arith.constant dense<0.000000e+00> : vector<2x80xf32>
    %14 = tpu.matmul %12, %0, %cst_12 {dimension_numbers = #tpu.dot_dimension_numbers<[1], [0], [0], [1], [0, 0, 1, 1], [], []>, precision = #tpu.contract_precision<fp32>} : vector<2x20xf32>, vector<20x80xf32>, vector<2x80xf32> -> vector<2x80xf32>
    %15 = arith.addf %13, %14 : vector<2x80xf32>
    %16 = arith.negf %15 : vector<2x80xf32>
    %17 = math.exp %16 : vector<2x80xf32>
    %cst_13 = arith.constant 1.000000e+00 : f32
    %18 = vector.broadcast %cst_13 : f32 to vector<2x80xf32>
    %19 = arith.addf %18, %17 : vector<2x80xf32>
    %20 = arith.divf %18, %19 : vector<2x80xf32>
    %21 = vector.extract_strided_slice %15 {offsets = [0, 40], sizes = [2, 20], strides = [1, 1]} : vector<2x80xf32> to vector<2x20xf32>
    %22 = math.tanh %21 : vector<2x20xf32>
    %23 = vector.extract_strided_slice %20 {offsets = [0, 0], sizes = [2, 20], strides = [1, 1]} : vector<2x80xf32> to vector<2x20xf32>
    %24 = vector.extract_strided_slice %20 {offsets = [0, 20], sizes = [2, 20], strides = [1, 1]} : vector<2x80xf32> to vector<2x20xf32>
    %25 = vector.extract_strided_slice %20 {offsets = [0, 60], sizes = [2, 20], strides = [1, 1]} : vector<2x80xf32> to vector<2x20xf32>
    %26 = arith.mulf %24, %12 : vector<2x20xf32>
    %27 = arith.mulf %23, %22 : vector<2x20xf32>
    %28 = arith.addf %26, %27 : vector<2x20xf32>
    %29 = math.tanh %28 : vector<2x20xf32>
    %30 = arith.mulf %25, %29 : vector<2x20xf32>
    %31 = tpu.concatenate %30, %12 in 1 : vector<2x20xf32>, vector<2x20xf32> -> vector<2x40xf32>
    %cst_14 = arith.constant dense<0.000000e+00> : vector<2x80xf32>
    %32 = tpu.matmul %31, %1, %cst_14 {dimension_numbers = #tpu.dot_dimension_numbers<[1], [0], [0], [1], [0, 0, 1, 1], [], []>, precision = #tpu.contract_precision<fp32>} : vector<2x40xf32>, vector<40x80xf32>, vector<2x80xf32> -> vector<2x80xf32>
    %33 = arith.addf %32, %4 : vector<2x80xf32>
    %34 = arith.negf %33 : vector<2x80xf32>
    %35 = math.exp %34 : vector<2x80xf32>
    %cst_15 = arith.constant 1.000000e+00 : f32
    %36 = vector.broadcast %cst_15 : f32 to vector<2x80xf32>
    %37 = arith.addf %36, %35 : vector<2x80xf32>
    %38 = arith.divf %36, %37 : vector<2x80xf32>
    %39 = vector.extract_strided_slice %33 {offsets = [0, 40], sizes = [2, 20], strides = [1, 1]} : vector<2x80xf32> to vector<2x20xf32>
    %40 = math.tanh %39 : vector<2x20xf32>
    %41 = vector.extract_strided_slice %38 {offsets = [0, 0], sizes = [2, 20], strides = [1, 1]} : vector<2x80xf32> to vector<2x20xf32>
    %42 = vector.extract_strided_slice %38 {offsets = [0, 20], sizes = [2, 20], strides = [1, 1]} : vector<2x80xf32> to vector<2x20xf32>
    %43 = vector.extract_strided_slice %38 {offsets = [0, 60], sizes = [2, 20], strides = [1, 1]} : vector<2x80xf32> to vector<2x20xf32>
    %44 = arith.mulf %42, %12 : vector<2x20xf32>
    %45 = arith.mulf %41, %40 : vector<2x20xf32>
    %46 = arith.addf %44, %45 : vector<2x20xf32>
    %47 = math.tanh %46 : vector<2x20xf32>
    %48 = arith.mulf %43, %47 : vector<2x20xf32>
    %49 = vector.extract_strided_slice %11 {offsets = [2, 0], sizes = [2, 80], strides = [1, 1]} : vector<16x80xf32> to vector<2x80xf32>
    %cst_16 = arith.constant dense<0.000000e+00> : vector<2x80xf32>
    %50 = tpu.matmul %30, %0, %cst_16 {dimension_numbers = #tpu.dot_dimension_numbers<[1], [0], [0], [1], [0, 0, 1, 1], [], []>, precision = #tpu.contract_precision<fp32>} : vector<2x20xf32>, vector<20x80xf32>, vector<2x80xf32> -> vector<2x80xf32>
    %51 = arith.addf %49, %50 : vector<2x80xf32>
    %52 = arith.negf %51 : vector<2x80xf32>
    %53 = math.exp %52 : vector<2x80xf32>
    %cst_17 = arith.constant 1.000000e+00 : f32
    %54 = vector.broadcast %cst_17 : f32 to vector<2x80xf32>
    %55 = arith.addf %54, %53 : vector<2x80xf32>
    %56 = arith.divf %54, %55 : vector<2x80xf32>
    %57 = vector.extract_strided_slice %51 {offsets = [0, 40], sizes = [2, 20], strides = [1, 1]} : vector<2x80xf32> to vector<2x20xf32>
    %58 = math.tanh %57 : vector<2x20xf32>
    %59 = vector.extract_strided_slice %56 {offsets = [0, 0], sizes = [2, 20], strides = [1, 1]} : vector<2x80xf32> to vector<2x20xf32>
    %60 = vector.extract_strided_slice %56 {offsets = [0, 20], sizes = [2, 20], strides = [1, 1]} : vector<2x80xf32> to vector<2x20xf32>
    %61 = vector.extract_strided_slice %56 {offsets = [0, 60], sizes = [2, 20], strides = [1, 1]} : vector<2x80xf32> to vector<2x20xf32>
    %62 = arith.mulf %60, %28 : vector<2x20xf32>
    %63 = arith.mulf %59, %58 : vector<2x20xf32>
    %64 = arith.addf %62, %63 : vector<2x20xf32>
    %65 = math.tanh %64 : vector<2x20xf32>
    %66 = arith.mulf %61, %65 : vector<2x20xf32>
    %67 = tpu.concatenate %66, %48 in 1 : vector<2x20xf32>, vector<2x20xf32> -> vector<2x40xf32>
    %cst_18 = arith.constant dense<0.000000e+00> : vector<2x80xf32>
    %68 = tpu.matmul %67, %1, %cst_18 {dimension_numbers = #tpu.dot_dimension_numbers<[1], [0], [0], [1], [0, 0, 1, 1], [], []>, precision = #tpu.contract_precision<fp32>} : vector<2x40xf32>, vector<40x80xf32>, vector<2x80xf32> -> vector<2x80xf32>
    %69 = arith.addf %68, %4 : vector<2x80xf32>
    %70 = arith.negf %69 : vector<2x80xf32>
    %71 = math.exp %70 : vector<2x80xf32>
    %cst_19 = arith.constant 1.000000e+00 : f32
    %72 = vector.broadcast %cst_19 : f32 to vector<2x80xf32>
    %73 = arith.addf %72, %71 : vector<2x80xf32>
    %74 = arith.divf %72, %73 : vector<2x80xf32>
    %75 = vector.extract_strided_slice %69 {offsets = [0, 40], sizes = [2, 20], strides = [1, 1]} : vector<2x80xf32> to vector<2x20xf32>
    %76 = math.tanh %75 : vector<2x20xf32>
    %77 = vector.extract_strided_slice %74 {offsets = [0, 0], sizes = [2, 20], strides = [1, 1]} : vector<2x80xf32> to vector<2x20xf32>
    %78 = vector.extract_strided_slice %74 {offsets = [0, 20], sizes = [2, 20], strides = [1, 1]} : vector<2x80xf32> to vector<2x20xf32>
    %79 = vector.extract_strided_slice %74 {offsets = [0, 60], sizes = [2, 20], strides = [1, 1]} : vector<2x80xf32> to vector<2x20xf32>
    %80 = arith.mulf %78, %46 : vector<2x20xf32>
    %81 = arith.mulf %77, %76 : vector<2x20xf32>
    %82 = arith.addf %80, %81 : vector<2x20xf32>
    %83 = math.tanh %82 : vector<2x20xf32>
    %84 = arith.mulf %79, %83 : vector<2x20xf32>
    %85 = vector.extract_strided_slice %11 {offsets = [4, 0], sizes = [2, 80], strides = [1, 1]} : vector<16x80xf32> to vector<2x80xf32>
    %cst_20 = arith.constant dense<0.000000e+00> : vector<2x80xf32>
    %86 = tpu.matmul %66, %0, %cst_20 {dimension_numbers = #tpu.dot_dimension_numbers<[1], [0], [0], [1], [0, 0, 1, 1], [], []>, precision = #tpu.contract_precision<fp32>} : vector<2x20xf32>, vector<20x80xf32>, vector<2x80xf32> -> vector<2x80xf32>
    %87 = arith.addf %85, %86 : vector<2x80xf32>
    %88 = arith.negf %87 : vector<2x80xf32>
    %89 = math.exp %88 : vector<2x80xf32>
    %cst_21 = arith.constant 1.000000e+00 : f32
    %90 = vector.broadcast %cst_21 : f32 to vector<2x80xf32>
    %91 = arith.addf %90, %89 : vector<2x80xf32>
    %92 = arith.divf %90, %91 : vector<2x80xf32>
    %93 = vector.extract_strided_slice %87 {offsets = [0, 40], sizes = [2, 20], strides = [1, 1]} : vector<2x80xf32> to vector<2x20xf32>
    %94 = math.tanh %93 : vector<2x20xf32>
    %95 = vector.extract_strided_slice %92 {offsets = [0, 0], sizes = [2, 20], strides = [1, 1]} : vector<2x80xf32> to vector<2x20xf32>
    %96 = vector.extract_strided_slice %92 {offsets = [0, 20], sizes = [2, 20], strides = [1, 1]} : vector<2x80xf32> to vector<2x20xf32>
    %97 = vector.extract_strided_slice %92 {offsets = [0, 60], sizes = [2, 20], strides = [1, 1]} : vector<2x80xf32> to vector<2x20xf32>
    %98 = arith.mulf %96, %64 : vector<2x20xf32>
    %99 = arith.mulf %95, %94 : vector<2x20xf32>
    %100 = arith.addf %98, %99 : vector<2x20xf32>
    %101 = math.tanh %100 : vector<2x20xf32>
    %102 = arith.mulf %97, %101 : vector<2x20xf32>
    %103 = tpu.concatenate %102, %84 in 1 : vector<2x20xf32>, vector<2x20xf32> -> vector<2x40xf32>
    %cst_22 = arith.constant dense<0.000000e+00> : vector<2x80xf32>
    %104 = tpu.matmul %103, %1, %cst_22 {dimension_numbers = #tpu.dot_dimension_numbers<[1], [0], [0], [1], [0, 0, 1, 1], [], []>, precision = #tpu.contract_precision<fp32>} : vector<2x40xf32>, vector<40x80xf32>, vector<2x80xf32> -> vector<2x80xf32>
    %105 = arith.addf %104, %4 : vector<2x80xf32>
    %106 = arith.negf %105 : vector<2x80xf32>
    %107 = math.exp %106 : vector<2x80xf32>
    %cst_23 = arith.constant 1.000000e+00 : f32
    %108 = vector.broadcast %cst_23 : f32 to vector<2x80xf32>
    %109 = arith.addf %108, %107 : vector<2x80xf32>
    %110 = arith.divf %108, %109 : vector<2x80xf32>
    %111 = vector.extract_strided_slice %105 {offsets = [0, 40], sizes = [2, 20], strides = [1, 1]} : vector<2x80xf32> to vector<2x20xf32>
    %112 = math.tanh %111 : vector<2x20xf32>
    %113 = vector.extract_strided_slice %110 {offsets = [0, 0], sizes = [2, 20], strides = [1, 1]} : vector<2x80xf32> to vector<2x20xf32>
    %114 = vector.extract_strided_slice %110 {offsets = [0, 20], sizes = [2, 20], strides = [1, 1]} : vector<2x80xf32> to vector<2x20xf32>
    %115 = vector.extract_strided_slice %110 {offsets = [0, 60], sizes = [2, 20], strides = [1, 1]} : vector<2x80xf32> to vector<2x20xf32>
    %116 = arith.mulf %114, %82 : vector<2x20xf32>
    %117 = arith.mulf %113, %112 : vector<2x20xf32>
    %118 = arith.addf %116, %117 : vector<2x20xf32>
    %119 = math.tanh %118 : vector<2x20xf32>
    %120 = arith.mulf %115, %119 : vector<2x20xf32>
    %121 = vector.extract_strided_slice %11 {offsets = [6, 0], sizes = [2, 80], strides = [1, 1]} : vector<16x80xf32> to vector<2x80xf32>
    %cst_24 = arith.constant dense<0.000000e+00> : vector<2x80xf32>
    %122 = tpu.matmul %102, %0, %cst_24 {dimension_numbers = #tpu.dot_dimension_numbers<[1], [0], [0], [1], [0, 0, 1, 1], [], []>, precision = #tpu.contract_precision<fp32>} : vector<2x20xf32>, vector<20x80xf32>, vector<2x80xf32> -> vector<2x80xf32>
    %123 = arith.addf %121, %122 : vector<2x80xf32>
    %124 = arith.negf %123 : vector<2x80xf32>
    %125 = math.exp %124 : vector<2x80xf32>
    %cst_25 = arith.constant 1.000000e+00 : f32
    %126 = vector.broadcast %cst_25 : f32 to vector<2x80xf32>
    %127 = arith.addf %126, %125 : vector<2x80xf32>
    %128 = arith.divf %126, %127 : vector<2x80xf32>
    %129 = vector.extract_strided_slice %123 {offsets = [0, 40], sizes = [2, 20], strides = [1, 1]} : vector<2x80xf32> to vector<2x20xf32>
    %130 = math.tanh %129 : vector<2x20xf32>
    %131 = vector.extract_strided_slice %128 {offsets = [0, 0], sizes = [2, 20], strides = [1, 1]} : vector<2x80xf32> to vector<2x20xf32>
    %132 = vector.extract_strided_slice %128 {offsets = [0, 20], sizes = [2, 20], strides = [1, 1]} : vector<2x80xf32> to vector<2x20xf32>
    %133 = vector.extract_strided_slice %128 {offsets = [0, 60], sizes = [2, 20], strides = [1, 1]} : vector<2x80xf32> to vector<2x20xf32>
    %134 = arith.mulf %132, %100 : vector<2x20xf32>
    %135 = arith.mulf %131, %130 : vector<2x20xf32>
    %136 = arith.addf %134, %135 : vector<2x20xf32>
    %137 = math.tanh %136 : vector<2x20xf32>
    %138 = arith.mulf %133, %137 : vector<2x20xf32>
    %139 = tpu.concatenate %138, %120 in 1 : vector<2x20xf32>, vector<2x20xf32> -> vector<2x40xf32>
    %cst_26 = arith.constant dense<0.000000e+00> : vector<2x80xf32>
    %140 = tpu.matmul %139, %1, %cst_26 {dimension_numbers = #tpu.dot_dimension_numbers<[1], [0], [0], [1], [0, 0, 1, 1], [], []>, precision = #tpu.contract_precision<fp32>} : vector<2x40xf32>, vector<40x80xf32>, vector<2x80xf32> -> vector<2x80xf32>
    %141 = arith.addf %140, %4 : vector<2x80xf32>
    %142 = arith.negf %141 : vector<2x80xf32>
    %143 = math.exp %142 : vector<2x80xf32>
    %cst_27 = arith.constant 1.000000e+00 : f32
    %144 = vector.broadcast %cst_27 : f32 to vector<2x80xf32>
    %145 = arith.addf %144, %143 : vector<2x80xf32>
    %146 = arith.divf %144, %145 : vector<2x80xf32>
    %147 = vector.extract_strided_slice %141 {offsets = [0, 40], sizes = [2, 20], strides = [1, 1]} : vector<2x80xf32> to vector<2x20xf32>
    %148 = math.tanh %147 : vector<2x20xf32>
    %149 = vector.extract_strided_slice %146 {offsets = [0, 0], sizes = [2, 20], strides = [1, 1]} : vector<2x80xf32> to vector<2x20xf32>
    %150 = vector.extract_strided_slice %146 {offsets = [0, 20], sizes = [2, 20], strides = [1, 1]} : vector<2x80xf32> to vector<2x20xf32>
    %151 = vector.extract_strided_slice %146 {offsets = [0, 60], sizes = [2, 20], strides = [1, 1]} : vector<2x80xf32> to vector<2x20xf32>
    %152 = arith.mulf %150, %118 : vector<2x20xf32>
    %153 = arith.mulf %149, %148 : vector<2x20xf32>
    %154 = arith.addf %152, %153 : vector<2x20xf32>
    %155 = math.tanh %154 : vector<2x20xf32>
    %156 = arith.mulf %151, %155 : vector<2x20xf32>
    %157 = vector.extract_strided_slice %11 {offsets = [8, 0], sizes = [2, 80], strides = [1, 1]} : vector<16x80xf32> to vector<2x80xf32>
    %cst_28 = arith.constant dense<0.000000e+00> : vector<2x80xf32>
    %158 = tpu.matmul %138, %0, %cst_28 {dimension_numbers = #tpu.dot_dimension_numbers<[1], [0], [0], [1], [0, 0, 1, 1], [], []>, precision = #tpu.contract_precision<fp32>} : vector<2x20xf32>, vector<20x80xf32>, vector<2x80xf32> -> vector<2x80xf32>
    %159 = arith.addf %157, %158 : vector<2x80xf32>
    %160 = arith.negf %159 : vector<2x80xf32>
    %161 = math.exp %160 : vector<2x80xf32>
    %cst_29 = arith.constant 1.000000e+00 : f32
    %162 = vector.broadcast %cst_29 : f32 to vector<2x80xf32>
    %163 = arith.addf %162, %161 : vector<2x80xf32>
    %164 = arith.divf %162, %163 : vector<2x80xf32>
    %165 = vector.extract_strided_slice %159 {offsets = [0, 40], sizes = [2, 20], strides = [1, 1]} : vector<2x80xf32> to vector<2x20xf32>
    %166 = math.tanh %165 : vector<2x20xf32>
    %167 = vector.extract_strided_slice %164 {offsets = [0, 0], sizes = [2, 20], strides = [1, 1]} : vector<2x80xf32> to vector<2x20xf32>
    %168 = vector.extract_strided_slice %164 {offsets = [0, 20], sizes = [2, 20], strides = [1, 1]} : vector<2x80xf32> to vector<2x20xf32>
    %169 = vector.extract_strided_slice %164 {offsets = [0, 60], sizes = [2, 20], strides = [1, 1]} : vector<2x80xf32> to vector<2x20xf32>
    %170 = arith.mulf %168, %136 : vector<2x20xf32>
    %171 = arith.mulf %167, %166 : vector<2x20xf32>
    %172 = arith.addf %170, %171 : vector<2x20xf32>
    %173 = math.tanh %172 : vector<2x20xf32>
    %174 = arith.mulf %169, %173 : vector<2x20xf32>
    %175 = tpu.concatenate %174, %156 in 1 : vector<2x20xf32>, vector<2x20xf32> -> vector<2x40xf32>
    %cst_30 = arith.constant dense<0.000000e+00> : vector<2x80xf32>
    %176 = tpu.matmul %175, %1, %cst_30 {dimension_numbers = #tpu.dot_dimension_numbers<[1], [0], [0], [1], [0, 0, 1, 1], [], []>, precision = #tpu.contract_precision<fp32>} : vector<2x40xf32>, vector<40x80xf32>, vector<2x80xf32> -> vector<2x80xf32>
    %177 = arith.addf %176, %4 : vector<2x80xf32>
    %178 = arith.negf %177 : vector<2x80xf32>
    %179 = math.exp %178 : vector<2x80xf32>
    %cst_31 = arith.constant 1.000000e+00 : f32
    %180 = vector.broadcast %cst_31 : f32 to vector<2x80xf32>
    %181 = arith.addf %180, %179 : vector<2x80xf32>
    %182 = arith.divf %180, %181 : vector<2x80xf32>
    %183 = vector.extract_strided_slice %177 {offsets = [0, 40], sizes = [2, 20], strides = [1, 1]} : vector<2x80xf32> to vector<2x20xf32>
    %184 = math.tanh %183 : vector<2x20xf32>
    %185 = vector.extract_strided_slice %182 {offsets = [0, 0], sizes = [2, 20], strides = [1, 1]} : vector<2x80xf32> to vector<2x20xf32>
    %186 = vector.extract_strided_slice %182 {offsets = [0, 20], sizes = [2, 20], strides = [1, 1]} : vector<2x80xf32> to vector<2x20xf32>
    %187 = vector.extract_strided_slice %182 {offsets = [0, 60], sizes = [2, 20], strides = [1, 1]} : vector<2x80xf32> to vector<2x20xf32>
    %188 = arith.mulf %186, %154 : vector<2x20xf32>
    %189 = arith.mulf %185, %184 : vector<2x20xf32>
    %190 = arith.addf %188, %189 : vector<2x20xf32>
    %191 = math.tanh %190 : vector<2x20xf32>
    %192 = arith.mulf %187, %191 : vector<2x20xf32>
    %193 = vector.extract_strided_slice %11 {offsets = [10, 0], sizes = [2, 80], strides = [1, 1]} : vector<16x80xf32> to vector<2x80xf32>
    %cst_32 = arith.constant dense<0.000000e+00> : vector<2x80xf32>
    %194 = tpu.matmul %174, %0, %cst_32 {dimension_numbers = #tpu.dot_dimension_numbers<[1], [0], [0], [1], [0, 0, 1, 1], [], []>, precision = #tpu.contract_precision<fp32>} : vector<2x20xf32>, vector<20x80xf32>, vector<2x80xf32> -> vector<2x80xf32>
    %195 = arith.addf %193, %194 : vector<2x80xf32>
    %196 = arith.negf %195 : vector<2x80xf32>
    %197 = math.exp %196 : vector<2x80xf32>
    %cst_33 = arith.constant 1.000000e+00 : f32
    %198 = vector.broadcast %cst_33 : f32 to vector<2x80xf32>
    %199 = arith.addf %198, %197 : vector<2x80xf32>
    %200 = arith.divf %198, %199 : vector<2x80xf32>
    %201 = vector.extract_strided_slice %195 {offsets = [0, 40], sizes = [2, 20], strides = [1, 1]} : vector<2x80xf32> to vector<2x20xf32>
    %202 = math.tanh %201 : vector<2x20xf32>
    %203 = vector.extract_strided_slice %200 {offsets = [0, 0], sizes = [2, 20], strides = [1, 1]} : vector<2x80xf32> to vector<2x20xf32>
    %204 = vector.extract_strided_slice %200 {offsets = [0, 20], sizes = [2, 20], strides = [1, 1]} : vector<2x80xf32> to vector<2x20xf32>
    %205 = vector.extract_strided_slice %200 {offsets = [0, 60], sizes = [2, 20], strides = [1, 1]} : vector<2x80xf32> to vector<2x20xf32>
    %206 = arith.mulf %204, %172 : vector<2x20xf32>
    %207 = arith.mulf %203, %202 : vector<2x20xf32>
    %208 = arith.addf %206, %207 : vector<2x20xf32>
    %209 = math.tanh %208 : vector<2x20xf32>
    %210 = arith.mulf %205, %209 : vector<2x20xf32>
    %211 = tpu.concatenate %210, %192 in 1 : vector<2x20xf32>, vector<2x20xf32> -> vector<2x40xf32>
    %cst_34 = arith.constant dense<0.000000e+00> : vector<2x80xf32>
    %212 = tpu.matmul %211, %1, %cst_34 {dimension_numbers = #tpu.dot_dimension_numbers<[1], [0], [0], [1], [0, 0, 1, 1], [], []>, precision = #tpu.contract_precision<fp32>} : vector<2x40xf32>, vector<40x80xf32>, vector<2x80xf32> -> vector<2x80xf32>
    %213 = arith.addf %212, %4 : vector<2x80xf32>
    %214 = arith.negf %213 : vector<2x80xf32>
    %215 = math.exp %214 : vector<2x80xf32>
    %cst_35 = arith.constant 1.000000e+00 : f32
    %216 = vector.broadcast %cst_35 : f32 to vector<2x80xf32>
    %217 = arith.addf %216, %215 : vector<2x80xf32>
    %218 = arith.divf %216, %217 : vector<2x80xf32>
    %219 = vector.extract_strided_slice %213 {offsets = [0, 40], sizes = [2, 20], strides = [1, 1]} : vector<2x80xf32> to vector<2x20xf32>
    %220 = math.tanh %219 : vector<2x20xf32>
    %221 = vector.extract_strided_slice %218 {offsets = [0, 0], sizes = [2, 20], strides = [1, 1]} : vector<2x80xf32> to vector<2x20xf32>
    %222 = vector.extract_strided_slice %218 {offsets = [0, 20], sizes = [2, 20], strides = [1, 1]} : vector<2x80xf32> to vector<2x20xf32>
    %223 = vector.extract_strided_slice %218 {offsets = [0, 60], sizes = [2, 20], strides = [1, 1]} : vector<2x80xf32> to vector<2x20xf32>
    %224 = arith.mulf %222, %190 : vector<2x20xf32>
    %225 = arith.mulf %221, %220 : vector<2x20xf32>
    %226 = arith.addf %224, %225 : vector<2x20xf32>
    %227 = math.tanh %226 : vector<2x20xf32>
    %228 = arith.mulf %223, %227 : vector<2x20xf32>
    %229 = vector.extract_strided_slice %11 {offsets = [12, 0], sizes = [2, 80], strides = [1, 1]} : vector<16x80xf32> to vector<2x80xf32>
    %cst_36 = arith.constant dense<0.000000e+00> : vector<2x80xf32>
    %230 = tpu.matmul %210, %0, %cst_36 {dimension_numbers = #tpu.dot_dimension_numbers<[1], [0], [0], [1], [0, 0, 1, 1], [], []>, precision = #tpu.contract_precision<fp32>} : vector<2x20xf32>, vector<20x80xf32>, vector<2x80xf32> -> vector<2x80xf32>
    %231 = arith.addf %229, %230 : vector<2x80xf32>
    %232 = arith.negf %231 : vector<2x80xf32>
    %233 = math.exp %232 : vector<2x80xf32>
    %cst_37 = arith.constant 1.000000e+00 : f32
    %234 = vector.broadcast %cst_37 : f32 to vector<2x80xf32>
    %235 = arith.addf %234, %233 : vector<2x80xf32>
    %236 = arith.divf %234, %235 : vector<2x80xf32>
    %237 = vector.extract_strided_slice %231 {offsets = [0, 40], sizes = [2, 20], strides = [1, 1]} : vector<2x80xf32> to vector<2x20xf32>
    %238 = math.tanh %237 : vector<2x20xf32>
    %239 = vector.extract_strided_slice %236 {offsets = [0, 0], sizes = [2, 20], strides = [1, 1]} : vector<2x80xf32> to vector<2x20xf32>
    %240 = vector.extract_strided_slice %236 {offsets = [0, 20], sizes = [2, 20], strides = [1, 1]} : vector<2x80xf32> to vector<2x20xf32>
    %241 = vector.extract_strided_slice %236 {offsets = [0, 60], sizes = [2, 20], strides = [1, 1]} : vector<2x80xf32> to vector<2x20xf32>
    %242 = arith.mulf %240, %208 : vector<2x20xf32>
    %243 = arith.mulf %239, %238 : vector<2x20xf32>
    %244 = arith.addf %242, %243 : vector<2x20xf32>
    %245 = math.tanh %244 : vector<2x20xf32>
    %246 = arith.mulf %241, %245 : vector<2x20xf32>
    %247 = tpu.concatenate %246, %228 in 1 : vector<2x20xf32>, vector<2x20xf32> -> vector<2x40xf32>
    %cst_38 = arith.constant dense<0.000000e+00> : vector<2x80xf32>
    %248 = tpu.matmul %247, %1, %cst_38 {dimension_numbers = #tpu.dot_dimension_numbers<[1], [0], [0], [1], [0, 0, 1, 1], [], []>, precision = #tpu.contract_precision<fp32>} : vector<2x40xf32>, vector<40x80xf32>, vector<2x80xf32> -> vector<2x80xf32>
    %249 = arith.addf %248, %4 : vector<2x80xf32>
    %250 = arith.negf %249 : vector<2x80xf32>
    %251 = math.exp %250 : vector<2x80xf32>
    %cst_39 = arith.constant 1.000000e+00 : f32
    %252 = vector.broadcast %cst_39 : f32 to vector<2x80xf32>
    %253 = arith.addf %252, %251 : vector<2x80xf32>
    %254 = arith.divf %252, %253 : vector<2x80xf32>
    %255 = vector.extract_strided_slice %249 {offsets = [0, 40], sizes = [2, 20], strides = [1, 1]} : vector<2x80xf32> to vector<2x20xf32>
    %256 = math.tanh %255 : vector<2x20xf32>
    %257 = vector.extract_strided_slice %254 {offsets = [0, 0], sizes = [2, 20], strides = [1, 1]} : vector<2x80xf32> to vector<2x20xf32>
    %258 = vector.extract_strided_slice %254 {offsets = [0, 20], sizes = [2, 20], strides = [1, 1]} : vector<2x80xf32> to vector<2x20xf32>
    %259 = vector.extract_strided_slice %254 {offsets = [0, 60], sizes = [2, 20], strides = [1, 1]} : vector<2x80xf32> to vector<2x20xf32>
    %260 = arith.mulf %258, %226 : vector<2x20xf32>
    %261 = arith.mulf %257, %256 : vector<2x20xf32>
    %262 = arith.addf %260, %261 : vector<2x20xf32>
    %263 = math.tanh %262 : vector<2x20xf32>
    %264 = arith.mulf %259, %263 : vector<2x20xf32>
    %265 = vector.extract_strided_slice %11 {offsets = [14, 0], sizes = [2, 80], strides = [1, 1]} : vector<16x80xf32> to vector<2x80xf32>
    %cst_40 = arith.constant dense<0.000000e+00> : vector<2x80xf32>
    %266 = tpu.matmul %246, %0, %cst_40 {dimension_numbers = #tpu.dot_dimension_numbers<[1], [0], [0], [1], [0, 0, 1, 1], [], []>, precision = #tpu.contract_precision<fp32>} : vector<2x20xf32>, vector<20x80xf32>, vector<2x80xf32> -> vector<2x80xf32>
    %267 = arith.addf %265, %266 : vector<2x80xf32>
    %268 = arith.negf %267 : vector<2x80xf32>
    %269 = math.exp %268 : vector<2x80xf32>
    %cst_41 = arith.constant 1.000000e+00 : f32
    %270 = vector.broadcast %cst_41 : f32 to vector<2x80xf32>
    %271 = arith.addf %270, %269 : vector<2x80xf32>
    %272 = arith.divf %270, %271 : vector<2x80xf32>
    %273 = vector.extract_strided_slice %267 {offsets = [0, 40], sizes = [2, 20], strides = [1, 1]} : vector<2x80xf32> to vector<2x20xf32>
    %274 = math.tanh %273 : vector<2x20xf32>
    %275 = vector.extract_strided_slice %272 {offsets = [0, 0], sizes = [2, 20], strides = [1, 1]} : vector<2x80xf32> to vector<2x20xf32>
    %276 = vector.extract_strided_slice %272 {offsets = [0, 20], sizes = [2, 20], strides = [1, 1]} : vector<2x80xf32> to vector<2x20xf32>
    %277 = vector.extract_strided_slice %272 {offsets = [0, 60], sizes = [2, 20], strides = [1, 1]} : vector<2x80xf32> to vector<2x20xf32>
    %278 = arith.mulf %276, %244 : vector<2x20xf32>
    %279 = arith.mulf %275, %274 : vector<2x20xf32>
    %280 = arith.addf %278, %279 : vector<2x20xf32>
    %281 = math.tanh %280 : vector<2x20xf32>
    %282 = arith.mulf %277, %281 : vector<2x20xf32>
    %283 = tpu.concatenate %282, %264 in 1 : vector<2x20xf32>, vector<2x20xf32> -> vector<2x40xf32>
    %cst_42 = arith.constant dense<0.000000e+00> : vector<2x80xf32>
    %284 = tpu.matmul %283, %1, %cst_42 {dimension_numbers = #tpu.dot_dimension_numbers<[1], [0], [0], [1], [0, 0, 1, 1], [], []>, precision = #tpu.contract_precision<fp32>} : vector<2x40xf32>, vector<40x80xf32>, vector<2x80xf32> -> vector<2x80xf32>
    %285 = arith.addf %284, %4 : vector<2x80xf32>
    %286 = arith.negf %285 : vector<2x80xf32>
    %287 = math.exp %286 : vector<2x80xf32>
    %cst_43 = arith.constant 1.000000e+00 : f32
    %288 = vector.broadcast %cst_43 : f32 to vector<2x80xf32>
    %289 = arith.addf %288, %287 : vector<2x80xf32>
    %290 = arith.divf %288, %289 : vector<2x80xf32>
    %291 = vector.extract_strided_slice %285 {offsets = [0, 40], sizes = [2, 20], strides = [1, 1]} : vector<2x80xf32> to vector<2x20xf32>
    %292 = math.tanh %291 : vector<2x20xf32>
    %293 = vector.extract_strided_slice %290 {offsets = [0, 0], sizes = [2, 20], strides = [1, 1]} : vector<2x80xf32> to vector<2x20xf32>
    %294 = vector.extract_strided_slice %290 {offsets = [0, 20], sizes = [2, 20], strides = [1, 1]} : vector<2x80xf32> to vector<2x20xf32>
    %295 = vector.extract_strided_slice %290 {offsets = [0, 60], sizes = [2, 20], strides = [1, 1]} : vector<2x80xf32> to vector<2x20xf32>
    %296 = arith.mulf %294, %262 : vector<2x20xf32>
    %297 = arith.mulf %293, %292 : vector<2x20xf32>
    %298 = arith.addf %296, %297 : vector<2x20xf32>
    %299 = math.tanh %298 : vector<2x20xf32>
    %300 = arith.mulf %295, %299 : vector<2x20xf32>
    %c0_44 = arith.constant 0 : index
    %c0_45 = arith.constant 0 : index
    %301 = vector.load %arg6[%c0_44, %c0_45] : memref<1x20xf32, #tpu.memory_space<vmem>>, vector<1x20xf32>
    %302 = vector.broadcast %301 : vector<1x20xf32> to vector<2x20xf32>
    %303 = arith.mulf %300, %302 : vector<2x20xf32>
    %cst_46 = arith.constant dense<0.000000e+00> : vector<2xf32>
    %304 = vector.multi_reduction <add>, %303, %cst_46 [1] : vector<2x20xf32> to vector<2xf32>
    %305 = vector.shape_cast %304 : vector<2xf32> to vector<2x1xf32>
    %c0_47 = arith.constant 0 : index
    %c0_48 = arith.constant 0 : index
    %306 = vector.load %arg7[%c0_47, %c0_48] : memref<1x1xf32, #tpu.memory_space<vmem>>, vector<1x1xf32>
    %307 = vector.broadcast %306 : vector<1x1xf32> to vector<2x1xf32>
    %308 = arith.addf %305, %307 : vector<2x1xf32>
    %c0_49 = arith.constant 0 : index
    %c0_50 = arith.constant 0 : index
    %309 = vector.load %arg8[%c0_49, %c0_50] : memref<2x1xf32, #tpu.memory_space<vmem>>, vector<2x1xf32>
    tpu.vector_store %arg8[%c0_49, %c0_50], %308 {strides = array<i32>} : memref<2x1xf32, #tpu.memory_space<vmem>>, vector<2x1xf32>,
    return
  }
}

</mosaic_0001>

<llo_original>
// kernel: tpu_custom_call.1
$region0: #{tpu_custom_call.1}
  #allocation0 [shape = 'u32[]', space=smem, size = 0x4, offset = 0x4, fixed_abs, tag = 'smem constant byte address 0x4 - core index']
  #allocation1 [shape = 'u32[72,128]{1,0:T(1,128)}', space=vmem, size = 0x9000, scoped, tag = 'internal scratch']
  #allocation2 [shape = 'f32[1,1]{1,0:T(1,128)S(1)}', space=vmem, size = 0x200, scoped, tag = 'scoped memory for tpu_custom_call.1']
  %s0 = inlined_call_operand.vmem [shape: f32[16,5], index: 0, kind: input, shape index: {}]
  %s1 = inlined_call_operand.hbm [shape: f32[5,80], index: 1, kind: input, shape index: {}]
  %s2 = inlined_call_operand.vmem [shape: f32[20,80], index: 2, kind: input, shape index: {}]
  %s3 = inlined_call_operand.vmem [shape: f32[1,80], index: 3, kind: input, shape index: {}]
  %s4 = inlined_call_operand.hbm [shape: f32[40,80], index: 4, kind: input, shape index: {}]
  %s5 = inlined_call_operand.vmem [shape: f32[1,80], index: 5, kind: input, shape index: {}]
  %s6 = inlined_call_operand.vmem [shape: f32[1,20], index: 6, kind: input, shape index: {}]
  %s7 = inlined_call_operand.<no memory space> [shape: f32[1,1], index: 7, kind: input, shape index: {}]
  %s8 = inlined_call_operand.vmem [shape: f32[2,1], index: 8, kind: output, shape index: {}]
  %s9 = sld [smem:[#allocation0]]
  $region50: #{tpu_custom_call.1} parent=0
    _
  %s11 = ssub.s32 1, %s9
  %s12 = scalar_select 0, %s11, %s9
  %v13 = vstv %s7
  %14 = vst [vmem:[#allocation2] sm:$0x1] %v13
  $region1: #{tpu_custom_call.1} parent=0
    #allocation3 [shape = 'u8[4096]{0}', space=vmem, size = 0x1000, scoped, tag = 'input window, operand 1, single buffered']
    #allocation4 [shape = 's32[1]{0}', space=sflag, size = 0x4, scoped, tag = 'scoped memory for tpu_custom_call.1']
    #allocation5 [shape = 'u8[20480]{0}', space=vmem, size = 0x5000, scoped, tag = 'input window, operand 4, single buffered']
    #allocation6 [shape = 's32[1]{0}', space=sflag, size = 0x4, scoped, tag = 'scoped memory for tpu_custom_call.1']
    %15 = vsyncpa [#allocation4], 0
    %16 = vsyncpa [#allocation6], 0
    // Predicated region
    $region2: #{tpu_custom_call.1} parent=1 // pred_check
      _
    $region3: #{tpu_custom_call.1} parent=1 // pred_check_branch
      %18 = sbr.rel (0) target = $region5
    $region4: #{tpu_custom_call.1} parent=1 // pred_region
      _
    $region5: #{tpu_custom_call.1} parent=1 // pred_fallthru
      _
    // Predicated region
    $region6: #{tpu_custom_call.1} parent=1 // pred_check
      _
    $region7: #{tpu_custom_call.1} parent=1 // pred_check_branch
      %20 = sbr.rel (0) target = $region9
    $region8: #{tpu_custom_call.1} parent=1 // pred_region
      %22 = vsyncadd [#allocation4], 0
      %s24 = sshll.u32 %s1, 4
      %s25 = int_to_ptr.hbm [resolvable:$true] %s24
      %s26 = sshll.u32 [#allocation3], 4
      %s27 = int_to_ptr.vmem [resolvable:$true] %s26
      %29 = dma.hbm_to_vmem [thread:$0]  %s25, 128, %s27, [#allocation4]
    $region9: #{tpu_custom_call.1} parent=1 // pred_fallthru
      _
    // Predicated region
    $region10: #{tpu_custom_call.1} parent=1 // pred_check
      _
    $region11: #{tpu_custom_call.1} parent=1 // pred_check_branch
      %31 = sbr.rel (0) target = $region13
    $region12: #{tpu_custom_call.1} parent=1 // pred_region
      _
    $region13: #{tpu_custom_call.1} parent=1 // pred_fallthru
      _
    // Predicated region
    $region14: #{tpu_custom_call.1} parent=1 // pred_check
      _
    $region15: #{tpu_custom_call.1} parent=1 // pred_check_branch
      %33 = sbr.rel (0) target = $region17
    $region16: #{tpu_custom_call.1} parent=1 // pred_region
      _
    $region17: #{tpu_custom_call.1} parent=1 // pred_fallthru
      _
    // Predicated region
    $region18: #{tpu_custom_call.1} parent=1 // pred_check
      _
    $region19: #{tpu_custom_call.1} parent=1 // pred_check_branch
      %35 = sbr.rel (0) target = $region21
    $region20: #{tpu_custom_call.1} parent=1 // pred_region
      %37 = vsyncadd [#allocation6], 0
      %s38 = sshll.u32 %s4, 4
      %s39 = int_to_ptr.hbm [resolvable:$true] %s38
      %s40 = sshll.u32 [#allocation5], 4
      %s41 = int_to_ptr.vmem [resolvable:$true] %s40
      %46 = dma.hbm_to_vmem [thread:$0]  %s39, 640, %s41, [#allocation6], 128, 128, 8
    $region21: #{tpu_custom_call.1} parent=1 // pred_fallthru
      _
    // Predicated region
    $region22: #{tpu_custom_call.1} parent=1 // pred_check
      _
    $region23: #{tpu_custom_call.1} parent=1 // pred_check_branch
      %48 = sbr.rel (0) target = $region25
    $region24: #{tpu_custom_call.1} parent=1 // pred_region
      _
    $region25: #{tpu_custom_call.1} parent=1 // pred_fallthru
      _
    // Predicated region
    $region26: #{tpu_custom_call.1} parent=1 // pred_check
      _
    $region27: #{tpu_custom_call.1} parent=1 // pred_check_branch
      %50 = sbr.rel (0) target = $region29
    $region28: #{tpu_custom_call.1} parent=1 // pred_region
      _
    $region29: #{tpu_custom_call.1} parent=1 // pred_fallthru
      _
    // Predicated region
    $region30: #{tpu_custom_call.1} parent=1 // pred_check
      _
    $region31: #{tpu_custom_call.1} parent=1 // pred_check_branch
      %52 = sbr.rel (0) target = $region33
    $region32: #{tpu_custom_call.1} parent=1 // pred_region
      _
    $region33: #{tpu_custom_call.1} parent=1 // pred_fallthru
      _
    // Predicated region
    $region34: #{tpu_custom_call.1} parent=1 // pred_check
      _
    $region35: #{tpu_custom_call.1} parent=1 // pred_check_branch
      %54 = sbr.rel (0) target = $region37
    $region36: #{tpu_custom_call.1} parent=1 // pred_region
      %56 = dma.done [#allocation4], 128
    $region37: #{tpu_custom_call.1} parent=1 // pred_fallthru
      _
    // Predicated region
    $region38: #{tpu_custom_call.1} parent=1 // pred_check
      _
    $region39: #{tpu_custom_call.1} parent=1 // pred_check_branch
      %58 = sbr.rel (0) target = $region41
    $region40: #{tpu_custom_call.1} parent=1 // pred_region
      %60 = dma.done [#allocation6], 640
    $region41: #{tpu_custom_call.1} parent=1 // pred_fallthru
      _
    %v61 = vld [vmem:[%s2] sm:$0xff]
    %v62 = vld [vmem:[%s2 + $0x8] sm:$0xff]
    %v63 = vld [vmem:[%s2 + $0x10] sm:$0xf]
    %v64 = vld [vmem:[#allocation5] sm:$0xff]
    %v65 = vld [vmem:[#allocation5 + $0x8] sm:$0xff]
    %v66 = vld [vmem:[#allocation5 + $0x10] sm:$0xff]
    %v67 = vld [vmem:[#allocation5 + $0x18] sm:$0xff]
    %v68 = vld [vmem:[#allocation5 + $0x20] sm:$0xff]
    %v69 = vld [vmem:[%s5] sm:$0x1]
    %v71 = vperm.slane %v69, 0
    %v73 = vld [vmem:[%s0] sm:$0xff]
    %v74 = vld [vmem:[%s0 + $0x8] sm:$0xff]
    %v75 = vld [vmem:[#allocation3] sm:$0x1f]
    %v76 = vld [vmem:[%s3] sm:$0x1]
    %v78 = vperm.slane %v76, 0
    %vm80 = vcmask 39936
    %v82 = vsel %vm80, %v73, 0
    %v85 = vsel %vm80, %v74, 0
    %vm87 = vcmask 1044480
    %v89 = vsel %vm87, %v75, 0
    %91 = vmatpush.msra.mxu0 0.0
    %92 = vmatpush.msra.mxu0 0.0
    %93 = vmatpush.msra.mxu0 0.0
    %94 = vmatpush.msra.mxu0 0.0
    %95 = vmatpush.msra.mxu0 0.0
    %96 = vmatpush.msra.mxu0 0.0
    %97 = vmatpush.msra.mxu0 0.0
    %98 = vmatpush.msra.mxu0 0.0
    %99 = vmatpush.msra.mxu0 0.0
    %100 = vmatpush.msra.mxu0 0.0
    %101 = vmatpush.msra.mxu0 0.0
    %102 = vmatpush.msra.mxu0 0.0
    %103 = vmatpush.msra.mxu0 0.0
    %104 = vmatpush.msra.mxu0 0.0
    %105 = vmatpush.msra.mxu0 0.0
    %v106 = vand.u32 %v89, 4294901760
    %107 = vmatpush.msra.mxu0 %v106
    %v108 = vand.u32 %v82, 4294901760
    %v109 = vsub.f32 %v82, %v108
    %v110 = vand.u32 %v109, 4294901760
    %v111 = vsub.f32 %v109, %v110
    %v112 = vand.u32 %v111, 4294901760
    %113 = vmatmul.f32.gmra.mxu0 %v112
    %v114 = vpop.f32.mrf.mxu0
    %v115 = vadd.f32 %v78, %v114
    %v116 = vand.u32 %v85, 4294901760
    %v117 = vsub.f32 %v85, %v116
    %v118 = vand.u32 %v117, 4294901760
    %v119 = vsub.f32 %v117, %v118
    %v120 = vand.u32 %v119, 4294901760
    %121 = vmatmul.f32.gmra.mxu0 %v120
    %v122 = vpop.f32.mrf.mxu0
    %v123 = vadd.f32 %v78, %v122
    %124 = vdwg.mxu0
    %125 = vmatpush.msra.mxu0 0.0
    %126 = vmatpush.msra.mxu0 0.0
    %127 = vmatpush.msra.mxu0 0.0
    %128 = vmatpush.msra.mxu0 0.0
    %129 = vmatpush.msra.mxu0 0.0
    %130 = vmatpush.msra.mxu0 0.0
    %131 = vmatpush.msra.mxu0 0.0
    %132 = vmatpush.msra.mxu0 0.0
    %133 = vmatpush.msra.mxu0 0.0
    %134 = vmatpush.msra.mxu0 0.0
    %135 = vmatpush.msra.mxu0 0.0
    %136 = vmatpush.msra.mxu0 0.0
    %137 = vmatpush.msra.mxu0 0.0
    %138 = vmatpush.msra.mxu0 0.0
    %139 = vmatpush.msra.mxu0 0.0
    %v140 = vand.u32 %v89, 4294901760
    %v141 = vsub.f32 %v89, %v140
    %v142 = vand.u32 %v141, 4294901760
    %v143 = vsub.f32 %v141, %v142
    %v144 = vand.u32 %v143, 4294901760
    %145 = vmatpush.msra.mxu0 %v144
    %v146 = vand.u32 %v82, 4294901760
    %147 = vmatmul.f32.gmra.mxu0 %v146
    %v148 = vpop.f32.mrf.mxu0
    %v149 = vadd.f32 %v115, %v148
    %v150 = vand.u32 %v85, 4294901760
    %151 = vmatmul.f32.gmra.mxu0 %v150
    %v152 = vpop.f32.mrf.mxu0
    %v153 = vadd.f32 %v123, %v152
    %154 = vdwg.mxu0
    %155 = vmatpush.msra.mxu0 0.0
    %156 = vmatpush.msra.mxu0 0.0
    %157 = vmatpush.msra.mxu0 0.0
    %158 = vmatpush.msra.mxu0 0.0
    %159 = vmatpush.msra.mxu0 0.0
    %160 = vmatpush.msra.mxu0 0.0
    %161 = vmatpush.msra.mxu0 0.0
    %162 = vmatpush.msra.mxu0 0.0
    %163 = vmatpush.msra.mxu0 0.0
    %164 = vmatpush.msra.mxu0 0.0
    %165 = vmatpush.msra.mxu0 0.0
    %166 = vmatpush.msra.mxu0 0.0
    %167 = vmatpush.msra.mxu0 0.0
    %168 = vmatpush.msra.mxu0 0.0
    %169 = vmatpush.msra.mxu0 0.0
    %v170 = vand.u32 %v89, 4294901760
    %v171 = vsub.f32 %v89, %v170
    %172 = vmatpush.msra.mxu0 %v171
    %v173 = vand.u32 %v82, 4294901760
    %v174 = vsub.f32 %v82, %v173
    %175 = vmatmul.f32.gmra.mxu0 %v174
    %v176 = vpop.f32.mrf.mxu0
    %v177 = vadd.f32 %v149, %v176
    %v178 = vand.u32 %v85, 4294901760
    %v179 = vsub.f32 %v85, %v178
    %180 = vmatmul.f32.gmra.mxu0 %v179
    %v181 = vpop.f32.mrf.mxu0
    %v182 = vadd.f32 %v153, %v181
    %183 = vdwg.mxu0
    %184 = vmatpush.msra.mxu0 0.0
    %185 = vmatpush.msra.mxu0 0.0
    %186 = vmatpush.msra.mxu0 0.0
    %187 = vmatpush.msra.mxu0 0.0
    %188 = vmatpush.msra.mxu0 0.0
    %189 = vmatpush.msra.mxu0 0.0
    %190 = vmatpush.msra.mxu0 0.0
    %191 = vmatpush.msra.mxu0 0.0
    %192 = vmatpush.msra.mxu0 0.0
    %193 = vmatpush.msra.mxu0 0.0
    %194 = vmatpush.msra.mxu0 0.0
    %195 = vmatpush.msra.mxu0 0.0
    %196 = vmatpush.msra.mxu0 0.0
    %197 = vmatpush.msra.mxu0 0.0
    %198 = vmatpush.msra.mxu0 0.0
    %v199 = vand.u32 %v89, 4294901760
    %200 = vmatpush.msra.mxu0 %v199
    %v201 = vand.u32 %v82, 4294901760
    %v202 = vsub.f32 %v82, %v201
    %v203 = vand.u32 %v202, 4294901760
    %204 = vmatmul.f32.gmra.mxu0 %v203
    %v205 = vpop.f32.mrf.mxu0
    %v206 = vadd.f32 %v177, %v205
    %v207 = vand.u32 %v85, 4294901760
    %v208 = vsub.f32 %v85, %v207
    %v209 = vand.u32 %v208, 4294901760
    %210 = vmatmul.f32.gmra.mxu0 %v209
    %v211 = vpop.f32.mrf.mxu0
    %v212 = vadd.f32 %v182, %v211
    %213 = vdwg.mxu0
    %214 = vmatpush.msra.mxu0 0.0
    %215 = vmatpush.msra.mxu0 0.0
    %216 = vmatpush.msra.mxu0 0.0
    %217 = vmatpush.msra.mxu0 0.0
    %218 = vmatpush.msra.mxu0 0.0
    %219 = vmatpush.msra.mxu0 0.0
    %220 = vmatpush.msra.mxu0 0.0
    %221 = vmatpush.msra.mxu0 0.0
    %222 = vmatpush.msra.mxu0 0.0
    %223 = vmatpush.msra.mxu0 0.0
    %224 = vmatpush.msra.mxu0 0.0
    %225 = vmatpush.msra.mxu0 0.0
    %226 = vmatpush.msra.mxu0 0.0
    %227 = vmatpush.msra.mxu0 0.0
    %228 = vmatpush.msra.mxu0 0.0
    %v229 = vand.u32 %v89, 4294901760
    %v230 = vsub.f32 %v89, %v229
    %v231 = vand.u32 %v230, 4294901760
    %232 = vmatpush.msra.mxu0 %v231
    %v233 = vand.u32 %v82, 4294901760
    %234 = vmatmul.f32.gmra.mxu0 %v233
    %v235 = vpop.f32.mrf.mxu0
    %v236 = vadd.f32 %v206, %v235
    %v237 = vand.u32 %v85, 4294901760
    %238 = vmatmul.f32.gmra.mxu0 %v237
    %v239 = vpop.f32.mrf.mxu0
    %v240 = vadd.f32 %v212, %v239
    %241 = vdwg.mxu0
    %242 = vmatpush.msra.mxu0 0.0
    %243 = vmatpush.msra.mxu0 0.0
    %244 = vmatpush.msra.mxu0 0.0
    %245 = vmatpush.msra.mxu0 0.0
    %246 = vmatpush.msra.mxu0 0.0
    %247 = vmatpush.msra.mxu0 0.0
    %248 = vmatpush.msra.mxu0 0.0
    %249 = vmatpush.msra.mxu0 0.0
    %250 = vmatpush.msra.mxu0 0.0
    %251 = vmatpush.msra.mxu0 0.0
    %252 = vmatpush.msra.mxu0 0.0
    %253 = vmatpush.msra.mxu0 0.0
    %254 = vmatpush.msra.mxu0 0.0
    %255 = vmatpush.msra.mxu0 0.0
    %256 = vmatpush.msra.mxu0 0.0
    %v257 = vand.u32 %v89, 4294901760
    %258 = vmatpush.msra.mxu0 %v257
    %v259 = vand.u32 %v82, 4294901760
    %260 = vmatmul.f32.gmra.mxu0 %v259
    %v261 = vpop.f32.mrf.mxu0
    %v262 = vadd.f32 %v236, %v261
    %v263 = vand.u32 %v85, 4294901760
    %264 = vmatmul.f32.gmra.mxu0 %v263
    %v265 = vpop.f32.mrf.mxu0
    %v266 = vadd.f32 %v240, %v265
    %267 = vdwg.mxu0
    %vm268 = vcmask 162816
    %v270 = vsel %vm268, 0.0, 0
    %vm272 = vcmask 1043456
    %v274 = vsel %vm272, %v63, 0
    %276 = vmatpush.msra.mxu0 0.0
    %277 = vmatpush.msra.mxu0 0.0
    %278 = vmatpush.msra.mxu0 0.0
    %279 = vmatpush.msra.mxu0 0.0
    %280 = vmatpush.msra.mxu0 0.0
    %281 = vmatpush.msra.mxu0 0.0
    %282 = vmatpush.msra.mxu0 0.0
    %283 = vmatpush.msra.mxu0 0.0
    %284 = vmatpush.msra.mxu0 0.0
    %285 = vmatpush.msra.mxu0 0.0
    %286 = vmatpush.msra.mxu0 0.0
    %287 = vmatpush.msra.mxu0 0.0
    %288 = vmatpush.msra.mxu0 0.0
    %v289 = vand.u32 %v274, 4294901760
    %290 = vmatpush.msra.mxu0 %v289
    %v291 = vand.u32 %v62, 4294901760
    %292 = vmatpush.msra.mxu0 %v291
    %v293 = vand.u32 %v61, 4294901760
    %294 = vmatpush.msra.mxu0 %v293
    %v295 = vand.u32 %v270, 4294901760
    %v296 = vsub.f32 %v270, %v295
    %v297 = vand.u32 %v296, 4294901760
    %v298 = vsub.f32 %v296, %v297
    %v299 = vand.u32 %v298, 4294901760
    %300 = vmatmul.f32.gmra.mxu0 %v299
    %v301 = vpop.f32.mrf.mxu0
    %v302 = vadd.f32 0.0, %v301
    %303 = vdwg.mxu0
    %304 = vmatpush.msra.mxu0 0.0
    %305 = vmatpush.msra.mxu0 0.0
    %306 = vmatpush.msra.mxu0 0.0
    %307 = vmatpush.msra.mxu0 0.0
    %308 = vmatpush.msra.mxu0 0.0
    %309 = vmatpush.msra.mxu0 0.0
    %310 = vmatpush.msra.mxu0 0.0
    %311 = vmatpush.msra.mxu0 0.0
    %312 = vmatpush.msra.mxu0 0.0
    %313 = vmatpush.msra.mxu0 0.0
    %314 = vmatpush.msra.mxu0 0.0
    %315 = vmatpush.msra.mxu0 0.0
    %316 = vmatpush.msra.mxu0 0.0
    %v317 = vand.u32 %v274, 4294901760
    %v318 = vsub.f32 %v274, %v317
    %v319 = vand.u32 %v318, 4294901760
    %v320 = vsub.f32 %v318, %v319
    %v321 = vand.u32 %v320, 4294901760
    %322 = vmatpush.msra.mxu0 %v321
    %v323 = vand.u32 %v62, 4294901760
    %v324 = vsub.f32 %v62, %v323
    %v325 = vand.u32 %v324, 4294901760
    %v326 = vsub.f32 %v324, %v325
    %v327 = vand.u32 %v326, 4294901760
    %328 = vmatpush.msra.mxu0 %v327
    %v329 = vand.u32 %v61, 4294901760
    %v330 = vsub.f32 %v61, %v329
    %v331 = vand.u32 %v330, 4294901760
    %v332 = vsub.f32 %v330, %v331
    %v333 = vand.u32 %v332, 4294901760
    %334 = vmatpush.msra.mxu0 %v333
    %v335 = vand.u32 %v270, 4294901760
    %336 = vmatmul.f32.gmra.mxu0 %v335
    %v337 = vpop.f32.mrf.mxu0
    %v338 = vadd.f32 %v302, %v337
    %339 = vdwg.mxu0
    %340 = vmatpush.msra.mxu0 0.0
    %341 = vmatpush.msra.mxu0 0.0
    %342 = vmatpush.msra.mxu0 0.0
    %343 = vmatpush.msra.mxu0 0.0
    %344 = vmatpush.msra.mxu0 0.0
    %345 = vmatpush.msra.mxu0 0.0
    %346 = vmatpush.msra.mxu0 0.0
    %347 = vmatpush.msra.mxu0 0.0
    %348 = vmatpush.msra.mxu0 0.0
    %349 = vmatpush.msra.mxu0 0.0
    %350 = vmatpush.msra.mxu0 0.0
    %351 = vmatpush.msra.mxu0 0.0
    %352 = vmatpush.msra.mxu0 0.0
    %v353 = vand.u32 %v274, 4294901760
    %v354 = vsub.f32 %v274, %v353
    %355 = vmatpush.msra.mxu0 %v354
    %v356 = vand.u32 %v62, 4294901760
    %v357 = vsub.f32 %v62, %v356
    %358 = vmatpush.msra.mxu0 %v357
    %v359 = vand.u32 %v61, 4294901760
    %v360 = vsub.f32 %v61, %v359
    %361 = vmatpush.msra.mxu0 %v360
    %v362 = vand.u32 %v270, 4294901760
    %v363 = vsub.f32 %v270, %v362
    %364 = vmatmul.f32.gmra.mxu0 %v363
    %v365 = vpop.f32.mrf.mxu0
    %v366 = vadd.f32 %v338, %v365
    %367 = vdwg.mxu0
    %368 = vmatpush.msra.mxu0 0.0
    %369 = vmatpush.msra.mxu0 0.0
    %370 = vmatpush.msra.mxu0 0.0
    %371 = vmatpush.msra.mxu0 0.0
    %372 = vmatpush.msra.mxu0 0.0
    %373 = vmatpush.msra.mxu0 0.0
    %374 = vmatpush.msra.mxu0 0.0
    %375 = vmatpush.msra.mxu0 0.0
    %376 = vmatpush.msra.mxu0 0.0
    %377 = vmatpush.msra.mxu0 0.0
    %378 = vmatpush.msra.mxu0 0.0
    %379 = vmatpush.msra.mxu0 0.0
    %380 = vmatpush.msra.mxu0 0.0
    %v381 = vand.u32 %v274, 4294901760
    %382 = vmatpush.msra.mxu0 %v381
    %v383 = vand.u32 %v62, 4294901760
    %384 = vmatpush.msra.mxu0 %v383
    %v385 = vand.u32 %v61, 4294901760
    %386 = vmatpush.msra.mxu0 %v385
    %v387 = vand.u32 %v270, 4294901760
    %v388 = vsub.f32 %v270, %v387
    %v389 = vand.u32 %v388, 4294901760
    %390 = vmatmul.f32.gmra.mxu0 %v389
    %v391 = vpop.f32.mrf.mxu0
    %v392 = vadd.f32 %v366, %v391
    %393 = vdwg.mxu0
    %394 = vmatpush.msra.mxu0 0.0
    %395 = vmatpush.msra.mxu0 0.0
    %396 = vmatpush.msra.mxu0 0.0
    %397 = vmatpush.msra.mxu0 0.0
    %398 = vmatpush.msra.mxu0 0.0
    %399 = vmatpush.msra.mxu0 0.0
    %400 = vmatpush.msra.mxu0 0.0
    %401 = vmatpush.msra.mxu0 0.0
    %402 = vmatpush.msra.mxu0 0.0
    %403 = vmatpush.msra.mxu0 0.0
    %404 = vmatpush.msra.mxu0 0.0
    %405 = vmatpush.msra.mxu0 0.0
    %406 = vmatpush.msra.mxu0 0.0
    %v407 = vand.u32 %v274, 4294901760
    %v408 = vsub.f32 %v274, %v407
    %v409 = vand.u32 %v408, 4294901760
    %410 = vmatpush.msra.mxu0 %v409
    %v411 = vand.u32 %v62, 4294901760
    %v412 = vsub.f32 %v62, %v411
    %v413 = vand.u32 %v412, 4294901760
    %414 = vmatpush.msra.mxu0 %v413
    %v415 = vand.u32 %v61, 4294901760
    %v416 = vsub.f32 %v61, %v415
    %v417 = vand.u32 %v416, 4294901760
    %418 = vmatpush.msra.mxu0 %v417
    %v419 = vand.u32 %v270, 4294901760
    %420 = vmatmul.f32.gmra.mxu0 %v419
    %v421 = vpop.f32.mrf.mxu0
    %v422 = vadd.f32 %v392, %v421
    %423 = vdwg.mxu0
    %424 = vmatpush.msra.mxu0 0.0
    %425 = vmatpush.msra.mxu0 0.0
    %426 = vmatpush.msra.mxu0 0.0
    %427 = vmatpush.msra.mxu0 0.0
    %428 = vmatpush.msra.mxu0 0.0
    %429 = vmatpush.msra.mxu0 0.0
    %430 = vmatpush.msra.mxu0 0.0
    %431 = vmatpush.msra.mxu0 0.0
    %432 = vmatpush.msra.mxu0 0.0
    %433 = vmatpush.msra.mxu0 0.0
    %434 = vmatpush.msra.mxu0 0.0
    %435 = vmatpush.msra.mxu0 0.0
    %436 = vmatpush.msra.mxu0 0.0
    %v437 = vand.u32 %v274, 4294901760
    %438 = vmatpush.msra.mxu0 %v437
    %v439 = vand.u32 %v62, 4294901760
    %440 = vmatpush.msra.mxu0 %v439
    %v441 = vand.u32 %v61, 4294901760
    %442 = vmatpush.msra.mxu0 %v441
    %v443 = vand.u32 %v270, 4294901760
    %444 = vmatmul.f32.gmra.mxu0 %v443
    %v445 = vpop.f32.mrf.mxu0
    %v446 = vadd.f32 %v422, %v445
    %447 = vdwg.mxu0
    %v448 = vadd.f32 %v262, %v446
    %v449 = vxor.u32 %v448, 2147483648
    %v450 = vmul.f32 %v449, 1.442695
    %v451 = vpow.pop %v450
    %v452 = vadd.f32 %v451, 1.0
    %v453 = vrcp.pop %v452
    %v454 = vmul.f32 %v452, %v453
    %v455 = vsub.f32 1.0, %v454
    %v456 = vmul.f32 %v453, %v455
    %v457 = vadd.f32 %v453, %v456
    %vm458 = vweird.f32 %v452
    %vm459 = vweird.f32 %v453
    %vm460 = vmor %vm458, %vm459
    %v461 = vsel %vm460, %v453, %v457
    %v462 = vand.u32 2147483647, %v452
    %vm463 = vcmp.eq.f32.partialorder %v462, 8.507059e+37
    %v464 = vand.u32 %v452, 2147483648
    %v465 = vor.u32 1.1754944e-38, %v464
    %v466 = vsel %vm463, %v465, %v461
    %v467 = vmul.f32 1.0, %v466
    %v468 = vtanh.pop %v448
    %v469 = vmul.f32 %v467, 0.0
    %471 = vrot.lane.b32.xlu0 %v468, 88
    %v472 = vpop.permute.xlu0 %471
    %v474 = vmul.f32 %v467, %v472
    %476 = vrot.lane.b32.xlu0 %v474, 20
    %v477 = vpop.permute.xlu0 %476
    %v479 = vadd.f32 %v469, %v477
    %v480 = vtanh.pop %v479
    %482 = vrot.lane.b32.xlu0 %v480, 40
    %v483 = vpop.permute.xlu0 %482
    %v485 = vmul.f32 %v467, %v483
    %487 = vrot.lane.b32.xlu0 %v485, 68
    %v488 = vpop.permute.xlu0 %487
    %v490 = vsel %vm268, %v488, 0.0
    %vm491 = vcmask 326656
    %v493 = vsel %vm491, %v490, 0
    %495 = vmatpush.msra.mxu0 0.0
    %496 = vmatpush.msra.mxu0 0.0
    %497 = vmatpush.msra.mxu0 0.0
    %498 = vmatpush.msra.mxu0 0.0
    %499 = vmatpush.msra.mxu0 0.0
    %500 = vmatpush.msra.mxu0 0.0
    %501 = vmatpush.msra.mxu0 0.0
    %502 = vmatpush.msra.mxu0 0.0
    %503 = vmatpush.msra.mxu0 0.0
    %504 = vmatpush.msra.mxu0 0.0
    %505 = vmatpush.msra.mxu0 0.0
    %v506 = vand.u32 %v68, 4294901760
    %507 = vmatpush.msra.mxu0 %v506
    %v508 = vand.u32 %v67, 4294901760
    %509 = vmatpush.msra.mxu0 %v508
    %v510 = vand.u32 %v66, 4294901760
    %511 = vmatpush.msra.mxu0 %v510
    %v512 = vand.u32 %v65, 4294901760
    %513 = vmatpush.msra.mxu0 %v512
    %v514 = vand.u32 %v64, 4294901760
    %515 = vmatpush.msra.mxu0 %v514
    %v516 = vand.u32 %v493, 4294901760
    %v517 = vsub.f32 %v493, %v516
    %v518 = vand.u32 %v517, 4294901760
    %v519 = vsub.f32 %v517, %v518
    %v520 = vand.u32 %v519, 4294901760
    %521 = vmatmul.f32.gmra.mxu0 %v520
    %v522 = vpop.f32.mrf.mxu0
    %v523 = vadd.f32 %v71, %v522
    %524 = vdwg.mxu0
    %525 = vmatpush.msra.mxu0 0.0
    %526 = vmatpush.msra.mxu0 0.0
    %527 = vmatpush.msra.mxu0 0.0
    %528 = vmatpush.msra.mxu0 0.0
    %529 = vmatpush.msra.mxu0 0.0
    %530 = vmatpush.msra.mxu0 0.0
    %531 = vmatpush.msra.mxu0 0.0
    %532 = vmatpush.msra.mxu0 0.0
    %533 = vmatpush.msra.mxu0 0.0
    %534 = vmatpush.msra.mxu0 0.0
    %535 = vmatpush.msra.mxu0 0.0
    %v536 = vand.u32 %v68, 4294901760
    %v537 = vsub.f32 %v68, %v536
    %v538 = vand.u32 %v537, 4294901760
    %v539 = vsub.f32 %v537, %v538
    %v540 = vand.u32 %v539, 4294901760
    %541 = vmatpush.msra.mxu0 %v540
    %v542 = vand.u32 %v67, 4294901760
    %v543 = vsub.f32 %v67, %v542
    %v544 = vand.u32 %v543, 4294901760
    %v545 = vsub.f32 %v543, %v544
    %v546 = vand.u32 %v545, 4294901760
    %547 = vmatpush.msra.mxu0 %v546
    %v548 = vand.u32 %v66, 4294901760
    %v549 = vsub.f32 %v66, %v548
    %v550 = vand.u32 %v549, 4294901760
    %v551 = vsub.f32 %v549, %v550
    %v552 = vand.u32 %v551, 4294901760
    %553 = vmatpush.msra.mxu0 %v552
    %v554 = vand.u32 %v65, 4294901760
    %v555 = vsub.f32 %v65, %v554
    %v556 = vand.u32 %v555, 4294901760
    %v557 = vsub.f32 %v555, %v556
    %v558 = vand.u32 %v557, 4294901760
    %559 = vmatpush.msra.mxu0 %v558
    %v560 = vand.u32 %v64, 4294901760
    %v561 = vsub.f32 %v64, %v560
    %v562 = vand.u32 %v561, 4294901760
    %v563 = vsub.f32 %v561, %v562
    %v564 = vand.u32 %v563, 4294901760
    %565 = vmatpush.msra.mxu0 %v564
    %v566 = vand.u32 %v493, 4294901760
    %567 = vmatmul.f32.gmra.mxu0 %v566
    %v568 = vpop.f32.mrf.mxu0
    %v569 = vadd.f32 %v523, %v568
    %570 = vdwg.mxu0
    %571 = vmatpush.msra.mxu0 0.0
    %572 = vmatpush.msra.mxu0 0.0
    %573 = vmatpush.msra.mxu0 0.0
    %574 = vmatpush.msra.mxu0 0.0
    %575 = vmatpush.msra.mxu0 0.0
    %576 = vmatpush.msra.mxu0 0.0
    %577 = vmatpush.msra.mxu0 0.0
    %578 = vmatpush.msra.mxu0 0.0
    %579 = vmatpush.msra.mxu0 0.0
    %580 = vmatpush.msra.mxu0 0.0
    %581 = vmatpush.msra.mxu0 0.0
    %v582 = vand.u32 %v68, 4294901760
    %v583 = vsub.f32 %v68, %v582
    %584 = vmatpush.msra.mxu0 %v583
    %v585 = vand.u32 %v67, 4294901760
    %v586 = vsub.f32 %v67, %v585
    %587 = vmatpush.msra.mxu0 %v586
    %v588 = vand.u32 %v66, 4294901760
    %v589 = vsub.f32 %v66, %v588
    %590 = vmatpush.msra.mxu0 %v589
    %v591 = vand.u32 %v65, 4294901760
    %v592 = vsub.f32 %v65, %v591
    %593 = vmatpush.msra.mxu0 %v592
    %v594 = vand.u32 %v64, 4294901760
    %v595 = vsub.f32 %v64, %v594
    %596 = vmatpush.msra.mxu0 %v595
    %v597 = vand.u32 %v493, 4294901760
    %v598 = vsub.f32 %v493, %v597
    %599 = vmatmul.f32.gmra.mxu0 %v598
    %v600 = vpop.f32.mrf.mxu0
    %v601 = vadd.f32 %v569, %v600
    %602 = vdwg.mxu0
    %603 = vmatpush.msra.mxu0 0.0
    %604 = vmatpush.msra.mxu0 0.0
    %605 = vmatpush.msra.mxu0 0.0
    %606 = vmatpush.msra.mxu0 0.0
    %607 = vmatpush.msra.mxu0 0.0
    %608 = vmatpush.msra.mxu0 0.0
    %609 = vmatpush.msra.mxu0 0.0
    %610 = vmatpush.msra.mxu0 0.0
    %611 = vmatpush.msra.mxu0 0.0
    %612 = vmatpush.msra.mxu0 0.0
    %613 = vmatpush.msra.mxu0 0.0
    %v614 = vand.u32 %v68, 4294901760
    %615 = vmatpush.msra.mxu0 %v614
    %v616 = vand.u32 %v67, 4294901760
    %617 = vmatpush.msra.mxu0 %v616
    %v618 = vand.u32 %v66, 4294901760
    %619 = vmatpush.msra.mxu0 %v618
    %v620 = vand.u32 %v65, 4294901760
    %621 = vmatpush.msra.mxu0 %v620
    %v622 = vand.u32 %v64, 4294901760
    %623 = vmatpush.msra.mxu0 %v622
    %v624 = vand.u32 %v493, 4294901760
    %v625 = vsub.f32 %v493, %v624
    %v626 = vand.u32 %v625, 4294901760
    %627 = vmatmul.f32.gmra.mxu0 %v626
    %v628 = vpop.f32.mrf.mxu0
    %v629 = vadd.f32 %v601, %v628
    %630 = vdwg.mxu0
    %631 = vmatpush.msra.mxu0 0.0
    %632 = vmatpush.msra.mxu0 0.0
    %633 = vmatpush.msra.mxu0 0.0
    %634 = vmatpush.msra.mxu0 0.0
    %635 = vmatpush.msra.mxu0 0.0
    %636 = vmatpush.msra.mxu0 0.0
    %637 = vmatpush.msra.mxu0 0.0
    %638 = vmatpush.msra.mxu0 0.0
    %639 = vmatpush.msra.mxu0 0.0
    %640 = vmatpush.msra.mxu0 0.0
    %641 = vmatpush.msra.mxu0 0.0
    %v642 = vand.u32 %v68, 4294901760
    %v643 = vsub.f32 %v68, %v642
    %v644 = vand.u32 %v643, 4294901760
    %645 = vmatpush.msra.mxu0 %v644
    %v646 = vand.u32 %v67, 4294901760
    %v647 = vsub.f32 %v67, %v646
    %v648 = vand.u32 %v647, 4294901760
    %649 = vmatpush.msra.mxu0 %v648
    %v650 = vand.u32 %v66, 4294901760
    %v651 = vsub.f32 %v66, %v650
    %v652 = vand.u32 %v651, 4294901760
    %653 = vmatpush.msra.mxu0 %v652
    %v654 = vand.u32 %v65, 4294901760
    %v655 = vsub.f32 %v65, %v654
    %v656 = vand.u32 %v655, 4294901760
    %657 = vmatpush.msra.mxu0 %v656
    %v658 = vand.u32 %v64, 4294901760
    %v659 = vsub.f32 %v64, %v658
    %v660 = vand.u32 %v659, 4294901760
    %661 = vmatpush.msra.mxu0 %v660
    %v662 = vand.u32 %v493, 4294901760
    %663 = vmatmul.f32.gmra.mxu0 %v662
    %v664 = vpop.f32.mrf.mxu0
    %v665 = vadd.f32 %v629, %v664
    %666 = vdwg.mxu0
    %667 = vmatpush.msra.mxu0 0.0
    %668 = vmatpush.msra.mxu0 0.0
    %669 = vmatpush.msra.mxu0 0.0
    %670 = vmatpush.msra.mxu0 0.0
    %671 = vmatpush.msra.mxu0 0.0
    %672 = vmatpush.msra.mxu0 0.0
    %673 = vmatpush.msra.mxu0 0.0
    %674 = vmatpush.msra.mxu0 0.0
    %675 = vmatpush.msra.mxu0 0.0
    %676 = vmatpush.msra.mxu0 0.0
    %677 = vmatpush.msra.mxu0 0.0
    %v678 = vand.u32 %v68, 4294901760
    %679 = vmatpush.msra.mxu0 %v678
    %v680 = vand.u32 %v67, 4294901760
    %681 = vmatpush.msra.mxu0 %v680
    %v682 = vand.u32 %v66, 4294901760
    %683 = vmatpush.msra.mxu0 %v682
    %v684 = vand.u32 %v65, 4294901760
    %685 = vmatpush.msra.mxu0 %v684
    %v686 = vand.u32 %v64, 4294901760
    %687 = vmatpush.msra.mxu0 %v686
    %v688 = vand.u32 %v493, 4294901760
    %689 = vmatmul.f32.gmra.mxu0 %v688
    %v690 = vpop.f32.mrf.mxu0
    %v691 = vadd.f32 %v665, %v690
    %692 = vdwg.mxu0
    %v693 = vxor.u32 %v691, 2147483648
    %v694 = vmul.f32 %v693, 1.442695
    %v695 = vpow.pop %v694
    %v696 = vadd.f32 %v695, 1.0
    %v697 = vrcp.pop %v696
    %v698 = vmul.f32 %v696, %v697
    %v699 = vsub.f32 1.0, %v698
    %v700 = vmul.f32 %v697, %v699
    %v701 = vadd.f32 %v697, %v700
    %vm702 = vweird.f32 %v696
    %vm703 = vweird.f32 %v697
    %vm704 = vmor %vm702, %vm703
    %v705 = vsel %vm704, %v697, %v701
    %v706 = vand.u32 2147483647, %v696
    %vm707 = vcmp.eq.f32.partialorder %v706, 8.507059e+37
    %v708 = vand.u32 %v696, 2147483648
    %v709 = vor.u32 1.1754944e-38, %v708
    %v710 = vsel %vm707, %v709, %v705
    %v711 = vmul.f32 1.0, %v710
    %v712 = vtanh.pop %v691
    %v713 = vmul.f32 %v711, 0.0
    %715 = vrot.lane.b32.xlu0 %v712, 88
    %v716 = vpop.permute.xlu0 %715
    %v718 = vmul.f32 %v711, %v716
    %720 = vrot.lane.b32.xlu0 %v718, 20
    %v721 = vpop.permute.xlu0 %720
    %v723 = vadd.f32 %v713, %v721
    %v724 = vtanh.pop %v723
    %726 = vrot.lane.b32.xlu0 %v724, 40
    %v727 = vpop.permute.xlu0 %726
    %v729 = vmul.f32 %v711, %v727
    %v730 = vsel %vm268, %v488, 0
    %732 = vmatpush.msra.mxu0 0.0
    %733 = vmatpush.msra.mxu0 0.0
    %734 = vmatpush.msra.mxu0 0.0
    %735 = vmatpush.msra.mxu0 0.0
    %736 = vmatpush.msra.mxu0 0.0
    %737 = vmatpush.msra.mxu0 0.0
    %738 = vmatpush.msra.mxu0 0.0
    %739 = vmatpush.msra.mxu0 0.0
    %740 = vmatpush.msra.mxu0 0.0
    %741 = vmatpush.msra.mxu0 0.0
    %742 = vmatpush.msra.mxu0 0.0
    %743 = vmatpush.msra.mxu0 0.0
    %744 = vmatpush.msra.mxu0 0.0
    %v745 = vand.u32 %v274, 4294901760
    %746 = vmatpush.msra.mxu0 %v745
    %v747 = vand.u32 %v62, 4294901760
    %748 = vmatpush.msra.mxu0 %v747
    %v749 = vand.u32 %v61, 4294901760
    %750 = vmatpush.msra.mxu0 %v749
    %v751 = vand.u32 %v730, 4294901760
    %v752 = vsub.f32 %v730, %v751
    %v753 = vand.u32 %v752, 4294901760
    %v754 = vsub.f32 %v752, %v753
    %v755 = vand.u32 %v754, 4294901760
    %756 = vmatmul.f32.gmra.mxu0 %v755
    %v757 = vpop.f32.mrf.mxu0
    %v758 = vadd.f32 0.0, %v757
    %759 = vdwg.mxu0
    %760 = vmatpush.msra.mxu0 0.0
    %761 = vmatpush.msra.mxu0 0.0
    %762 = vmatpush.msra.mxu0 0.0
    %763 = vmatpush.msra.mxu0 0.0
    %764 = vmatpush.msra.mxu0 0.0
    %765 = vmatpush.msra.mxu0 0.0
    %766 = vmatpush.msra.mxu0 0.0
    %767 = vmatpush.msra.mxu0 0.0
    %768 = vmatpush.msra.mxu0 0.0
    %769 = vmatpush.msra.mxu0 0.0
    %770 = vmatpush.msra.mxu0 0.0
    %771 = vmatpush.msra.mxu0 0.0
    %772 = vmatpush.msra.mxu0 0.0
    %v773 = vand.u32 %v274, 4294901760
    %v774 = vsub.f32 %v274, %v773
    %v775 = vand.u32 %v774, 4294901760
    %v776 = vsub.f32 %v774, %v775
    %v777 = vand.u32 %v776, 4294901760
    %778 = vmatpush.msra.mxu0 %v777
    %v779 = vand.u32 %v62, 4294901760
    %v780 = vsub.f32 %v62, %v779
    %v781 = vand.u32 %v780, 4294901760
    %v782 = vsub.f32 %v780, %v781
    %v783 = vand.u32 %v782, 4294901760
    %784 = vmatpush.msra.mxu0 %v783
    %v785 = vand.u32 %v61, 4294901760
    %v786 = vsub.f32 %v61, %v785
    %v787 = vand.u32 %v786, 4294901760
    %v788 = vsub.f32 %v786, %v787
    %v789 = vand.u32 %v788, 4294901760
    %790 = vmatpush.msra.mxu0 %v789
    %v791 = vand.u32 %v730, 4294901760
    %792 = vmatmul.f32.gmra.mxu0 %v791
    %v793 = vpop.f32.mrf.mxu0
    %v794 = vadd.f32 %v758, %v793
    %795 = vdwg.mxu0
    %796 = vmatpush.msra.mxu0 0.0
    %797 = vmatpush.msra.mxu0 0.0
    %798 = vmatpush.msra.mxu0 0.0
    %799 = vmatpush.msra.mxu0 0.0
    %800 = vmatpush.msra.mxu0 0.0
    %801 = vmatpush.msra.mxu0 0.0
    %802 = vmatpush.msra.mxu0 0.0
    %803 = vmatpush.msra.mxu0 0.0
    %804 = vmatpush.msra.mxu0 0.0
    %805 = vmatpush.msra.mxu0 0.0
    %806 = vmatpush.msra.mxu0 0.0
    %807 = vmatpush.msra.mxu0 0.0
    %808 = vmatpush.msra.mxu0 0.0
    %v809 = vand.u32 %v274, 4294901760
    %v810 = vsub.f32 %v274, %v809
    %811 = vmatpush.msra.mxu0 %v810
    %v812 = vand.u32 %v62, 4294901760
    %v813 = vsub.f32 %v62, %v812
    %814 = vmatpush.msra.mxu0 %v813
    %v815 = vand.u32 %v61, 4294901760
    %v816 = vsub.f32 %v61, %v815
    %817 = vmatpush.msra.mxu0 %v816
    %v818 = vand.u32 %v730, 4294901760
    %v819 = vsub.f32 %v730, %v818
    %820 = vmatmul.f32.gmra.mxu0 %v819
    %v821 = vpop.f32.mrf.mxu0
    %v822 = vadd.f32 %v794, %v821
    %823 = vdwg.mxu0
    %824 = vmatpush.msra.mxu0 0.0
    %825 = vmatpush.msra.mxu0 0.0
    %826 = vmatpush.msra.mxu0 0.0
    %827 = vmatpush.msra.mxu0 0.0
    %828 = vmatpush.msra.mxu0 0.0
    %829 = vmatpush.msra.mxu0 0.0
    %830 = vmatpush.msra.mxu0 0.0
    %831 = vmatpush.msra.mxu0 0.0
    %832 = vmatpush.msra.mxu0 0.0
    %833 = vmatpush.msra.mxu0 0.0
    %834 = vmatpush.msra.mxu0 0.0
    %835 = vmatpush.msra.mxu0 0.0
    %836 = vmatpush.msra.mxu0 0.0
    %v837 = vand.u32 %v274, 4294901760
    %838 = vmatpush.msra.mxu0 %v837
    %v839 = vand.u32 %v62, 4294901760
    %840 = vmatpush.msra.mxu0 %v839
    %v841 = vand.u32 %v61, 4294901760
    %842 = vmatpush.msra.mxu0 %v841
    %v843 = vand.u32 %v730, 4294901760
    %v844 = vsub.f32 %v730, %v843
    %v845 = vand.u32 %v844, 4294901760
    %846 = vmatmul.f32.gmra.mxu0 %v845
    %v847 = vpop.f32.mrf.mxu0
    %v848 = vadd.f32 %v822, %v847
    %849 = vdwg.mxu0
    %850 = vmatpush.msra.mxu0 0.0
    %851 = vmatpush.msra.mxu0 0.0
    %852 = vmatpush.msra.mxu0 0.0
    %853 = vmatpush.msra.mxu0 0.0
    %854 = vmatpush.msra.mxu0 0.0
    %855 = vmatpush.msra.mxu0 0.0
    %856 = vmatpush.msra.mxu0 0.0
    %857 = vmatpush.msra.mxu0 0.0
    %858 = vmatpush.msra.mxu0 0.0
    %859 = vmatpush.msra.mxu0 0.0
    %860 = vmatpush.msra.mxu0 0.0
    %861 = vmatpush.msra.mxu0 0.0
    %862 = vmatpush.msra.mxu0 0.0
    %v863 = vand.u32 %v274, 4294901760
    %v864 = vsub.f32 %v274, %v863
    %v865 = vand.u32 %v864, 4294901760
    %866 = vmatpush.msra.mxu0 %v865
    %v867 = vand.u32 %v62, 4294901760
    %v868 = vsub.f32 %v62, %v867
    %v869 = vand.u32 %v868, 4294901760
    %870 = vmatpush.msra.mxu0 %v869
    %v871 = vand.u32 %v61, 4294901760
    %v872 = vsub.f32 %v61, %v871
    %v873 = vand.u32 %v872, 4294901760
    %874 = vmatpush.msra.mxu0 %v873
    %v875 = vand.u32 %v730, 4294901760
    %876 = vmatmul.f32.gmra.mxu0 %v875
    %v877 = vpop.f32.mrf.mxu0
    %v878 = vadd.f32 %v848, %v877
    %879 = vdwg.mxu0
    %880 = vmatpush.msra.mxu0 0.0
    %881 = vmatpush.msra.mxu0 0.0
    %882 = vmatpush.msra.mxu0 0.0
    %883 = vmatpush.msra.mxu0 0.0
    %884 = vmatpush.msra.mxu0 0.0
    %885 = vmatpush.msra.mxu0 0.0
    %886 = vmatpush.msra.mxu0 0.0
    %887 = vmatpush.msra.mxu0 0.0
    %888 = vmatpush.msra.mxu0 0.0
    %889 = vmatpush.msra.mxu0 0.0
    %890 = vmatpush.msra.mxu0 0.0
    %891 = vmatpush.msra.mxu0 0.0
    %892 = vmatpush.msra.mxu0 0.0
    %v893 = vand.u32 %v274, 4294901760
    %894 = vmatpush.msra.mxu0 %v893
    %v895 = vand.u32 %v62, 4294901760
    %896 = vmatpush.msra.mxu0 %v895
    %v897 = vand.u32 %v61, 4294901760
    %898 = vmatpush.msra.mxu0 %v897
    %v899 = vand.u32 %v730, 4294901760
    %900 = vmatmul.f32.gmra.mxu0 %v899
    %v901 = vpop.f32.mrf.mxu0
    %v902 = vadd.f32 %v878, %v901
    %903 = vdwg.mxu0
    %v905 = vrot.slane %v902, 6
    %v907 = vadd.f32 %v262, %v905
    %v908 = vxor.u32 %v907, 2147483648
    %v909 = vmul.f32 %v908, 1.442695
    %v910 = vpow.pop %v909
    %v911 = vadd.f32 %v910, 1.0
    %v912 = vrcp.pop %v911
    %v913 = vmul.f32 %v911, %v912
    %v914 = vsub.f32 1.0, %v913
    %v915 = vmul.f32 %v912, %v914
    %v916 = vadd.f32 %v912, %v915
    %vm917 = vweird.f32 %v911
    %vm918 = vweird.f32 %v912
    %vm919 = vmor %vm917, %vm918
    %v920 = vsel %vm919, %v912, %v916
    %v921 = vand.u32 2147483647, %v911
    %vm922 = vcmp.eq.f32.partialorder %v921, 8.507059e+37
    %v923 = vand.u32 %v911, 2147483648
    %v924 = vor.u32 1.1754944e-38, %v923
    %v925 = vsel %vm922, %v924, %v920
    %v926 = vmul.f32 1.0, %v925
    %v927 = vtanh.pop %v907
    %v929 = vrot.slane %v479, 6
    %v931 = vmul.f32 %v926, %v929
    %933 = vrot.lane.b32.xlu0 %v927, 88
    %v934 = vpop.permute.xlu0 %933
    %v936 = vmul.f32 %v926, %v934
    %938 = vrot.lane.b32.xlu0 %v936, 20
    %v939 = vpop.permute.xlu0 %938
    %v941 = vadd.f32 %v931, %v939
    %v942 = vtanh.pop %v941
    %944 = vrot.lane.b32.xlu0 %v942, 40
    %v945 = vpop.permute.xlu0 %944
    %v947 = vmul.f32 %v926, %v945
    %949 = vrot.lane.b32.xlu0 %v947, 68
    %v950 = vpop.permute.xlu0 %949
    %v953 = vrot.slane %v729, 6
    %954 = vrot.lane.b32.xlu0 %v953, 88
    %v955 = vpop.permute.xlu0 %954
    %v957 = vsel %vm268, %v950, %v955
    %v959 = vrot.slane %v957, 2
    %v960 = vsel %vm491, %v959, 0
    %962 = vmatpush.msra.mxu0 0.0
    %963 = vmatpush.msra.mxu0 0.0
    %964 = vmatpush.msra.mxu0 0.0
    %965 = vmatpush.msra.mxu0 0.0
    %966 = vmatpush.msra.mxu0 0.0
    %967 = vmatpush.msra.mxu0 0.0
    %968 = vmatpush.msra.mxu0 0.0
    %969 = vmatpush.msra.mxu0 0.0
    %970 = vmatpush.msra.mxu0 0.0
    %971 = vmatpush.msra.mxu0 0.0
    %972 = vmatpush.msra.mxu0 0.0
    %v973 = vand.u32 %v68, 4294901760
    %974 = vmatpush.msra.mxu0 %v973
    %v975 = vand.u32 %v67, 4294901760
    %976 = vmatpush.msra.mxu0 %v975
    %v977 = vand.u32 %v66, 4294901760
    %978 = vmatpush.msra.mxu0 %v977
    %v979 = vand.u32 %v65, 4294901760
    %980 = vmatpush.msra.mxu0 %v979
    %v981 = vand.u32 %v64, 4294901760
    %982 = vmatpush.msra.mxu0 %v981
    %v983 = vand.u32 %v960, 4294901760
    %v984 = vsub.f32 %v960, %v983
    %v985 = vand.u32 %v984, 4294901760
    %v986 = vsub.f32 %v984, %v985
    %v987 = vand.u32 %v986, 4294901760
    %988 = vmatmul.f32.gmra.mxu0 %v987
    %v989 = vpop.f32.mrf.mxu0
    %v990 = vadd.f32 %v71, %v989
    %991 = vdwg.mxu0
    %992 = vmatpush.msra.mxu0 0.0
    %993 = vmatpush.msra.mxu0 0.0
    %994 = vmatpush.msra.mxu0 0.0
    %995 = vmatpush.msra.mxu0 0.0
    %996 = vmatpush.msra.mxu0 0.0
    %997 = vmatpush.msra.mxu0 0.0
    %998 = vmatpush.msra.mxu0 0.0
    %999 = vmatpush.msra.mxu0 0.0
    %1000 = vmatpush.msra.mxu0 0.0
    %1001 = vmatpush.msra.mxu0 0.0
    %1002 = vmatpush.msra.mxu0 0.0
    %v1003 = vand.u32 %v68, 4294901760
    %v1004 = vsub.f32 %v68, %v1003
    %v1005 = vand.u32 %v1004, 4294901760
    %v1006 = vsub.f32 %v1004, %v1005
    %v1007 = vand.u32 %v1006, 4294901760
    %1008 = vmatpush.msra.mxu0 %v1007
    %v1009 = vand.u32 %v67, 4294901760
    %v1010 = vsub.f32 %v67, %v1009
    %v1011 = vand.u32 %v1010, 4294901760
    %v1012 = vsub.f32 %v1010, %v1011
    %v1013 = vand.u32 %v1012, 4294901760
    %1014 = vmatpush.msra.mxu0 %v1013
    %v1015 = vand.u32 %v66, 4294901760
    %v1016 = vsub.f32 %v66, %v1015
    %v1017 = vand.u32 %v1016, 4294901760
    %v1018 = vsub.f32 %v1016, %v1017
    %v1019 = vand.u32 %v1018, 4294901760
    %1020 = vmatpush.msra.mxu0 %v1019
    %v1021 = vand.u32 %v65, 4294901760
    %v1022 = vsub.f32 %v65, %v1021
    %v1023 = vand.u32 %v1022, 4294901760
    %v1024 = vsub.f32 %v1022, %v1023
    %v1025 = vand.u32 %v1024, 4294901760
    %1026 = vmatpush.msra.mxu0 %v1025
    %v1027 = vand.u32 %v64, 4294901760
    %v1028 = vsub.f32 %v64, %v1027
    %v1029 = vand.u32 %v1028, 4294901760
    %v1030 = vsub.f32 %v1028, %v1029
    %v1031 = vand.u32 %v1030, 4294901760
    %1032 = vmatpush.msra.mxu0 %v1031
    %v1033 = vand.u32 %v960, 4294901760
    %1034 = vmatmul.f32.gmra.mxu0 %v1033
    %v1035 = vpop.f32.mrf.mxu0
    %v1036 = vadd.f32 %v990, %v1035
    %1037 = vdwg.mxu0
    %1038 = vmatpush.msra.mxu0 0.0
    %1039 = vmatpush.msra.mxu0 0.0
    %1040 = vmatpush.msra.mxu0 0.0
    %1041 = vmatpush.msra.mxu0 0.0
    %1042 = vmatpush.msra.mxu0 0.0
    %1043 = vmatpush.msra.mxu0 0.0
    %1044 = vmatpush.msra.mxu0 0.0
    %1045 = vmatpush.msra.mxu0 0.0
    %1046 = vmatpush.msra.mxu0 0.0
    %1047 = vmatpush.msra.mxu0 0.0
    %1048 = vmatpush.msra.mxu0 0.0
    %v1049 = vand.u32 %v68, 4294901760
    %v1050 = vsub.f32 %v68, %v1049
    %1051 = vmatpush.msra.mxu0 %v1050
    %v1052 = vand.u32 %v67, 4294901760
    %v1053 = vsub.f32 %v67, %v1052
    %1054 = vmatpush.msra.mxu0 %v1053
    %v1055 = vand.u32 %v66, 4294901760
    %v1056 = vsub.f32 %v66, %v1055
    %1057 = vmatpush.msra.mxu0 %v1056
    %v1058 = vand.u32 %v65, 4294901760
    %v1059 = vsub.f32 %v65, %v1058
    %1060 = vmatpush.msra.mxu0 %v1059
    %v1061 = vand.u32 %v64, 4294901760
    %v1062 = vsub.f32 %v64, %v1061
    %1063 = vmatpush.msra.mxu0 %v1062
    %v1064 = vand.u32 %v960, 4294901760
    %v1065 = vsub.f32 %v960, %v1064
    %1066 = vmatmul.f32.gmra.mxu0 %v1065
    %v1067 = vpop.f32.mrf.mxu0
    %v1068 = vadd.f32 %v1036, %v1067
    %1069 = vdwg.mxu0
    %1070 = vmatpush.msra.mxu0 0.0
    %1071 = vmatpush.msra.mxu0 0.0
    %1072 = vmatpush.msra.mxu0 0.0
    %1073 = vmatpush.msra.mxu0 0.0
    %1074 = vmatpush.msra.mxu0 0.0
    %1075 = vmatpush.msra.mxu0 0.0
    %1076 = vmatpush.msra.mxu0 0.0
    %1077 = vmatpush.msra.mxu0 0.0
    %1078 = vmatpush.msra.mxu0 0.0
    %1079 = vmatpush.msra.mxu0 0.0
    %1080 = vmatpush.msra.mxu0 0.0
    %v1081 = vand.u32 %v68, 4294901760
    %1082 = vmatpush.msra.mxu0 %v1081
    %v1083 = vand.u32 %v67, 4294901760
    %1084 = vmatpush.msra.mxu0 %v1083
    %v1085 = vand.u32 %v66, 4294901760
    %1086 = vmatpush.msra.mxu0 %v1085
    %v1087 = vand.u32 %v65, 4294901760
    %1088 = vmatpush.msra.mxu0 %v1087
    %v1089 = vand.u32 %v64, 4294901760
    %1090 = vmatpush.msra.mxu0 %v1089
    %v1091 = vand.u32 %v960, 4294901760
    %v1092 = vsub.f32 %v960, %v1091
    %v1093 = vand.u32 %v1092, 4294901760
    %1094 = vmatmul.f32.gmra.mxu0 %v1093
    %v1095 = vpop.f32.mrf.mxu0
    %v1096 = vadd.f32 %v1068, %v1095
    %1097 = vdwg.mxu0
    %1098 = vmatpush.msra.mxu0 0.0
    %1099 = vmatpush.msra.mxu0 0.0
    %1100 = vmatpush.msra.mxu0 0.0
    %1101 = vmatpush.msra.mxu0 0.0
    %1102 = vmatpush.msra.mxu0 0.0
    %1103 = vmatpush.msra.mxu0 0.0
    %1104 = vmatpush.msra.mxu0 0.0
    %1105 = vmatpush.msra.mxu0 0.0
    %1106 = vmatpush.msra.mxu0 0.0
    %1107 = vmatpush.msra.mxu0 0.0
    %1108 = vmatpush.msra.mxu0 0.0
    %v1109 = vand.u32 %v68, 4294901760
    %v1110 = vsub.f32 %v68, %v1109
    %v1111 = vand.u32 %v1110, 4294901760
    %1112 = vmatpush.msra.mxu0 %v1111
    %v1113 = vand.u32 %v67, 4294901760
    %v1114 = vsub.f32 %v67, %v1113
    %v1115 = vand.u32 %v1114, 4294901760
    %1116 = vmatpush.msra.mxu0 %v1115
    %v1117 = vand.u32 %v66, 4294901760
    %v1118 = vsub.f32 %v66, %v1117
    %v1119 = vand.u32 %v1118, 4294901760
    %1120 = vmatpush.msra.mxu0 %v1119
    %v1121 = vand.u32 %v65, 4294901760
    %v1122 = vsub.f32 %v65, %v1121
    %v1123 = vand.u32 %v1122, 4294901760
    %1124 = vmatpush.msra.mxu0 %v1123
    %v1125 = vand.u32 %v64, 4294901760
    %v1126 = vsub.f32 %v64, %v1125
    %v1127 = vand.u32 %v1126, 4294901760
    %1128 = vmatpush.msra.mxu0 %v1127
    %v1129 = vand.u32 %v960, 4294901760
    %1130 = vmatmul.f32.gmra.mxu0 %v1129
    %v1131 = vpop.f32.mrf.mxu0
    %v1132 = vadd.f32 %v1096, %v1131
    %1133 = vdwg.mxu0
    %1134 = vmatpush.msra.mxu0 0.0
    %1135 = vmatpush.msra.mxu0 0.0
    %1136 = vmatpush.msra.mxu0 0.0
    %1137 = vmatpush.msra.mxu0 0.0
    %1138 = vmatpush.msra.mxu0 0.0
    %1139 = vmatpush.msra.mxu0 0.0
    %1140 = vmatpush.msra.mxu0 0.0
    %1141 = vmatpush.msra.mxu0 0.0
    %1142 = vmatpush.msra.mxu0 0.0
    %1143 = vmatpush.msra.mxu0 0.0
    %1144 = vmatpush.msra.mxu0 0.0
    %v1145 = vand.u32 %v68, 4294901760
    %1146 = vmatpush.msra.mxu0 %v1145
    %v1147 = vand.u32 %v67, 4294901760
    %1148 = vmatpush.msra.mxu0 %v1147
    %v1149 = vand.u32 %v66, 4294901760
    %1150 = vmatpush.msra.mxu0 %v1149
    %v1151 = vand.u32 %v65, 4294901760
    %1152 = vmatpush.msra.mxu0 %v1151
    %v1153 = vand.u32 %v64, 4294901760
    %1154 = vmatpush.msra.mxu0 %v1153
    %v1155 = vand.u32 %v960, 4294901760
    %1156 = vmatmul.f32.gmra.mxu0 %v1155
    %v1157 = vpop.f32.mrf.mxu0
    %v1158 = vadd.f32 %v1132, %v1157
    %1159 = vdwg.mxu0
    %v1160 = vxor.u32 %v1158, 2147483648
    %v1161 = vmul.f32 %v1160, 1.442695
    %v1162 = vpow.pop %v1161
    %v1163 = vadd.f32 %v1162, 1.0
    %v1164 = vrcp.pop %v1163
    %v1165 = vmul.f32 %v1163, %v1164
    %v1166 = vsub.f32 1.0, %v1165
    %v1167 = vmul.f32 %v1164, %v1166
    %v1168 = vadd.f32 %v1164, %v1167
    %vm1169 = vweird.f32 %v1163
    %vm1170 = vweird.f32 %v1164
    %vm1171 = vmor %vm1169, %vm1170
    %v1172 = vsel %vm1171, %v1164, %v1168
    %v1173 = vand.u32 2147483647, %v1163
    %vm1174 = vcmp.eq.f32.partialorder %v1173, 8.507059e+37
    %v1175 = vand.u32 %v1163, 2147483648
    %v1176 = vor.u32 1.1754944e-38, %v1175
    %v1177 = vsel %vm1174, %v1176, %v1172
    %v1178 = vmul.f32 1.0, %v1177
    %v1179 = vtanh.pop %v1158
    %v1180 = vmul.f32 %v1178, %v723
    %1182 = vrot.lane.b32.xlu0 %v1179, 88
    %v1183 = vpop.permute.xlu0 %1182
    %v1185 = vmul.f32 %v1178, %v1183
    %1187 = vrot.lane.b32.xlu0 %v1185, 20
    %v1188 = vpop.permute.xlu0 %1187
    %v1190 = vadd.f32 %v1180, %v1188
    %v1191 = vtanh.pop %v1190
    %1193 = vrot.lane.b32.xlu0 %v1191, 40
    %v1194 = vpop.permute.xlu0 %1193
    %v1196 = vmul.f32 %v1178, %v1194
    %v1197 = vrot.slane %v947, 2
    %1198 = vrot.lane.b32.xlu0 %v1197, 68
    %v1199 = vpop.permute.xlu0 %1198
    %v1200 = vsel %vm268, %v1199, 0
    %1202 = vmatpush.msra.mxu0 0.0
    %1203 = vmatpush.msra.mxu0 0.0
    %1204 = vmatpush.msra.mxu0 0.0
    %1205 = vmatpush.msra.mxu0 0.0
    %1206 = vmatpush.msra.mxu0 0.0
    %1207 = vmatpush.msra.mxu0 0.0
    %1208 = vmatpush.msra.mxu0 0.0
    %1209 = vmatpush.msra.mxu0 0.0
    %1210 = vmatpush.msra.mxu0 0.0
    %1211 = vmatpush.msra.mxu0 0.0
    %1212 = vmatpush.msra.mxu0 0.0
    %1213 = vmatpush.msra.mxu0 0.0
    %1214 = vmatpush.msra.mxu0 0.0
    %v1215 = vand.u32 %v274, 4294901760
    %1216 = vmatpush.msra.mxu0 %v1215
    %v1217 = vand.u32 %v62, 4294901760
    %1218 = vmatpush.msra.mxu0 %v1217
    %v1219 = vand.u32 %v61, 4294901760
    %1220 = vmatpush.msra.mxu0 %v1219
    %v1221 = vand.u32 %v1200, 4294901760
    %v1222 = vsub.f32 %v1200, %v1221
    %v1223 = vand.u32 %v1222, 4294901760
    %v1224 = vsub.f32 %v1222, %v1223
    %v1225 = vand.u32 %v1224, 4294901760
    %1226 = vmatmul.f32.gmra.mxu0 %v1225
    %v1227 = vpop.f32.mrf.mxu0
    %v1228 = vadd.f32 0.0, %v1227
    %1229 = vdwg.mxu0
    %1230 = vmatpush.msra.mxu0 0.0
    %1231 = vmatpush.msra.mxu0 0.0
    %1232 = vmatpush.msra.mxu0 0.0
    %1233 = vmatpush.msra.mxu0 0.0
    %1234 = vmatpush.msra.mxu0 0.0
    %1235 = vmatpush.msra.mxu0 0.0
    %1236 = vmatpush.msra.mxu0 0.0
    %1237 = vmatpush.msra.mxu0 0.0
    %1238 = vmatpush.msra.mxu0 0.0
    %1239 = vmatpush.msra.mxu0 0.0
    %1240 = vmatpush.msra.mxu0 0.0
    %1241 = vmatpush.msra.mxu0 0.0
    %1242 = vmatpush.msra.mxu0 0.0
    %v1243 = vand.u32 %v274, 4294901760
    %v1244 = vsub.f32 %v274, %v1243
    %v1245 = vand.u32 %v1244, 4294901760
    %v1246 = vsub.f32 %v1244, %v1245
    %v1247 = vand.u32 %v1246, 4294901760
    %1248 = vmatpush.msra.mxu0 %v1247
    %v1249 = vand.u32 %v62, 4294901760
    %v1250 = vsub.f32 %v62, %v1249
    %v1251 = vand.u32 %v1250, 4294901760
    %v1252 = vsub.f32 %v1250, %v1251
    %v1253 = vand.u32 %v1252, 4294901760
    %1254 = vmatpush.msra.mxu0 %v1253
    %v1255 = vand.u32 %v61, 4294901760
    %v1256 = vsub.f32 %v61, %v1255
    %v1257 = vand.u32 %v1256, 4294901760
    %v1258 = vsub.f32 %v1256, %v1257
    %v1259 = vand.u32 %v1258, 4294901760
    %1260 = vmatpush.msra.mxu0 %v1259
    %v1261 = vand.u32 %v1200, 4294901760
    %1262 = vmatmul.f32.gmra.mxu0 %v1261
    %v1263 = vpop.f32.mrf.mxu0
    %v1264 = vadd.f32 %v1228, %v1263
    %1265 = vdwg.mxu0
    %1266 = vmatpush.msra.mxu0 0.0
    %1267 = vmatpush.msra.mxu0 0.0
    %1268 = vmatpush.msra.mxu0 0.0
    %1269 = vmatpush.msra.mxu0 0.0
    %1270 = vmatpush.msra.mxu0 0.0
    %1271 = vmatpush.msra.mxu0 0.0
    %1272 = vmatpush.msra.mxu0 0.0
    %1273 = vmatpush.msra.mxu0 0.0
    %1274 = vmatpush.msra.mxu0 0.0
    %1275 = vmatpush.msra.mxu0 0.0
    %1276 = vmatpush.msra.mxu0 0.0
    %1277 = vmatpush.msra.mxu0 0.0
    %1278 = vmatpush.msra.mxu0 0.0
    %v1279 = vand.u32 %v274, 4294901760
    %v1280 = vsub.f32 %v274, %v1279
    %1281 = vmatpush.msra.mxu0 %v1280
    %v1282 = vand.u32 %v62, 4294901760
    %v1283 = vsub.f32 %v62, %v1282
    %1284 = vmatpush.msra.mxu0 %v1283
    %v1285 = vand.u32 %v61, 4294901760
    %v1286 = vsub.f32 %v61, %v1285
    %1287 = vmatpush.msra.mxu0 %v1286
    %v1288 = vand.u32 %v1200, 4294901760
    %v1289 = vsub.f32 %v1200, %v1288
    %1290 = vmatmul.f32.gmra.mxu0 %v1289
    %v1291 = vpop.f32.mrf.mxu0
    %v1292 = vadd.f32 %v1264, %v1291
    %1293 = vdwg.mxu0
    %1294 = vmatpush.msra.mxu0 0.0
    %1295 = vmatpush.msra.mxu0 0.0
    %1296 = vmatpush.msra.mxu0 0.0
    %1297 = vmatpush.msra.mxu0 0.0
    %1298 = vmatpush.msra.mxu0 0.0
    %1299 = vmatpush.msra.mxu0 0.0
    %1300 = vmatpush.msra.mxu0 0.0
    %1301 = vmatpush.msra.mxu0 0.0
    %1302 = vmatpush.msra.mxu0 0.0
    %1303 = vmatpush.msra.mxu0 0.0
    %1304 = vmatpush.msra.mxu0 0.0
    %1305 = vmatpush.msra.mxu0 0.0
    %1306 = vmatpush.msra.mxu0 0.0
    %v1307 = vand.u32 %v274, 4294901760
    %1308 = vmatpush.msra.mxu0 %v1307
    %v1309 = vand.u32 %v62, 4294901760
    %1310 = vmatpush.msra.mxu0 %v1309
    %v1311 = vand.u32 %v61, 4294901760
    %1312 = vmatpush.msra.mxu0 %v1311
    %v1313 = vand.u32 %v1200, 4294901760
    %v1314 = vsub.f32 %v1200, %v1313
    %v1315 = vand.u32 %v1314, 4294901760
    %1316 = vmatmul.f32.gmra.mxu0 %v1315
    %v1317 = vpop.f32.mrf.mxu0
    %v1318 = vadd.f32 %v1292, %v1317
    %1319 = vdwg.mxu0
    %1320 = vmatpush.msra.mxu0 0.0
    %1321 = vmatpush.msra.mxu0 0.0
    %1322 = vmatpush.msra.mxu0 0.0
    %1323 = vmatpush.msra.mxu0 0.0
    %1324 = vmatpush.msra.mxu0 0.0
    %1325 = vmatpush.msra.mxu0 0.0
    %1326 = vmatpush.msra.mxu0 0.0
    %1327 = vmatpush.msra.mxu0 0.0
    %1328 = vmatpush.msra.mxu0 0.0
    %1329 = vmatpush.msra.mxu0 0.0
    %1330 = vmatpush.msra.mxu0 0.0
    %1331 = vmatpush.msra.mxu0 0.0
    %1332 = vmatpush.msra.mxu0 0.0
    %v1333 = vand.u32 %v274, 4294901760
    %v1334 = vsub.f32 %v274, %v1333
    %v1335 = vand.u32 %v1334, 4294901760
    %1336 = vmatpush.msra.mxu0 %v1335
    %v1337 = vand.u32 %v62, 4294901760
    %v1338 = vsub.f32 %v62, %v1337
    %v1339 = vand.u32 %v1338, 4294901760
    %1340 = vmatpush.msra.mxu0 %v1339
    %v1341 = vand.u32 %v61, 4294901760
    %v1342 = vsub.f32 %v61, %v1341
    %v1343 = vand.u32 %v1342, 4294901760
    %1344 = vmatpush.msra.mxu0 %v1343
    %v1345 = vand.u32 %v1200, 4294901760
    %1346 = vmatmul.f32.gmra.mxu0 %v1345
    %v1347 = vpop.f32.mrf.mxu0
    %v1348 = vadd.f32 %v1318, %v1347
    %1349 = vdwg.mxu0
    %1350 = vmatpush.msra.mxu0 0.0
    %1351 = vmatpush.msra.mxu0 0.0
    %1352 = vmatpush.msra.mxu0 0.0
    %1353 = vmatpush.msra.mxu0 0.0
    %1354 = vmatpush.msra.mxu0 0.0
    %1355 = vmatpush.msra.mxu0 0.0
    %1356 = vmatpush.msra.mxu0 0.0
    %1357 = vmatpush.msra.mxu0 0.0
    %1358 = vmatpush.msra.mxu0 0.0
    %1359 = vmatpush.msra.mxu0 0.0
    %1360 = vmatpush.msra.mxu0 0.0
    %1361 = vmatpush.msra.mxu0 0.0
    %1362 = vmatpush.msra.mxu0 0.0
    %v1363 = vand.u32 %v274, 4294901760
    %1364 = vmatpush.msra.mxu0 %v1363
    %v1365 = vand.u32 %v62, 4294901760
    %1366 = vmatpush.msra.mxu0 %v1365
    %v1367 = vand.u32 %v61, 4294901760
    %1368 = vmatpush.msra.mxu0 %v1367
    %v1369 = vand.u32 %v1200, 4294901760
    %1370 = vmatmul.f32.gmra.mxu0 %v1369
    %v1371 = vpop.f32.mrf.mxu0
    %v1372 = vadd.f32 %v1348, %v1371
    %1373 = vdwg.mxu0
    %v1375 = vrot.slane %v1372, 4
    %v1377 = vadd.f32 %v262, %v1375
    %v1378 = vxor.u32 %v1377, 2147483648
    %v1379 = vmul.f32 %v1378, 1.442695
    %v1380 = vpow.pop %v1379
    %v1381 = vadd.f32 %v1380, 1.0
    %v1382 = vrcp.pop %v1381
    %v1383 = vmul.f32 %v1381, %v1382
    %v1384 = vsub.f32 1.0, %v1383
    %v1385 = vmul.f32 %v1382, %v1384
    %v1386 = vadd.f32 %v1382, %v1385
    %vm1387 = vweird.f32 %v1381
    %vm1388 = vweird.f32 %v1382
    %vm1389 = vmor %vm1387, %vm1388
    %v1390 = vsel %vm1389, %v1382, %v1386
    %v1391 = vand.u32 2147483647, %v1381
    %vm1392 = vcmp.eq.f32.partialorder %v1391, 8.507059e+37
    %v1393 = vand.u32 %v1381, 2147483648
    %v1394 = vor.u32 1.1754944e-38, %v1393
    %v1395 = vsel %vm1392, %v1394, %v1390
    %v1396 = vmul.f32 1.0, %v1395
    %v1397 = vtanh.pop %v1377
    %v1399 = vrot.slane %v941, 6
    %v1401 = vmul.f32 %v1396, %v1399
    %1403 = vrot.lane.b32.xlu0 %v1397, 88
    %v1404 = vpop.permute.xlu0 %1403
    %v1406 = vmul.f32 %v1396, %v1404
    %1408 = vrot.lane.b32.xlu0 %v1406, 20
    %v1409 = vpop.permute.xlu0 %1408
    %v1411 = vadd.f32 %v1401, %v1409
    %v1412 = vtanh.pop %v1411
    %1414 = vrot.lane.b32.xlu0 %v1412, 40
    %v1415 = vpop.permute.xlu0 %1414
    %v1417 = vmul.f32 %v1396, %v1415
    %1419 = vrot.lane.b32.xlu0 %v1417, 68
    %v1420 = vpop.permute.xlu0 %1419
    %v1423 = vrot.slane %v1196, 4
    %1424 = vrot.lane.b32.xlu0 %v1423, 88
    %v1425 = vpop.permute.xlu0 %1424
    %v1427 = vsel %vm268, %v1420, %v1425
    %v1429 = vrot.slane %v1427, 4
    %v1430 = vsel %vm491, %v1429, 0
    %1432 = vmatpush.msra.mxu0 0.0
    %1433 = vmatpush.msra.mxu0 0.0
    %1434 = vmatpush.msra.mxu0 0.0
    %1435 = vmatpush.msra.mxu0 0.0
    %1436 = vmatpush.msra.mxu0 0.0
    %1437 = vmatpush.msra.mxu0 0.0
    %1438 = vmatpush.msra.mxu0 0.0
    %1439 = vmatpush.msra.mxu0 0.0
    %1440 = vmatpush.msra.mxu0 0.0
    %1441 = vmatpush.msra.mxu0 0.0
    %1442 = vmatpush.msra.mxu0 0.0
    %v1443 = vand.u32 %v68, 4294901760
    %1444 = vmatpush.msra.mxu0 %v1443
    %v1445 = vand.u32 %v67, 4294901760
    %1446 = vmatpush.msra.mxu0 %v1445
    %v1447 = vand.u32 %v66, 4294901760
    %1448 = vmatpush.msra.mxu0 %v1447
    %v1449 = vand.u32 %v65, 4294901760
    %1450 = vmatpush.msra.mxu0 %v1449
    %v1451 = vand.u32 %v64, 4294901760
    %1452 = vmatpush.msra.mxu0 %v1451
    %v1453 = vand.u32 %v1430, 4294901760
    %v1454 = vsub.f32 %v1430, %v1453
    %v1455 = vand.u32 %v1454, 4294901760
    %v1456 = vsub.f32 %v1454, %v1455
    %v1457 = vand.u32 %v1456, 4294901760
    %1458 = vmatmul.f32.gmra.mxu0 %v1457
    %v1459 = vpop.f32.mrf.mxu0
    %v1460 = vadd.f32 %v71, %v1459
    %1461 = vdwg.mxu0
    %1462 = vmatpush.msra.mxu0 0.0
    %1463 = vmatpush.msra.mxu0 0.0
    %1464 = vmatpush.msra.mxu0 0.0
    %1465 = vmatpush.msra.mxu0 0.0
    %1466 = vmatpush.msra.mxu0 0.0
    %1467 = vmatpush.msra.mxu0 0.0
    %1468 = vmatpush.msra.mxu0 0.0
    %1469 = vmatpush.msra.mxu0 0.0
    %1470 = vmatpush.msra.mxu0 0.0
    %1471 = vmatpush.msra.mxu0 0.0
    %1472 = vmatpush.msra.mxu0 0.0
    %v1473 = vand.u32 %v68, 4294901760
    %v1474 = vsub.f32 %v68, %v1473
    %v1475 = vand.u32 %v1474, 4294901760
    %v1476 = vsub.f32 %v1474, %v1475
    %v1477 = vand.u32 %v1476, 4294901760
    %1478 = vmatpush.msra.mxu0 %v1477
    %v1479 = vand.u32 %v67, 4294901760
    %v1480 = vsub.f32 %v67, %v1479
    %v1481 = vand.u32 %v1480, 4294901760
    %v1482 = vsub.f32 %v1480, %v1481
    %v1483 = vand.u32 %v1482, 4294901760
    %1484 = vmatpush.msra.mxu0 %v1483
    %v1485 = vand.u32 %v66, 4294901760
    %v1486 = vsub.f32 %v66, %v1485
    %v1487 = vand.u32 %v1486, 4294901760
    %v1488 = vsub.f32 %v1486, %v1487
    %v1489 = vand.u32 %v1488, 4294901760
    %1490 = vmatpush.msra.mxu0 %v1489
    %v1491 = vand.u32 %v65, 4294901760
    %v1492 = vsub.f32 %v65, %v1491
    %v1493 = vand.u32 %v1492, 4294901760
    %v1494 = vsub.f32 %v1492, %v1493
    %v1495 = vand.u32 %v1494, 4294901760
    %1496 = vmatpush.msra.mxu0 %v1495
    %v1497 = vand.u32 %v64, 4294901760
    %v1498 = vsub.f32 %v64, %v1497
    %v1499 = vand.u32 %v1498, 4294901760
    %v1500 = vsub.f32 %v1498, %v1499
    %v1501 = vand.u32 %v1500, 4294901760
    %1502 = vmatpush.msra.mxu0 %v1501
    %v1503 = vand.u32 %v1430, 4294901760
    %1504 = vmatmul.f32.gmra.mxu0 %v1503
    %v1505 = vpop.f32.mrf.mxu0
    %v1506 = vadd.f32 %v1460, %v1505
    %1507 = vdwg.mxu0
    %1508 = vmatpush.msra.mxu0 0.0
    %1509 = vmatpush.msra.mxu0 0.0
    %1510 = vmatpush.msra.mxu0 0.0
    %1511 = vmatpush.msra.mxu0 0.0
    %1512 = vmatpush.msra.mxu0 0.0
    %1513 = vmatpush.msra.mxu0 0.0
    %1514 = vmatpush.msra.mxu0 0.0
    %1515 = vmatpush.msra.mxu0 0.0
    %1516 = vmatpush.msra.mxu0 0.0
    %1517 = vmatpush.msra.mxu0 0.0
    %1518 = vmatpush.msra.mxu0 0.0
    %v1519 = vand.u32 %v68, 4294901760
    %v1520 = vsub.f32 %v68, %v1519
    %1521 = vmatpush.msra.mxu0 %v1520
    %v1522 = vand.u32 %v67, 4294901760
    %v1523 = vsub.f32 %v67, %v1522
    %1524 = vmatpush.msra.mxu0 %v1523
    %v1525 = vand.u32 %v66, 4294901760
    %v1526 = vsub.f32 %v66, %v1525
    %1527 = vmatpush.msra.mxu0 %v1526
    %v1528 = vand.u32 %v65, 4294901760
    %v1529 = vsub.f32 %v65, %v1528
    %1530 = vmatpush.msra.mxu0 %v1529
    %v1531 = vand.u32 %v64, 4294901760
    %v1532 = vsub.f32 %v64, %v1531
    %1533 = vmatpush.msra.mxu0 %v1532
    %v1534 = vand.u32 %v1430, 4294901760
    %v1535 = vsub.f32 %v1430, %v1534
    %1536 = vmatmul.f32.gmra.mxu0 %v1535
    %v1537 = vpop.f32.mrf.mxu0
    %v1538 = vadd.f32 %v1506, %v1537
    %1539 = vdwg.mxu0
    %1540 = vmatpush.msra.mxu0 0.0
    %1541 = vmatpush.msra.mxu0 0.0
    %1542 = vmatpush.msra.mxu0 0.0
    %1543 = vmatpush.msra.mxu0 0.0
    %1544 = vmatpush.msra.mxu0 0.0
    %1545 = vmatpush.msra.mxu0 0.0
    %1546 = vmatpush.msra.mxu0 0.0
    %1547 = vmatpush.msra.mxu0 0.0
    %1548 = vmatpush.msra.mxu0 0.0
    %1549 = vmatpush.msra.mxu0 0.0
    %1550 = vmatpush.msra.mxu0 0.0
    %v1551 = vand.u32 %v68, 4294901760
    %1552 = vmatpush.msra.mxu0 %v1551
    %v1553 = vand.u32 %v67, 4294901760
    %1554 = vmatpush.msra.mxu0 %v1553
    %v1555 = vand.u32 %v66, 4294901760
    %1556 = vmatpush.msra.mxu0 %v1555
    %v1557 = vand.u32 %v65, 4294901760
    %1558 = vmatpush.msra.mxu0 %v1557
    %v1559 = vand.u32 %v64, 4294901760
    %1560 = vmatpush.msra.mxu0 %v1559
    %v1561 = vand.u32 %v1430, 4294901760
    %v1562 = vsub.f32 %v1430, %v1561
    %v1563 = vand.u32 %v1562, 4294901760
    %1564 = vmatmul.f32.gmra.mxu0 %v1563
    %v1565 = vpop.f32.mrf.mxu0
    %v1566 = vadd.f32 %v1538, %v1565
    %1567 = vdwg.mxu0
    %1568 = vmatpush.msra.mxu0 0.0
    %1569 = vmatpush.msra.mxu0 0.0
    %1570 = vmatpush.msra.mxu0 0.0
    %1571 = vmatpush.msra.mxu0 0.0
    %1572 = vmatpush.msra.mxu0 0.0
    %1573 = vmatpush.msra.mxu0 0.0
    %1574 = vmatpush.msra.mxu0 0.0
    %1575 = vmatpush.msra.mxu0 0.0
    %1576 = vmatpush.msra.mxu0 0.0
    %1577 = vmatpush.msra.mxu0 0.0
    %1578 = vmatpush.msra.mxu0 0.0
    %v1579 = vand.u32 %v68, 4294901760
    %v1580 = vsub.f32 %v68, %v1579
    %v1581 = vand.u32 %v1580, 4294901760
    %1582 = vmatpush.msra.mxu0 %v1581
    %v1583 = vand.u32 %v67, 4294901760
    %v1584 = vsub.f32 %v67, %v1583
    %v1585 = vand.u32 %v1584, 4294901760
    %1586 = vmatpush.msra.mxu0 %v1585
    %v1587 = vand.u32 %v66, 4294901760
    %v1588 = vsub.f32 %v66, %v1587
    %v1589 = vand.u32 %v1588, 4294901760
    %1590 = vmatpush.msra.mxu0 %v1589
    %v1591 = vand.u32 %v65, 4294901760
    %v1592 = vsub.f32 %v65, %v1591
    %v1593 = vand.u32 %v1592, 4294901760
    %1594 = vmatpush.msra.mxu0 %v1593
    %v1595 = vand.u32 %v64, 4294901760
    %v1596 = vsub.f32 %v64, %v1595
    %v1597 = vand.u32 %v1596, 4294901760
    %1598 = vmatpush.msra.mxu0 %v1597
    %v1599 = vand.u32 %v1430, 4294901760
    %1600 = vmatmul.f32.gmra.mxu0 %v1599
    %v1601 = vpop.f32.mrf.mxu0
    %v1602 = vadd.f32 %v1566, %v1601
    %1603 = vdwg.mxu0
    %1604 = vmatpush.msra.mxu0 0.0
    %1605 = vmatpush.msra.mxu0 0.0
    %1606 = vmatpush.msra.mxu0 0.0
    %1607 = vmatpush.msra.mxu0 0.0
    %1608 = vmatpush.msra.mxu0 0.0
    %1609 = vmatpush.msra.mxu0 0.0
    %1610 = vmatpush.msra.mxu0 0.0
    %1611 = vmatpush.msra.mxu0 0.0
    %1612 = vmatpush.msra.mxu0 0.0
    %1613 = vmatpush.msra.mxu0 0.0
    %1614 = vmatpush.msra.mxu0 0.0
    %v1615 = vand.u32 %v68, 4294901760
    %1616 = vmatpush.msra.mxu0 %v1615
    %v1617 = vand.u32 %v67, 4294901760
    %1618 = vmatpush.msra.mxu0 %v1617
    %v1619 = vand.u32 %v66, 4294901760
    %1620 = vmatpush.msra.mxu0 %v1619
    %v1621 = vand.u32 %v65, 4294901760
    %1622 = vmatpush.msra.mxu0 %v1621
    %v1623 = vand.u32 %v64, 4294901760
    %1624 = vmatpush.msra.mxu0 %v1623
    %v1625 = vand.u32 %v1430, 4294901760
    %1626 = vmatmul.f32.gmra.mxu0 %v1625
    %v1627 = vpop.f32.mrf.mxu0
    %v1628 = vadd.f32 %v1602, %v1627
    %1629 = vdwg.mxu0
    %v1630 = vxor.u32 %v1628, 2147483648
    %v1631 = vmul.f32 %v1630, 1.442695
    %v1632 = vpow.pop %v1631
    %v1633 = vadd.f32 %v1632, 1.0
    %v1634 = vrcp.pop %v1633
    %v1635 = vmul.f32 %v1633, %v1634
    %v1636 = vsub.f32 1.0, %v1635
    %v1637 = vmul.f32 %v1634, %v1636
    %v1638 = vadd.f32 %v1634, %v1637
    %vm1639 = vweird.f32 %v1633
    %vm1640 = vweird.f32 %v1634
    %vm1641 = vmor %vm1639, %vm1640
    %v1642 = vsel %vm1641, %v1634, %v1638
    %v1643 = vand.u32 2147483647, %v1633
    %vm1644 = vcmp.eq.f32.partialorder %v1643, 8.507059e+37
    %v1645 = vand.u32 %v1633, 2147483648
    %v1646 = vor.u32 1.1754944e-38, %v1645
    %v1647 = vsel %vm1644, %v1646, %v1642
    %v1648 = vmul.f32 1.0, %v1647
    %v1649 = vtanh.pop %v1628
    %v1650 = vmul.f32 %v1648, %v1190
    %1652 = vrot.lane.b32.xlu0 %v1649, 88
    %v1653 = vpop.permute.xlu0 %1652
    %v1655 = vmul.f32 %v1648, %v1653
    %1657 = vrot.lane.b32.xlu0 %v1655, 20
    %v1658 = vpop.permute.xlu0 %1657
    %v1660 = vadd.f32 %v1650, %v1658
    %v1661 = vtanh.pop %v1660
    %1663 = vrot.lane.b32.xlu0 %v1661, 40
    %v1664 = vpop.permute.xlu0 %1663
    %v1666 = vmul.f32 %v1648, %v1664
    %v1667 = vrot.slane %v1417, 4
    %1668 = vrot.lane.b32.xlu0 %v1667, 68
    %v1669 = vpop.permute.xlu0 %1668
    %v1670 = vsel %vm268, %v1669, 0
    %1672 = vmatpush.msra.mxu0 0.0
    %1673 = vmatpush.msra.mxu0 0.0
    %1674 = vmatpush.msra.mxu0 0.0
    %1675 = vmatpush.msra.mxu0 0.0
    %1676 = vmatpush.msra.mxu0 0.0
    %1677 = vmatpush.msra.mxu0 0.0
    %1678 = vmatpush.msra.mxu0 0.0
    %1679 = vmatpush.msra.mxu0 0.0
    %1680 = vmatpush.msra.mxu0 0.0
    %1681 = vmatpush.msra.mxu0 0.0
    %1682 = vmatpush.msra.mxu0 0.0
    %1683 = vmatpush.msra.mxu0 0.0
    %1684 = vmatpush.msra.mxu0 0.0
    %v1685 = vand.u32 %v274, 4294901760
    %1686 = vmatpush.msra.mxu0 %v1685
    %v1687 = vand.u32 %v62, 4294901760
    %1688 = vmatpush.msra.mxu0 %v1687
    %v1689 = vand.u32 %v61, 4294901760
    %1690 = vmatpush.msra.mxu0 %v1689
    %v1691 = vand.u32 %v1670, 4294901760
    %v1692 = vsub.f32 %v1670, %v1691
    %v1693 = vand.u32 %v1692, 4294901760
    %v1694 = vsub.f32 %v1692, %v1693
    %v1695 = vand.u32 %v1694, 4294901760
    %1696 = vmatmul.f32.gmra.mxu0 %v1695
    %v1697 = vpop.f32.mrf.mxu0
    %v1698 = vadd.f32 0.0, %v1697
    %1699 = vdwg.mxu0
    %1700 = vmatpush.msra.mxu0 0.0
    %1701 = vmatpush.msra.mxu0 0.0
    %1702 = vmatpush.msra.mxu0 0.0
    %1703 = vmatpush.msra.mxu0 0.0
    %1704 = vmatpush.msra.mxu0 0.0
    %1705 = vmatpush.msra.mxu0 0.0
    %1706 = vmatpush.msra.mxu0 0.0
    %1707 = vmatpush.msra.mxu0 0.0
    %1708 = vmatpush.msra.mxu0 0.0
    %1709 = vmatpush.msra.mxu0 0.0
    %1710 = vmatpush.msra.mxu0 0.0
    %1711 = vmatpush.msra.mxu0 0.0
    %1712 = vmatpush.msra.mxu0 0.0
    %v1713 = vand.u32 %v274, 4294901760
    %v1714 = vsub.f32 %v274, %v1713
    %v1715 = vand.u32 %v1714, 4294901760
    %v1716 = vsub.f32 %v1714, %v1715
    %v1717 = vand.u32 %v1716, 4294901760
    %1718 = vmatpush.msra.mxu0 %v1717
    %v1719 = vand.u32 %v62, 4294901760
    %v1720 = vsub.f32 %v62, %v1719
    %v1721 = vand.u32 %v1720, 4294901760
    %v1722 = vsub.f32 %v1720, %v1721
    %v1723 = vand.u32 %v1722, 4294901760
    %1724 = vmatpush.msra.mxu0 %v1723
    %v1725 = vand.u32 %v61, 4294901760
    %v1726 = vsub.f32 %v61, %v1725
    %v1727 = vand.u32 %v1726, 4294901760
    %v1728 = vsub.f32 %v1726, %v1727
    %v1729 = vand.u32 %v1728, 4294901760
    %1730 = vmatpush.msra.mxu0 %v1729
    %v1731 = vand.u32 %v1670, 4294901760
    %1732 = vmatmul.f32.gmra.mxu0 %v1731
    %v1733 = vpop.f32.mrf.mxu0
    %v1734 = vadd.f32 %v1698, %v1733
    %1735 = vdwg.mxu0
    %1736 = vmatpush.msra.mxu0 0.0
    %1737 = vmatpush.msra.mxu0 0.0
    %1738 = vmatpush.msra.mxu0 0.0
    %1739 = vmatpush.msra.mxu0 0.0
    %1740 = vmatpush.msra.mxu0 0.0
    %1741 = vmatpush.msra.mxu0 0.0
    %1742 = vmatpush.msra.mxu0 0.0
    %1743 = vmatpush.msra.mxu0 0.0
    %1744 = vmatpush.msra.mxu0 0.0
    %1745 = vmatpush.msra.mxu0 0.0
    %1746 = vmatpush.msra.mxu0 0.0
    %1747 = vmatpush.msra.mxu0 0.0
    %1748 = vmatpush.msra.mxu0 0.0
    %v1749 = vand.u32 %v274, 4294901760
    %v1750 = vsub.f32 %v274, %v1749
    %1751 = vmatpush.msra.mxu0 %v1750
    %v1752 = vand.u32 %v62, 4294901760
    %v1753 = vsub.f32 %v62, %v1752
    %1754 = vmatpush.msra.mxu0 %v1753
    %v1755 = vand.u32 %v61, 4294901760
    %v1756 = vsub.f32 %v61, %v1755
    %1757 = vmatpush.msra.mxu0 %v1756
    %v1758 = vand.u32 %v1670, 4294901760
    %v1759 = vsub.f32 %v1670, %v1758
    %1760 = vmatmul.f32.gmra.mxu0 %v1759
    %v1761 = vpop.f32.mrf.mxu0
    %v1762 = vadd.f32 %v1734, %v1761
    %1763 = vdwg.mxu0
    %1764 = vmatpush.msra.mxu0 0.0
    %1765 = vmatpush.msra.mxu0 0.0
    %1766 = vmatpush.msra.mxu0 0.0
    %1767 = vmatpush.msra.mxu0 0.0
    %1768 = vmatpush.msra.mxu0 0.0
    %1769 = vmatpush.msra.mxu0 0.0
    %1770 = vmatpush.msra.mxu0 0.0
    %1771 = vmatpush.msra.mxu0 0.0
    %1772 = vmatpush.msra.mxu0 0.0
    %1773 = vmatpush.msra.mxu0 0.0
    %1774 = vmatpush.msra.mxu0 0.0
    %1775 = vmatpush.msra.mxu0 0.0
    %1776 = vmatpush.msra.mxu0 0.0
    %v1777 = vand.u32 %v274, 4294901760
    %1778 = vmatpush.msra.mxu0 %v1777
    %v1779 = vand.u32 %v62, 4294901760
    %1780 = vmatpush.msra.mxu0 %v1779
    %v1781 = vand.u32 %v61, 4294901760
    %1782 = vmatpush.msra.mxu0 %v1781
    %v1783 = vand.u32 %v1670, 4294901760
    %v1784 = vsub.f32 %v1670, %v1783
    %v1785 = vand.u32 %v1784, 4294901760
    %1786 = vmatmul.f32.gmra.mxu0 %v1785
    %v1787 = vpop.f32.mrf.mxu0
    %v1788 = vadd.f32 %v1762, %v1787
    %1789 = vdwg.mxu0
    %1790 = vmatpush.msra.mxu0 0.0
    %1791 = vmatpush.msra.mxu0 0.0
    %1792 = vmatpush.msra.mxu0 0.0
    %1793 = vmatpush.msra.mxu0 0.0
    %1794 = vmatpush.msra.mxu0 0.0
    %1795 = vmatpush.msra.mxu0 0.0
    %1796 = vmatpush.msra.mxu0 0.0
    %1797 = vmatpush.msra.mxu0 0.0
    %1798 = vmatpush.msra.mxu0 0.0
    %1799 = vmatpush.msra.mxu0 0.0
    %1800 = vmatpush.msra.mxu0 0.0
    %1801 = vmatpush.msra.mxu0 0.0
    %1802 = vmatpush.msra.mxu0 0.0
    %v1803 = vand.u32 %v274, 4294901760
    %v1804 = vsub.f32 %v274, %v1803
    %v1805 = vand.u32 %v1804, 4294901760
    %1806 = vmatpush.msra.mxu0 %v1805
    %v1807 = vand.u32 %v62, 4294901760
    %v1808 = vsub.f32 %v62, %v1807
    %v1809 = vand.u32 %v1808, 4294901760
    %1810 = vmatpush.msra.mxu0 %v1809
    %v1811 = vand.u32 %v61, 4294901760
    %v1812 = vsub.f32 %v61, %v1811
    %v1813 = vand.u32 %v1812, 4294901760
    %1814 = vmatpush.msra.mxu0 %v1813
    %v1815 = vand.u32 %v1670, 4294901760
    %1816 = vmatmul.f32.gmra.mxu0 %v1815
    %v1817 = vpop.f32.mrf.mxu0
    %v1818 = vadd.f32 %v1788, %v1817
    %1819 = vdwg.mxu0
    %1820 = vmatpush.msra.mxu0 0.0
    %1821 = vmatpush.msra.mxu0 0.0
    %1822 = vmatpush.msra.mxu0 0.0
    %1823 = vmatpush.msra.mxu0 0.0
    %1824 = vmatpush.msra.mxu0 0.0
    %1825 = vmatpush.msra.mxu0 0.0
    %1826 = vmatpush.msra.mxu0 0.0
    %1827 = vmatpush.msra.mxu0 0.0
    %1828 = vmatpush.msra.mxu0 0.0
    %1829 = vmatpush.msra.mxu0 0.0
    %1830 = vmatpush.msra.mxu0 0.0
    %1831 = vmatpush.msra.mxu0 0.0
    %1832 = vmatpush.msra.mxu0 0.0
    %v1833 = vand.u32 %v274, 4294901760
    %1834 = vmatpush.msra.mxu0 %v1833
    %v1835 = vand.u32 %v62, 4294901760
    %1836 = vmatpush.msra.mxu0 %v1835
    %v1837 = vand.u32 %v61, 4294901760
    %1838 = vmatpush.msra.mxu0 %v1837
    %v1839 = vand.u32 %v1670, 4294901760
    %1840 = vmatmul.f32.gmra.mxu0 %v1839
    %v1841 = vpop.f32.mrf.mxu0
    %v1842 = vadd.f32 %v1818, %v1841
    %1843 = vdwg.mxu0
    %v1845 = vrot.slane %v1842, 2
    %v1847 = vadd.f32 %v262, %v1845
    %v1848 = vxor.u32 %v1847, 2147483648
    %v1849 = vmul.f32 %v1848, 1.442695
    %v1850 = vpow.pop %v1849
    %v1851 = vadd.f32 %v1850, 1.0
    %v1852 = vrcp.pop %v1851
    %v1853 = vmul.f32 %v1851, %v1852
    %v1854 = vsub.f32 1.0, %v1853
    %v1855 = vmul.f32 %v1852, %v1854
    %v1856 = vadd.f32 %v1852, %v1855
    %vm1857 = vweird.f32 %v1851
    %vm1858 = vweird.f32 %v1852
    %vm1859 = vmor %vm1857, %vm1858
    %v1860 = vsel %vm1859, %v1852, %v1856
    %v1861 = vand.u32 2147483647, %v1851
    %vm1862 = vcmp.eq.f32.partialorder %v1861, 8.507059e+37
    %v1863 = vand.u32 %v1851, 2147483648
    %v1864 = vor.u32 1.1754944e-38, %v1863
    %v1865 = vsel %vm1862, %v1864, %v1860
    %v1866 = vmul.f32 1.0, %v1865
    %v1867 = vtanh.pop %v1847
    %v1869 = vrot.slane %v1411, 6
    %v1871 = vmul.f32 %v1866, %v1869
    %1873 = vrot.lane.b32.xlu0 %v1867, 88
    %v1874 = vpop.permute.xlu0 %1873
    %v1876 = vmul.f32 %v1866, %v1874
    %1878 = vrot.lane.b32.xlu0 %v1876, 20
    %v1879 = vpop.permute.xlu0 %1878
    %v1881 = vadd.f32 %v1871, %v1879
    %v1882 = vtanh.pop %v1881
    %1884 = vrot.lane.b32.xlu0 %v1882, 40
    %v1885 = vpop.permute.xlu0 %1884
    %v1887 = vmul.f32 %v1866, %v1885
    %1889 = vrot.lane.b32.xlu0 %v1887, 68
    %v1890 = vpop.permute.xlu0 %1889
    %v1893 = vrot.slane %v1666, 2
    %1894 = vrot.lane.b32.xlu0 %v1893, 88
    %v1895 = vpop.permute.xlu0 %1894
    %v1897 = vsel %vm268, %v1890, %v1895
    %v1899 = vrot.slane %v1897, 6
    %v1900 = vsel %vm491, %v1899, 0
    %1902 = vmatpush.msra.mxu0 0.0
    %1903 = vmatpush.msra.mxu0 0.0
    %1904 = vmatpush.msra.mxu0 0.0
    %1905 = vmatpush.msra.mxu0 0.0
    %1906 = vmatpush.msra.mxu0 0.0
    %1907 = vmatpush.msra.mxu0 0.0
    %1908 = vmatpush.msra.mxu0 0.0
    %1909 = vmatpush.msra.mxu0 0.0
    %1910 = vmatpush.msra.mxu0 0.0
    %1911 = vmatpush.msra.mxu0 0.0
    %1912 = vmatpush.msra.mxu0 0.0
    %v1913 = vand.u32 %v68, 4294901760
    %1914 = vmatpush.msra.mxu0 %v1913
    %v1915 = vand.u32 %v67, 4294901760
    %1916 = vmatpush.msra.mxu0 %v1915
    %v1917 = vand.u32 %v66, 4294901760
    %1918 = vmatpush.msra.mxu0 %v1917
    %v1919 = vand.u32 %v65, 4294901760
    %1920 = vmatpush.msra.mxu0 %v1919
    %v1921 = vand.u32 %v64, 4294901760
    %1922 = vmatpush.msra.mxu0 %v1921
    %v1923 = vand.u32 %v1900, 4294901760
    %v1924 = vsub.f32 %v1900, %v1923
    %v1925 = vand.u32 %v1924, 4294901760
    %v1926 = vsub.f32 %v1924, %v1925
    %v1927 = vand.u32 %v1926, 4294901760
    %1928 = vmatmul.f32.gmra.mxu0 %v1927
    %v1929 = vpop.f32.mrf.mxu0
    %v1930 = vadd.f32 %v71, %v1929
    %1931 = vdwg.mxu0
    %1932 = vmatpush.msra.mxu0 0.0
    %1933 = vmatpush.msra.mxu0 0.0
    %1934 = vmatpush.msra.mxu0 0.0
    %1935 = vmatpush.msra.mxu0 0.0
    %1936 = vmatpush.msra.mxu0 0.0
    %1937 = vmatpush.msra.mxu0 0.0
    %1938 = vmatpush.msra.mxu0 0.0
    %1939 = vmatpush.msra.mxu0 0.0
    %1940 = vmatpush.msra.mxu0 0.0
    %1941 = vmatpush.msra.mxu0 0.0
    %1942 = vmatpush.msra.mxu0 0.0
    %v1943 = vand.u32 %v68, 4294901760
    %v1944 = vsub.f32 %v68, %v1943
    %v1945 = vand.u32 %v1944, 4294901760
    %v1946 = vsub.f32 %v1944, %v1945
    %v1947 = vand.u32 %v1946, 4294901760
    %1948 = vmatpush.msra.mxu0 %v1947
    %v1949 = vand.u32 %v67, 4294901760
    %v1950 = vsub.f32 %v67, %v1949
    %v1951 = vand.u32 %v1950, 4294901760
    %v1952 = vsub.f32 %v1950, %v1951
    %v1953 = vand.u32 %v1952, 4294901760
    %1954 = vmatpush.msra.mxu0 %v1953
    %v1955 = vand.u32 %v66, 4294901760
    %v1956 = vsub.f32 %v66, %v1955
    %v1957 = vand.u32 %v1956, 4294901760
    %v1958 = vsub.f32 %v1956, %v1957
    %v1959 = vand.u32 %v1958, 4294901760
    %1960 = vmatpush.msra.mxu0 %v1959
    %v1961 = vand.u32 %v65, 4294901760
    %v1962 = vsub.f32 %v65, %v1961
    %v1963 = vand.u32 %v1962, 4294901760
    %v1964 = vsub.f32 %v1962, %v1963
    %v1965 = vand.u32 %v1964, 4294901760
    %1966 = vmatpush.msra.mxu0 %v1965
    %v1967 = vand.u32 %v64, 4294901760
    %v1968 = vsub.f32 %v64, %v1967
    %v1969 = vand.u32 %v1968, 4294901760
    %v1970 = vsub.f32 %v1968, %v1969
    %v1971 = vand.u32 %v1970, 4294901760
    %1972 = vmatpush.msra.mxu0 %v1971
    %v1973 = vand.u32 %v1900, 4294901760
    %1974 = vmatmul.f32.gmra.mxu0 %v1973
    %v1975 = vpop.f32.mrf.mxu0
    %v1976 = vadd.f32 %v1930, %v1975
    %1977 = vdwg.mxu0
    %1978 = vmatpush.msra.mxu0 0.0
    %1979 = vmatpush.msra.mxu0 0.0
    %1980 = vmatpush.msra.mxu0 0.0
    %1981 = vmatpush.msra.mxu0 0.0
    %1982 = vmatpush.msra.mxu0 0.0
    %1983 = vmatpush.msra.mxu0 0.0
    %1984 = vmatpush.msra.mxu0 0.0
    %1985 = vmatpush.msra.mxu0 0.0
    %1986 = vmatpush.msra.mxu0 0.0
    %1987 = vmatpush.msra.mxu0 0.0
    %1988 = vmatpush.msra.mxu0 0.0
    %v1989 = vand.u32 %v68, 4294901760
    %v1990 = vsub.f32 %v68, %v1989
    %1991 = vmatpush.msra.mxu0 %v1990
    %v1992 = vand.u32 %v67, 4294901760
    %v1993 = vsub.f32 %v67, %v1992
    %1994 = vmatpush.msra.mxu0 %v1993
    %v1995 = vand.u32 %v66, 4294901760
    %v1996 = vsub.f32 %v66, %v1995
    %1997 = vmatpush.msra.mxu0 %v1996
    %v1998 = vand.u32 %v65, 4294901760
    %v1999 = vsub.f32 %v65, %v1998
    %2000 = vmatpush.msra.mxu0 %v1999
    %v2001 = vand.u32 %v64, 4294901760
    %v2002 = vsub.f32 %v64, %v2001
    %2003 = vmatpush.msra.mxu0 %v2002
    %v2004 = vand.u32 %v1900, 4294901760
    %v2005 = vsub.f32 %v1900, %v2004
    %2006 = vmatmul.f32.gmra.mxu0 %v2005
    %v2007 = vpop.f32.mrf.mxu0
    %v2008 = vadd.f32 %v1976, %v2007
    %2009 = vdwg.mxu0
    %2010 = vmatpush.msra.mxu0 0.0
    %2011 = vmatpush.msra.mxu0 0.0
    %2012 = vmatpush.msra.mxu0 0.0
    %2013 = vmatpush.msra.mxu0 0.0
    %2014 = vmatpush.msra.mxu0 0.0
    %2015 = vmatpush.msra.mxu0 0.0
    %2016 = vmatpush.msra.mxu0 0.0
    %2017 = vmatpush.msra.mxu0 0.0
    %2018 = vmatpush.msra.mxu0 0.0
    %2019 = vmatpush.msra.mxu0 0.0
    %2020 = vmatpush.msra.mxu0 0.0
    %v2021 = vand.u32 %v68, 4294901760
    %2022 = vmatpush.msra.mxu0 %v2021
    %v2023 = vand.u32 %v67, 4294901760
    %2024 = vmatpush.msra.mxu0 %v2023
    %v2025 = vand.u32 %v66, 4294901760
    %2026 = vmatpush.msra.mxu0 %v2025
    %v2027 = vand.u32 %v65, 4294901760
    %2028 = vmatpush.msra.mxu0 %v2027
    %v2029 = vand.u32 %v64, 4294901760
    %2030 = vmatpush.msra.mxu0 %v2029
    %v2031 = vand.u32 %v1900, 4294901760
    %v2032 = vsub.f32 %v1900, %v2031
    %v2033 = vand.u32 %v2032, 4294901760
    %2034 = vmatmul.f32.gmra.mxu0 %v2033
    %v2035 = vpop.f32.mrf.mxu0
    %v2036 = vadd.f32 %v2008, %v2035
    %2037 = vdwg.mxu0
    %2038 = vmatpush.msra.mxu0 0.0
    %2039 = vmatpush.msra.mxu0 0.0
    %2040 = vmatpush.msra.mxu0 0.0
    %2041 = vmatpush.msra.mxu0 0.0
    %2042 = vmatpush.msra.mxu0 0.0
    %2043 = vmatpush.msra.mxu0 0.0
    %2044 = vmatpush.msra.mxu0 0.0
    %2045 = vmatpush.msra.mxu0 0.0
    %2046 = vmatpush.msra.mxu0 0.0
    %2047 = vmatpush.msra.mxu0 0.0
    %2048 = vmatpush.msra.mxu0 0.0
    %v2049 = vand.u32 %v68, 4294901760
    %v2050 = vsub.f32 %v68, %v2049
    %v2051 = vand.u32 %v2050, 4294901760
    %2052 = vmatpush.msra.mxu0 %v2051
    %v2053 = vand.u32 %v67, 4294901760
    %v2054 = vsub.f32 %v67, %v2053
    %v2055 = vand.u32 %v2054, 4294901760
    %2056 = vmatpush.msra.mxu0 %v2055
    %v2057 = vand.u32 %v66, 4294901760
    %v2058 = vsub.f32 %v66, %v2057
    %v2059 = vand.u32 %v2058, 4294901760
    %2060 = vmatpush.msra.mxu0 %v2059
    %v2061 = vand.u32 %v65, 4294901760
    %v2062 = vsub.f32 %v65, %v2061
    %v2063 = vand.u32 %v2062, 4294901760
    %2064 = vmatpush.msra.mxu0 %v2063
    %v2065 = vand.u32 %v64, 4294901760
    %v2066 = vsub.f32 %v64, %v2065
    %v2067 = vand.u32 %v2066, 4294901760
    %2068 = vmatpush.msra.mxu0 %v2067
    %v2069 = vand.u32 %v1900, 4294901760
    %2070 = vmatmul.f32.gmra.mxu0 %v2069
    %v2071 = vpop.f32.mrf.mxu0
    %v2072 = vadd.f32 %v2036, %v2071
    %2073 = vdwg.mxu0
    %2074 = vmatpush.msra.mxu0 0.0
    %2075 = vmatpush.msra.mxu0 0.0
    %2076 = vmatpush.msra.mxu0 0.0
    %2077 = vmatpush.msra.mxu0 0.0
    %2078 = vmatpush.msra.mxu0 0.0
    %2079 = vmatpush.msra.mxu0 0.0
    %2080 = vmatpush.msra.mxu0 0.0
    %2081 = vmatpush.msra.mxu0 0.0
    %2082 = vmatpush.msra.mxu0 0.0
    %2083 = vmatpush.msra.mxu0 0.0
    %2084 = vmatpush.msra.mxu0 0.0
    %v2085 = vand.u32 %v68, 4294901760
    %2086 = vmatpush.msra.mxu0 %v2085
    %v2087 = vand.u32 %v67, 4294901760
    %2088 = vmatpush.msra.mxu0 %v2087
    %v2089 = vand.u32 %v66, 4294901760
    %2090 = vmatpush.msra.mxu0 %v2089
    %v2091 = vand.u32 %v65, 4294901760
    %2092 = vmatpush.msra.mxu0 %v2091
    %v2093 = vand.u32 %v64, 4294901760
    %2094 = vmatpush.msra.mxu0 %v2093
    %v2095 = vand.u32 %v1900, 4294901760
    %2096 = vmatmul.f32.gmra.mxu0 %v2095
    %v2097 = vpop.f32.mrf.mxu0
    %v2098 = vadd.f32 %v2072, %v2097
    %2099 = vdwg.mxu0
    %v2100 = vxor.u32 %v2098, 2147483648
    %v2101 = vmul.f32 %v2100, 1.442695
    %v2102 = vpow.pop %v2101
    %v2103 = vadd.f32 %v2102, 1.0
    %v2104 = vrcp.pop %v2103
    %v2105 = vmul.f32 %v2103, %v2104
    %v2106 = vsub.f32 1.0, %v2105
    %v2107 = vmul.f32 %v2104, %v2106
    %v2108 = vadd.f32 %v2104, %v2107
    %vm2109 = vweird.f32 %v2103
    %vm2110 = vweird.f32 %v2104
    %vm2111 = vmor %vm2109, %vm2110
    %v2112 = vsel %vm2111, %v2104, %v2108
    %v2113 = vand.u32 2147483647, %v2103
    %vm2114 = vcmp.eq.f32.partialorder %v2113, 8.507059e+37
    %v2115 = vand.u32 %v2103, 2147483648
    %v2116 = vor.u32 1.1754944e-38, %v2115
    %v2117 = vsel %vm2114, %v2116, %v2112
    %v2118 = vmul.f32 1.0, %v2117
    %v2119 = vtanh.pop %v2098
    %v2120 = vmul.f32 %v2118, %v1660
    %2122 = vrot.lane.b32.xlu0 %v2119, 88
    %v2123 = vpop.permute.xlu0 %2122
    %v2125 = vmul.f32 %v2118, %v2123
    %2127 = vrot.lane.b32.xlu0 %v2125, 20
    %v2128 = vpop.permute.xlu0 %2127
    %v2130 = vadd.f32 %v2120, %v2128
    %v2131 = vtanh.pop %v2130
    %2133 = vrot.lane.b32.xlu0 %v2131, 40
    %v2134 = vpop.permute.xlu0 %2133
    %v2136 = vmul.f32 %v2118, %v2134
    %v2137 = vrot.slane %v1887, 6
    %2138 = vrot.lane.b32.xlu0 %v2137, 68
    %v2139 = vpop.permute.xlu0 %2138
    %v2140 = vsel %vm268, %v2139, 0
    %2142 = vmatpush.msra.mxu0 0.0
    %2143 = vmatpush.msra.mxu0 0.0
    %2144 = vmatpush.msra.mxu0 0.0
    %2145 = vmatpush.msra.mxu0 0.0
    %2146 = vmatpush.msra.mxu0 0.0
    %2147 = vmatpush.msra.mxu0 0.0
    %2148 = vmatpush.msra.mxu0 0.0
    %2149 = vmatpush.msra.mxu0 0.0
    %2150 = vmatpush.msra.mxu0 0.0
    %2151 = vmatpush.msra.mxu0 0.0
    %2152 = vmatpush.msra.mxu0 0.0
    %2153 = vmatpush.msra.mxu0 0.0
    %2154 = vmatpush.msra.mxu0 0.0
    %v2155 = vand.u32 %v274, 4294901760
    %2156 = vmatpush.msra.mxu0 %v2155
    %v2157 = vand.u32 %v62, 4294901760
    %2158 = vmatpush.msra.mxu0 %v2157
    %v2159 = vand.u32 %v61, 4294901760
    %2160 = vmatpush.msra.mxu0 %v2159
    %v2161 = vand.u32 %v2140, 4294901760
    %v2162 = vsub.f32 %v2140, %v2161
    %v2163 = vand.u32 %v2162, 4294901760
    %v2164 = vsub.f32 %v2162, %v2163
    %v2165 = vand.u32 %v2164, 4294901760
    %2166 = vmatmul.f32.gmra.mxu0 %v2165
    %v2167 = vpop.f32.mrf.mxu0
    %v2168 = vadd.f32 0.0, %v2167
    %2169 = vdwg.mxu0
    %2170 = vmatpush.msra.mxu0 0.0
    %2171 = vmatpush.msra.mxu0 0.0
    %2172 = vmatpush.msra.mxu0 0.0
    %2173 = vmatpush.msra.mxu0 0.0
    %2174 = vmatpush.msra.mxu0 0.0
    %2175 = vmatpush.msra.mxu0 0.0
    %2176 = vmatpush.msra.mxu0 0.0
    %2177 = vmatpush.msra.mxu0 0.0
    %2178 = vmatpush.msra.mxu0 0.0
    %2179 = vmatpush.msra.mxu0 0.0
    %2180 = vmatpush.msra.mxu0 0.0
    %2181 = vmatpush.msra.mxu0 0.0
    %2182 = vmatpush.msra.mxu0 0.0
    %v2183 = vand.u32 %v274, 4294901760
    %v2184 = vsub.f32 %v274, %v2183
    %v2185 = vand.u32 %v2184, 4294901760
    %v2186 = vsub.f32 %v2184, %v2185
    %v2187 = vand.u32 %v2186, 4294901760
    %2188 = vmatpush.msra.mxu0 %v2187
    %v2189 = vand.u32 %v62, 4294901760
    %v2190 = vsub.f32 %v62, %v2189
    %v2191 = vand.u32 %v2190, 4294901760
    %v2192 = vsub.f32 %v2190, %v2191
    %v2193 = vand.u32 %v2192, 4294901760
    %2194 = vmatpush.msra.mxu0 %v2193
    %v2195 = vand.u32 %v61, 4294901760
    %v2196 = vsub.f32 %v61, %v2195
    %v2197 = vand.u32 %v2196, 4294901760
    %v2198 = vsub.f32 %v2196, %v2197
    %v2199 = vand.u32 %v2198, 4294901760
    %2200 = vmatpush.msra.mxu0 %v2199
    %v2201 = vand.u32 %v2140, 4294901760
    %2202 = vmatmul.f32.gmra.mxu0 %v2201
    %v2203 = vpop.f32.mrf.mxu0
    %v2204 = vadd.f32 %v2168, %v2203
    %2205 = vdwg.mxu0
    %2206 = vmatpush.msra.mxu0 0.0
    %2207 = vmatpush.msra.mxu0 0.0
    %2208 = vmatpush.msra.mxu0 0.0
    %2209 = vmatpush.msra.mxu0 0.0
    %2210 = vmatpush.msra.mxu0 0.0
    %2211 = vmatpush.msra.mxu0 0.0
    %2212 = vmatpush.msra.mxu0 0.0
    %2213 = vmatpush.msra.mxu0 0.0
    %2214 = vmatpush.msra.mxu0 0.0
    %2215 = vmatpush.msra.mxu0 0.0
    %2216 = vmatpush.msra.mxu0 0.0
    %2217 = vmatpush.msra.mxu0 0.0
    %2218 = vmatpush.msra.mxu0 0.0
    %v2219 = vand.u32 %v274, 4294901760
    %v2220 = vsub.f32 %v274, %v2219
    %2221 = vmatpush.msra.mxu0 %v2220
    %v2222 = vand.u32 %v62, 4294901760
    %v2223 = vsub.f32 %v62, %v2222
    %2224 = vmatpush.msra.mxu0 %v2223
    %v2225 = vand.u32 %v61, 4294901760
    %v2226 = vsub.f32 %v61, %v2225
    %2227 = vmatpush.msra.mxu0 %v2226
    %v2228 = vand.u32 %v2140, 4294901760
    %v2229 = vsub.f32 %v2140, %v2228
    %2230 = vmatmul.f32.gmra.mxu0 %v2229
    %v2231 = vpop.f32.mrf.mxu0
    %v2232 = vadd.f32 %v2204, %v2231
    %2233 = vdwg.mxu0
    %2234 = vmatpush.msra.mxu0 0.0
    %2235 = vmatpush.msra.mxu0 0.0
    %2236 = vmatpush.msra.mxu0 0.0
    %2237 = vmatpush.msra.mxu0 0.0
    %2238 = vmatpush.msra.mxu0 0.0
    %2239 = vmatpush.msra.mxu0 0.0
    %2240 = vmatpush.msra.mxu0 0.0
    %2241 = vmatpush.msra.mxu0 0.0
    %2242 = vmatpush.msra.mxu0 0.0
    %2243 = vmatpush.msra.mxu0 0.0
    %2244 = vmatpush.msra.mxu0 0.0
    %2245 = vmatpush.msra.mxu0 0.0
    %2246 = vmatpush.msra.mxu0 0.0
    %v2247 = vand.u32 %v274, 4294901760
    %2248 = vmatpush.msra.mxu0 %v2247
    %v2249 = vand.u32 %v62, 4294901760
    %2250 = vmatpush.msra.mxu0 %v2249
    %v2251 = vand.u32 %v61, 4294901760
    %2252 = vmatpush.msra.mxu0 %v2251
    %v2253 = vand.u32 %v2140, 4294901760
    %v2254 = vsub.f32 %v2140, %v2253
    %v2255 = vand.u32 %v2254, 4294901760
    %2256 = vmatmul.f32.gmra.mxu0 %v2255
    %v2257 = vpop.f32.mrf.mxu0
    %v2258 = vadd.f32 %v2232, %v2257
    %2259 = vdwg.mxu0
    %2260 = vmatpush.msra.mxu0 0.0
    %2261 = vmatpush.msra.mxu0 0.0
    %2262 = vmatpush.msra.mxu0 0.0
    %2263 = vmatpush.msra.mxu0 0.0
    %2264 = vmatpush.msra.mxu0 0.0
    %2265 = vmatpush.msra.mxu0 0.0
    %2266 = vmatpush.msra.mxu0 0.0
    %2267 = vmatpush.msra.mxu0 0.0
    %2268 = vmatpush.msra.mxu0 0.0
    %2269 = vmatpush.msra.mxu0 0.0
    %2270 = vmatpush.msra.mxu0 0.0
    %2271 = vmatpush.msra.mxu0 0.0
    %2272 = vmatpush.msra.mxu0 0.0
    %v2273 = vand.u32 %v274, 4294901760
    %v2274 = vsub.f32 %v274, %v2273
    %v2275 = vand.u32 %v2274, 4294901760
    %2276 = vmatpush.msra.mxu0 %v2275
    %v2277 = vand.u32 %v62, 4294901760
    %v2278 = vsub.f32 %v62, %v2277
    %v2279 = vand.u32 %v2278, 4294901760
    %2280 = vmatpush.msra.mxu0 %v2279
    %v2281 = vand.u32 %v61, 4294901760
    %v2282 = vsub.f32 %v61, %v2281
    %v2283 = vand.u32 %v2282, 4294901760
    %2284 = vmatpush.msra.mxu0 %v2283
    %v2285 = vand.u32 %v2140, 4294901760
    %2286 = vmatmul.f32.gmra.mxu0 %v2285
    %v2287 = vpop.f32.mrf.mxu0
    %v2288 = vadd.f32 %v2258, %v2287
    %2289 = vdwg.mxu0
    %2290 = vmatpush.msra.mxu0 0.0
    %2291 = vmatpush.msra.mxu0 0.0
    %2292 = vmatpush.msra.mxu0 0.0
    %2293 = vmatpush.msra.mxu0 0.0
    %2294 = vmatpush.msra.mxu0 0.0
    %2295 = vmatpush.msra.mxu0 0.0
    %2296 = vmatpush.msra.mxu0 0.0
    %2297 = vmatpush.msra.mxu0 0.0
    %2298 = vmatpush.msra.mxu0 0.0
    %2299 = vmatpush.msra.mxu0 0.0
    %2300 = vmatpush.msra.mxu0 0.0
    %2301 = vmatpush.msra.mxu0 0.0
    %2302 = vmatpush.msra.mxu0 0.0
    %v2303 = vand.u32 %v274, 4294901760
    %2304 = vmatpush.msra.mxu0 %v2303
    %v2305 = vand.u32 %v62, 4294901760
    %2306 = vmatpush.msra.mxu0 %v2305
    %v2307 = vand.u32 %v61, 4294901760
    %2308 = vmatpush.msra.mxu0 %v2307
    %v2309 = vand.u32 %v2140, 4294901760
    %2310 = vmatmul.f32.gmra.mxu0 %v2309
    %v2311 = vpop.f32.mrf.mxu0
    %v2312 = vadd.f32 %v2288, %v2311
    %2313 = vdwg.mxu0
    %v2314 = vadd.f32 %v266, %v2312
    %v2315 = vxor.u32 %v2314, 2147483648
    %v2316 = vmul.f32 %v2315, 1.442695
    %v2317 = vpow.pop %v2316
    %v2318 = vadd.f32 %v2317, 1.0
    %v2319 = vrcp.pop %v2318
    %v2320 = vmul.f32 %v2318, %v2319
    %v2321 = vsub.f32 1.0, %v2320
    %v2322 = vmul.f32 %v2319, %v2321
    %v2323 = vadd.f32 %v2319, %v2322
    %vm2324 = vweird.f32 %v2318
    %vm2325 = vweird.f32 %v2319
    %vm2326 = vmor %vm2324, %vm2325
    %v2327 = vsel %vm2326, %v2319, %v2323
    %v2328 = vand.u32 2147483647, %v2318
    %vm2329 = vcmp.eq.f32.partialorder %v2328, 8.507059e+37
    %v2330 = vand.u32 %v2318, 2147483648
    %v2331 = vor.u32 1.1754944e-38, %v2330
    %v2332 = vsel %vm2329, %v2331, %v2327
    %v2333 = vmul.f32 1.0, %v2332
    %v2334 = vtanh.pop %v2314
    %v2336 = vrot.slane %v1881, 6
    %v2338 = vmul.f32 %v2333, %v2336
    %2340 = vrot.lane.b32.xlu0 %v2334, 88
    %v2341 = vpop.permute.xlu0 %2340
    %v2343 = vmul.f32 %v2333, %v2341
    %2345 = vrot.lane.b32.xlu0 %v2343, 20
    %v2346 = vpop.permute.xlu0 %2345
    %v2348 = vadd.f32 %v2338, %v2346
    %v2349 = vtanh.pop %v2348
    %2351 = vrot.lane.b32.xlu0 %v2349, 40
    %v2352 = vpop.permute.xlu0 %2351
    %v2354 = vmul.f32 %v2333, %v2352
    %2356 = vrot.lane.b32.xlu0 %v2354, 68
    %v2357 = vpop.permute.xlu0 %2356
    %2360 = vrot.lane.b32.xlu0 %v2136, 88
    %v2361 = vpop.permute.xlu0 %2360
    %v2363 = vsel %vm268, %v2357, %v2361
    %v2365 = vsel %vm491, %v2363, 0
    %2367 = vmatpush.msra.mxu0 0.0
    %2368 = vmatpush.msra.mxu0 0.0
    %2369 = vmatpush.msra.mxu0 0.0
    %2370 = vmatpush.msra.mxu0 0.0
    %2371 = vmatpush.msra.mxu0 0.0
    %2372 = vmatpush.msra.mxu0 0.0
    %2373 = vmatpush.msra.mxu0 0.0
    %2374 = vmatpush.msra.mxu0 0.0
    %2375 = vmatpush.msra.mxu0 0.0
    %2376 = vmatpush.msra.mxu0 0.0
    %2377 = vmatpush.msra.mxu0 0.0
    %v2378 = vand.u32 %v68, 4294901760
    %2379 = vmatpush.msra.mxu0 %v2378
    %v2380 = vand.u32 %v67, 4294901760
    %2381 = vmatpush.msra.mxu0 %v2380
    %v2382 = vand.u32 %v66, 4294901760
    %2383 = vmatpush.msra.mxu0 %v2382
    %v2384 = vand.u32 %v65, 4294901760
    %2385 = vmatpush.msra.mxu0 %v2384
    %v2386 = vand.u32 %v64, 4294901760
    %2387 = vmatpush.msra.mxu0 %v2386
    %v2388 = vand.u32 %v2365, 4294901760
    %v2389 = vsub.f32 %v2365, %v2388
    %v2390 = vand.u32 %v2389, 4294901760
    %v2391 = vsub.f32 %v2389, %v2390
    %v2392 = vand.u32 %v2391, 4294901760
    %2393 = vmatmul.f32.gmra.mxu0 %v2392
    %v2394 = vpop.f32.mrf.mxu0
    %v2395 = vadd.f32 %v71, %v2394
    %2396 = vdwg.mxu0
    %2397 = vmatpush.msra.mxu0 0.0
    %2398 = vmatpush.msra.mxu0 0.0
    %2399 = vmatpush.msra.mxu0 0.0
    %2400 = vmatpush.msra.mxu0 0.0
    %2401 = vmatpush.msra.mxu0 0.0
    %2402 = vmatpush.msra.mxu0 0.0
    %2403 = vmatpush.msra.mxu0 0.0
    %2404 = vmatpush.msra.mxu0 0.0
    %2405 = vmatpush.msra.mxu0 0.0
    %2406 = vmatpush.msra.mxu0 0.0
    %2407 = vmatpush.msra.mxu0 0.0
    %v2408 = vand.u32 %v68, 4294901760
    %v2409 = vsub.f32 %v68, %v2408
    %v2410 = vand.u32 %v2409, 4294901760
    %v2411 = vsub.f32 %v2409, %v2410
    %v2412 = vand.u32 %v2411, 4294901760
    %2413 = vmatpush.msra.mxu0 %v2412
    %v2414 = vand.u32 %v67, 4294901760
    %v2415 = vsub.f32 %v67, %v2414
    %v2416 = vand.u32 %v2415, 4294901760
    %v2417 = vsub.f32 %v2415, %v2416
    %v2418 = vand.u32 %v2417, 4294901760
    %2419 = vmatpush.msra.mxu0 %v2418
    %v2420 = vand.u32 %v66, 4294901760
    %v2421 = vsub.f32 %v66, %v2420
    %v2422 = vand.u32 %v2421, 4294901760
    %v2423 = vsub.f32 %v2421, %v2422
    %v2424 = vand.u32 %v2423, 4294901760
    %2425 = vmatpush.msra.mxu0 %v2424
    %v2426 = vand.u32 %v65, 4294901760
    %v2427 = vsub.f32 %v65, %v2426
    %v2428 = vand.u32 %v2427, 4294901760
    %v2429 = vsub.f32 %v2427, %v2428
    %v2430 = vand.u32 %v2429, 4294901760
    %2431 = vmatpush.msra.mxu0 %v2430
    %v2432 = vand.u32 %v64, 4294901760
    %v2433 = vsub.f32 %v64, %v2432
    %v2434 = vand.u32 %v2433, 4294901760
    %v2435 = vsub.f32 %v2433, %v2434
    %v2436 = vand.u32 %v2435, 4294901760
    %2437 = vmatpush.msra.mxu0 %v2436
    %v2438 = vand.u32 %v2365, 4294901760
    %2439 = vmatmul.f32.gmra.mxu0 %v2438
    %v2440 = vpop.f32.mrf.mxu0
    %v2441 = vadd.f32 %v2395, %v2440
    %2442 = vdwg.mxu0
    %2443 = vmatpush.msra.mxu0 0.0
    %2444 = vmatpush.msra.mxu0 0.0
    %2445 = vmatpush.msra.mxu0 0.0
    %2446 = vmatpush.msra.mxu0 0.0
    %2447 = vmatpush.msra.mxu0 0.0
    %2448 = vmatpush.msra.mxu0 0.0
    %2449 = vmatpush.msra.mxu0 0.0
    %2450 = vmatpush.msra.mxu0 0.0
    %2451 = vmatpush.msra.mxu0 0.0
    %2452 = vmatpush.msra.mxu0 0.0
    %2453 = vmatpush.msra.mxu0 0.0
    %v2454 = vand.u32 %v68, 4294901760
    %v2455 = vsub.f32 %v68, %v2454
    %2456 = vmatpush.msra.mxu0 %v2455
    %v2457 = vand.u32 %v67, 4294901760
    %v2458 = vsub.f32 %v67, %v2457
    %2459 = vmatpush.msra.mxu0 %v2458
    %v2460 = vand.u32 %v66, 4294901760
    %v2461 = vsub.f32 %v66, %v2460
    %2462 = vmatpush.msra.mxu0 %v2461
    %v2463 = vand.u32 %v65, 4294901760
    %v2464 = vsub.f32 %v65, %v2463
    %2465 = vmatpush.msra.mxu0 %v2464
    %v2466 = vand.u32 %v64, 4294901760
    %v2467 = vsub.f32 %v64, %v2466
    %2468 = vmatpush.msra.mxu0 %v2467
    %v2469 = vand.u32 %v2365, 4294901760
    %v2470 = vsub.f32 %v2365, %v2469
    %2471 = vmatmul.f32.gmra.mxu0 %v2470
    %v2472 = vpop.f32.mrf.mxu0
    %v2473 = vadd.f32 %v2441, %v2472
    %2474 = vdwg.mxu0
    %2475 = vmatpush.msra.mxu0 0.0
    %2476 = vmatpush.msra.mxu0 0.0
    %2477 = vmatpush.msra.mxu0 0.0
    %2478 = vmatpush.msra.mxu0 0.0
    %2479 = vmatpush.msra.mxu0 0.0
    %2480 = vmatpush.msra.mxu0 0.0
    %2481 = vmatpush.msra.mxu0 0.0
    %2482 = vmatpush.msra.mxu0 0.0
    %2483 = vmatpush.msra.mxu0 0.0
    %2484 = vmatpush.msra.mxu0 0.0
    %2485 = vmatpush.msra.mxu0 0.0
    %v2486 = vand.u32 %v68, 4294901760
    %2487 = vmatpush.msra.mxu0 %v2486
    %v2488 = vand.u32 %v67, 4294901760
    %2489 = vmatpush.msra.mxu0 %v2488
    %v2490 = vand.u32 %v66, 4294901760
    %2491 = vmatpush.msra.mxu0 %v2490
    %v2492 = vand.u32 %v65, 4294901760
    %2493 = vmatpush.msra.mxu0 %v2492
    %v2494 = vand.u32 %v64, 4294901760
    %2495 = vmatpush.msra.mxu0 %v2494
    %v2496 = vand.u32 %v2365, 4294901760
    %v2497 = vsub.f32 %v2365, %v2496
    %v2498 = vand.u32 %v2497, 4294901760
    %2499 = vmatmul.f32.gmra.mxu0 %v2498
    %v2500 = vpop.f32.mrf.mxu0
    %v2501 = vadd.f32 %v2473, %v2500
    %2502 = vdwg.mxu0
    %2503 = vmatpush.msra.mxu0 0.0
    %2504 = vmatpush.msra.mxu0 0.0
    %2505 = vmatpush.msra.mxu0 0.0
    %2506 = vmatpush.msra.mxu0 0.0
    %2507 = vmatpush.msra.mxu0 0.0
    %2508 = vmatpush.msra.mxu0 0.0
    %2509 = vmatpush.msra.mxu0 0.0
    %2510 = vmatpush.msra.mxu0 0.0
    %2511 = vmatpush.msra.mxu0 0.0
    %2512 = vmatpush.msra.mxu0 0.0
    %2513 = vmatpush.msra.mxu0 0.0
    %v2514 = vand.u32 %v68, 4294901760
    %v2515 = vsub.f32 %v68, %v2514
    %v2516 = vand.u32 %v2515, 4294901760
    %2517 = vmatpush.msra.mxu0 %v2516
    %v2518 = vand.u32 %v67, 4294901760
    %v2519 = vsub.f32 %v67, %v2518
    %v2520 = vand.u32 %v2519, 4294901760
    %2521 = vmatpush.msra.mxu0 %v2520
    %v2522 = vand.u32 %v66, 4294901760
    %v2523 = vsub.f32 %v66, %v2522
    %v2524 = vand.u32 %v2523, 4294901760
    %2525 = vmatpush.msra.mxu0 %v2524
    %v2526 = vand.u32 %v65, 4294901760
    %v2527 = vsub.f32 %v65, %v2526
    %v2528 = vand.u32 %v2527, 4294901760
    %2529 = vmatpush.msra.mxu0 %v2528
    %v2530 = vand.u32 %v64, 4294901760
    %v2531 = vsub.f32 %v64, %v2530
    %v2532 = vand.u32 %v2531, 4294901760
    %2533 = vmatpush.msra.mxu0 %v2532
    %v2534 = vand.u32 %v2365, 4294901760
    %2535 = vmatmul.f32.gmra.mxu0 %v2534
    %v2536 = vpop.f32.mrf.mxu0
    %v2537 = vadd.f32 %v2501, %v2536
    %2538 = vdwg.mxu0
    %2539 = vmatpush.msra.mxu0 0.0
    %2540 = vmatpush.msra.mxu0 0.0
    %2541 = vmatpush.msra.mxu0 0.0
    %2542 = vmatpush.msra.mxu0 0.0
    %2543 = vmatpush.msra.mxu0 0.0
    %2544 = vmatpush.msra.mxu0 0.0
    %2545 = vmatpush.msra.mxu0 0.0
    %2546 = vmatpush.msra.mxu0 0.0
    %2547 = vmatpush.msra.mxu0 0.0
    %2548 = vmatpush.msra.mxu0 0.0
    %2549 = vmatpush.msra.mxu0 0.0
    %v2550 = vand.u32 %v68, 4294901760
    %2551 = vmatpush.msra.mxu0 %v2550
    %v2552 = vand.u32 %v67, 4294901760
    %2553 = vmatpush.msra.mxu0 %v2552
    %v2554 = vand.u32 %v66, 4294901760
    %2555 = vmatpush.msra.mxu0 %v2554
    %v2556 = vand.u32 %v65, 4294901760
    %2557 = vmatpush.msra.mxu0 %v2556
    %v2558 = vand.u32 %v64, 4294901760
    %2559 = vmatpush.msra.mxu0 %v2558
    %v2560 = vand.u32 %v2365, 4294901760
    %2561 = vmatmul.f32.gmra.mxu0 %v2560
    %v2562 = vpop.f32.mrf.mxu0
    %v2563 = vadd.f32 %v2537, %v2562
    %2564 = vdwg.mxu0
    %v2565 = vxor.u32 %v2563, 2147483648
    %v2566 = vmul.f32 %v2565, 1.442695
    %v2567 = vpow.pop %v2566
    %v2568 = vadd.f32 %v2567, 1.0
    %v2569 = vrcp.pop %v2568
    %v2570 = vmul.f32 %v2568, %v2569
    %v2571 = vsub.f32 1.0, %v2570
    %v2572 = vmul.f32 %v2569, %v2571
    %v2573 = vadd.f32 %v2569, %v2572
    %vm2574 = vweird.f32 %v2568
    %vm2575 = vweird.f32 %v2569
    %vm2576 = vmor %vm2574, %vm2575
    %v2577 = vsel %vm2576, %v2569, %v2573
    %v2578 = vand.u32 2147483647, %v2568
    %vm2579 = vcmp.eq.f32.partialorder %v2578, 8.507059e+37
    %v2580 = vand.u32 %v2568, 2147483648
    %v2581 = vor.u32 1.1754944e-38, %v2580
    %v2582 = vsel %vm2579, %v2581, %v2577
    %v2583 = vmul.f32 1.0, %v2582
    %v2584 = vtanh.pop %v2563
    %v2585 = vmul.f32 %v2583, %v2130
    %2587 = vrot.lane.b32.xlu0 %v2584, 88
    %v2588 = vpop.permute.xlu0 %2587
    %v2590 = vmul.f32 %v2583, %v2588
    %2592 = vrot.lane.b32.xlu0 %v2590, 20
    %v2593 = vpop.permute.xlu0 %2592
    %v2595 = vadd.f32 %v2585, %v2593
    %v2596 = vtanh.pop %v2595
    %2598 = vrot.lane.b32.xlu0 %v2596, 40
    %v2599 = vpop.permute.xlu0 %2598
    %v2601 = vmul.f32 %v2583, %v2599
    %v2602 = vsel %vm268, %v2357, 0
    %2604 = vmatpush.msra.mxu0 0.0
    %2605 = vmatpush.msra.mxu0 0.0
    %2606 = vmatpush.msra.mxu0 0.0
    %2607 = vmatpush.msra.mxu0 0.0
    %2608 = vmatpush.msra.mxu0 0.0
    %2609 = vmatpush.msra.mxu0 0.0
    %2610 = vmatpush.msra.mxu0 0.0
    %2611 = vmatpush.msra.mxu0 0.0
    %2612 = vmatpush.msra.mxu0 0.0
    %2613 = vmatpush.msra.mxu0 0.0
    %2614 = vmatpush.msra.mxu0 0.0
    %2615 = vmatpush.msra.mxu0 0.0
    %2616 = vmatpush.msra.mxu0 0.0
    %v2617 = vand.u32 %v274, 4294901760
    %2618 = vmatpush.msra.mxu0 %v2617
    %v2619 = vand.u32 %v62, 4294901760
    %2620 = vmatpush.msra.mxu0 %v2619
    %v2621 = vand.u32 %v61, 4294901760
    %2622 = vmatpush.msra.mxu0 %v2621
    %v2623 = vand.u32 %v2602, 4294901760
    %v2624 = vsub.f32 %v2602, %v2623
    %v2625 = vand.u32 %v2624, 4294901760
    %v2626 = vsub.f32 %v2624, %v2625
    %v2627 = vand.u32 %v2626, 4294901760
    %2628 = vmatmul.f32.gmra.mxu0 %v2627
    %v2629 = vpop.f32.mrf.mxu0
    %v2630 = vadd.f32 0.0, %v2629
    %2631 = vdwg.mxu0
    %2632 = vmatpush.msra.mxu0 0.0
    %2633 = vmatpush.msra.mxu0 0.0
    %2634 = vmatpush.msra.mxu0 0.0
    %2635 = vmatpush.msra.mxu0 0.0
    %2636 = vmatpush.msra.mxu0 0.0
    %2637 = vmatpush.msra.mxu0 0.0
    %2638 = vmatpush.msra.mxu0 0.0
    %2639 = vmatpush.msra.mxu0 0.0
    %2640 = vmatpush.msra.mxu0 0.0
    %2641 = vmatpush.msra.mxu0 0.0
    %2642 = vmatpush.msra.mxu0 0.0
    %2643 = vmatpush.msra.mxu0 0.0
    %2644 = vmatpush.msra.mxu0 0.0
    %v2645 = vand.u32 %v274, 4294901760
    %v2646 = vsub.f32 %v274, %v2645
    %v2647 = vand.u32 %v2646, 4294901760
    %v2648 = vsub.f32 %v2646, %v2647
    %v2649 = vand.u32 %v2648, 4294901760
    %2650 = vmatpush.msra.mxu0 %v2649
    %v2651 = vand.u32 %v62, 4294901760
    %v2652 = vsub.f32 %v62, %v2651
    %v2653 = vand.u32 %v2652, 4294901760
    %v2654 = vsub.f32 %v2652, %v2653
    %v2655 = vand.u32 %v2654, 4294901760
    %2656 = vmatpush.msra.mxu0 %v2655
    %v2657 = vand.u32 %v61, 4294901760
    %v2658 = vsub.f32 %v61, %v2657
    %v2659 = vand.u32 %v2658, 4294901760
    %v2660 = vsub.f32 %v2658, %v2659
    %v2661 = vand.u32 %v2660, 4294901760
    %2662 = vmatpush.msra.mxu0 %v2661
    %v2663 = vand.u32 %v2602, 4294901760
    %2664 = vmatmul.f32.gmra.mxu0 %v2663
    %v2665 = vpop.f32.mrf.mxu0
    %v2666 = vadd.f32 %v2630, %v2665
    %2667 = vdwg.mxu0
    %2668 = vmatpush.msra.mxu0 0.0
    %2669 = vmatpush.msra.mxu0 0.0
    %2670 = vmatpush.msra.mxu0 0.0
    %2671 = vmatpush.msra.mxu0 0.0
    %2672 = vmatpush.msra.mxu0 0.0
    %2673 = vmatpush.msra.mxu0 0.0
    %2674 = vmatpush.msra.mxu0 0.0
    %2675 = vmatpush.msra.mxu0 0.0
    %2676 = vmatpush.msra.mxu0 0.0
    %2677 = vmatpush.msra.mxu0 0.0
    %2678 = vmatpush.msra.mxu0 0.0
    %2679 = vmatpush.msra.mxu0 0.0
    %2680 = vmatpush.msra.mxu0 0.0
    %v2681 = vand.u32 %v274, 4294901760
    %v2682 = vsub.f32 %v274, %v2681
    %2683 = vmatpush.msra.mxu0 %v2682
    %v2684 = vand.u32 %v62, 4294901760
    %v2685 = vsub.f32 %v62, %v2684
    %2686 = vmatpush.msra.mxu0 %v2685
    %v2687 = vand.u32 %v61, 4294901760
    %v2688 = vsub.f32 %v61, %v2687
    %2689 = vmatpush.msra.mxu0 %v2688
    %v2690 = vand.u32 %v2602, 4294901760
    %v2691 = vsub.f32 %v2602, %v2690
    %2692 = vmatmul.f32.gmra.mxu0 %v2691
    %v2693 = vpop.f32.mrf.mxu0
    %v2694 = vadd.f32 %v2666, %v2693
    %2695 = vdwg.mxu0
    %2696 = vmatpush.msra.mxu0 0.0
    %2697 = vmatpush.msra.mxu0 0.0
    %2698 = vmatpush.msra.mxu0 0.0
    %2699 = vmatpush.msra.mxu0 0.0
    %2700 = vmatpush.msra.mxu0 0.0
    %2701 = vmatpush.msra.mxu0 0.0
    %2702 = vmatpush.msra.mxu0 0.0
    %2703 = vmatpush.msra.mxu0 0.0
    %2704 = vmatpush.msra.mxu0 0.0
    %2705 = vmatpush.msra.mxu0 0.0
    %2706 = vmatpush.msra.mxu0 0.0
    %2707 = vmatpush.msra.mxu0 0.0
    %2708 = vmatpush.msra.mxu0 0.0
    %v2709 = vand.u32 %v274, 4294901760
    %2710 = vmatpush.msra.mxu0 %v2709
    %v2711 = vand.u32 %v62, 4294901760
    %2712 = vmatpush.msra.mxu0 %v2711
    %v2713 = vand.u32 %v61, 4294901760
    %2714 = vmatpush.msra.mxu0 %v2713
    %v2715 = vand.u32 %v2602, 4294901760
    %v2716 = vsub.f32 %v2602, %v2715
    %v2717 = vand.u32 %v2716, 4294901760
    %2718 = vmatmul.f32.gmra.mxu0 %v2717
    %v2719 = vpop.f32.mrf.mxu0
    %v2720 = vadd.f32 %v2694, %v2719
    %2721 = vdwg.mxu0
    %2722 = vmatpush.msra.mxu0 0.0
    %2723 = vmatpush.msra.mxu0 0.0
    %2724 = vmatpush.msra.mxu0 0.0
    %2725 = vmatpush.msra.mxu0 0.0
    %2726 = vmatpush.msra.mxu0 0.0
    %2727 = vmatpush.msra.mxu0 0.0
    %2728 = vmatpush.msra.mxu0 0.0
    %2729 = vmatpush.msra.mxu0 0.0
    %2730 = vmatpush.msra.mxu0 0.0
    %2731 = vmatpush.msra.mxu0 0.0
    %2732 = vmatpush.msra.mxu0 0.0
    %2733 = vmatpush.msra.mxu0 0.0
    %2734 = vmatpush.msra.mxu0 0.0
    %v2735 = vand.u32 %v274, 4294901760
    %v2736 = vsub.f32 %v274, %v2735
    %v2737 = vand.u32 %v2736, 4294901760
    %2738 = vmatpush.msra.mxu0 %v2737
    %v2739 = vand.u32 %v62, 4294901760
    %v2740 = vsub.f32 %v62, %v2739
    %v2741 = vand.u32 %v2740, 4294901760
    %2742 = vmatpush.msra.mxu0 %v2741
    %v2743 = vand.u32 %v61, 4294901760
    %v2744 = vsub.f32 %v61, %v2743
    %v2745 = vand.u32 %v2744, 4294901760
    %2746 = vmatpush.msra.mxu0 %v2745
    %v2747 = vand.u32 %v2602, 4294901760
    %2748 = vmatmul.f32.gmra.mxu0 %v2747
    %v2749 = vpop.f32.mrf.mxu0
    %v2750 = vadd.f32 %v2720, %v2749
    %2751 = vdwg.mxu0
    %2752 = vmatpush.msra.mxu0 0.0
    %2753 = vmatpush.msra.mxu0 0.0
    %2754 = vmatpush.msra.mxu0 0.0
    %2755 = vmatpush.msra.mxu0 0.0
    %2756 = vmatpush.msra.mxu0 0.0
    %2757 = vmatpush.msra.mxu0 0.0
    %2758 = vmatpush.msra.mxu0 0.0
    %2759 = vmatpush.msra.mxu0 0.0
    %2760 = vmatpush.msra.mxu0 0.0
    %2761 = vmatpush.msra.mxu0 0.0
    %2762 = vmatpush.msra.mxu0 0.0
    %2763 = vmatpush.msra.mxu0 0.0
    %2764 = vmatpush.msra.mxu0 0.0
    %v2765 = vand.u32 %v274, 4294901760
    %2766 = vmatpush.msra.mxu0 %v2765
    %v2767 = vand.u32 %v62, 4294901760
    %2768 = vmatpush.msra.mxu0 %v2767
    %v2769 = vand.u32 %v61, 4294901760
    %2770 = vmatpush.msra.mxu0 %v2769
    %v2771 = vand.u32 %v2602, 4294901760
    %2772 = vmatmul.f32.gmra.mxu0 %v2771
    %v2773 = vpop.f32.mrf.mxu0
    %v2774 = vadd.f32 %v2750, %v2773
    %2775 = vdwg.mxu0
    %v2777 = vrot.slane %v2774, 6
    %v2779 = vadd.f32 %v266, %v2777
    %v2780 = vxor.u32 %v2779, 2147483648
    %v2781 = vmul.f32 %v2780, 1.442695
    %v2782 = vpow.pop %v2781
    %v2783 = vadd.f32 %v2782, 1.0
    %v2784 = vrcp.pop %v2783
    %v2785 = vmul.f32 %v2783, %v2784
    %v2786 = vsub.f32 1.0, %v2785
    %v2787 = vmul.f32 %v2784, %v2786
    %v2788 = vadd.f32 %v2784, %v2787
    %vm2789 = vweird.f32 %v2783
    %vm2790 = vweird.f32 %v2784
    %vm2791 = vmor %vm2789, %vm2790
    %v2792 = vsel %vm2791, %v2784, %v2788
    %v2793 = vand.u32 2147483647, %v2783
    %vm2794 = vcmp.eq.f32.partialorder %v2793, 8.507059e+37
    %v2795 = vand.u32 %v2783, 2147483648
    %v2796 = vor.u32 1.1754944e-38, %v2795
    %v2797 = vsel %vm2794, %v2796, %v2792
    %v2798 = vmul.f32 1.0, %v2797
    %v2799 = vtanh.pop %v2779
    %v2801 = vrot.slane %v2348, 6
    %v2803 = vmul.f32 %v2798, %v2801
    %2805 = vrot.lane.b32.xlu0 %v2799, 88
    %v2806 = vpop.permute.xlu0 %2805
    %v2808 = vmul.f32 %v2798, %v2806
    %2810 = vrot.lane.b32.xlu0 %v2808, 20
    %v2811 = vpop.permute.xlu0 %2810
    %v2813 = vadd.f32 %v2803, %v2811
    %v2814 = vtanh.pop %v2813
    %2816 = vrot.lane.b32.xlu0 %v2814, 40
    %v2817 = vpop.permute.xlu0 %2816
    %v2819 = vmul.f32 %v2798, %v2817
    %2821 = vrot.lane.b32.xlu0 %v2819, 68
    %v2822 = vpop.permute.xlu0 %2821
    %v2825 = vrot.slane %v2601, 6
    %2826 = vrot.lane.b32.xlu0 %v2825, 88
    %v2827 = vpop.permute.xlu0 %2826
    %v2829 = vsel %vm268, %v2822, %v2827
    %v2831 = vrot.slane %v2829, 2
    %v2832 = vsel %vm491, %v2831, 0
    %2834 = vmatpush.msra.mxu0 0.0
    %2835 = vmatpush.msra.mxu0 0.0
    %2836 = vmatpush.msra.mxu0 0.0
    %2837 = vmatpush.msra.mxu0 0.0
    %2838 = vmatpush.msra.mxu0 0.0
    %2839 = vmatpush.msra.mxu0 0.0
    %2840 = vmatpush.msra.mxu0 0.0
    %2841 = vmatpush.msra.mxu0 0.0
    %2842 = vmatpush.msra.mxu0 0.0
    %2843 = vmatpush.msra.mxu0 0.0
    %2844 = vmatpush.msra.mxu0 0.0
    %v2845 = vand.u32 %v68, 4294901760
    %2846 = vmatpush.msra.mxu0 %v2845
    %v2847 = vand.u32 %v67, 4294901760
    %2848 = vmatpush.msra.mxu0 %v2847
    %v2849 = vand.u32 %v66, 4294901760
    %2850 = vmatpush.msra.mxu0 %v2849
    %v2851 = vand.u32 %v65, 4294901760
    %2852 = vmatpush.msra.mxu0 %v2851
    %v2853 = vand.u32 %v64, 4294901760
    %2854 = vmatpush.msra.mxu0 %v2853
    %v2855 = vand.u32 %v2832, 4294901760
    %v2856 = vsub.f32 %v2832, %v2855
    %v2857 = vand.u32 %v2856, 4294901760
    %v2858 = vsub.f32 %v2856, %v2857
    %v2859 = vand.u32 %v2858, 4294901760
    %2860 = vmatmul.f32.gmra.mxu0 %v2859
    %v2861 = vpop.f32.mrf.mxu0
    %v2862 = vadd.f32 %v71, %v2861
    %2863 = vdwg.mxu0
    %2864 = vmatpush.msra.mxu0 0.0
    %2865 = vmatpush.msra.mxu0 0.0
    %2866 = vmatpush.msra.mxu0 0.0
    %2867 = vmatpush.msra.mxu0 0.0
    %2868 = vmatpush.msra.mxu0 0.0
    %2869 = vmatpush.msra.mxu0 0.0
    %2870 = vmatpush.msra.mxu0 0.0
    %2871 = vmatpush.msra.mxu0 0.0
    %2872 = vmatpush.msra.mxu0 0.0
    %2873 = vmatpush.msra.mxu0 0.0
    %2874 = vmatpush.msra.mxu0 0.0
    %v2875 = vand.u32 %v68, 4294901760
    %v2876 = vsub.f32 %v68, %v2875
    %v2877 = vand.u32 %v2876, 4294901760
    %v2878 = vsub.f32 %v2876, %v2877
    %v2879 = vand.u32 %v2878, 4294901760
    %2880 = vmatpush.msra.mxu0 %v2879
    %v2881 = vand.u32 %v67, 4294901760
    %v2882 = vsub.f32 %v67, %v2881
    %v2883 = vand.u32 %v2882, 4294901760
    %v2884 = vsub.f32 %v2882, %v2883
    %v2885 = vand.u32 %v2884, 4294901760
    %2886 = vmatpush.msra.mxu0 %v2885
    %v2887 = vand.u32 %v66, 4294901760
    %v2888 = vsub.f32 %v66, %v2887
    %v2889 = vand.u32 %v2888, 4294901760
    %v2890 = vsub.f32 %v2888, %v2889
    %v2891 = vand.u32 %v2890, 4294901760
    %2892 = vmatpush.msra.mxu0 %v2891
    %v2893 = vand.u32 %v65, 4294901760
    %v2894 = vsub.f32 %v65, %v2893
    %v2895 = vand.u32 %v2894, 4294901760
    %v2896 = vsub.f32 %v2894, %v2895
    %v2897 = vand.u32 %v2896, 4294901760
    %2898 = vmatpush.msra.mxu0 %v2897
    %v2899 = vand.u32 %v64, 4294901760
    %v2900 = vsub.f32 %v64, %v2899
    %v2901 = vand.u32 %v2900, 4294901760
    %v2902 = vsub.f32 %v2900, %v2901
    %v2903 = vand.u32 %v2902, 4294901760
    %2904 = vmatpush.msra.mxu0 %v2903
    %v2905 = vand.u32 %v2832, 4294901760
    %2906 = vmatmul.f32.gmra.mxu0 %v2905
    %v2907 = vpop.f32.mrf.mxu0
    %v2908 = vadd.f32 %v2862, %v2907
    %2909 = vdwg.mxu0
    %2910 = vmatpush.msra.mxu0 0.0
    %2911 = vmatpush.msra.mxu0 0.0
    %2912 = vmatpush.msra.mxu0 0.0
    %2913 = vmatpush.msra.mxu0 0.0
    %2914 = vmatpush.msra.mxu0 0.0
    %2915 = vmatpush.msra.mxu0 0.0
    %2916 = vmatpush.msra.mxu0 0.0
    %2917 = vmatpush.msra.mxu0 0.0
    %2918 = vmatpush.msra.mxu0 0.0
    %2919 = vmatpush.msra.mxu0 0.0
    %2920 = vmatpush.msra.mxu0 0.0
    %v2921 = vand.u32 %v68, 4294901760
    %v2922 = vsub.f32 %v68, %v2921
    %2923 = vmatpush.msra.mxu0 %v2922
    %v2924 = vand.u32 %v67, 4294901760
    %v2925 = vsub.f32 %v67, %v2924
    %2926 = vmatpush.msra.mxu0 %v2925
    %v2927 = vand.u32 %v66, 4294901760
    %v2928 = vsub.f32 %v66, %v2927
    %2929 = vmatpush.msra.mxu0 %v2928
    %v2930 = vand.u32 %v65, 4294901760
    %v2931 = vsub.f32 %v65, %v2930
    %2932 = vmatpush.msra.mxu0 %v2931
    %v2933 = vand.u32 %v64, 4294901760
    %v2934 = vsub.f32 %v64, %v2933
    %2935 = vmatpush.msra.mxu0 %v2934
    %v2936 = vand.u32 %v2832, 4294901760
    %v2937 = vsub.f32 %v2832, %v2936
    %2938 = vmatmul.f32.gmra.mxu0 %v2937
    %v2939 = vpop.f32.mrf.mxu0
    %v2940 = vadd.f32 %v2908, %v2939
    %2941 = vdwg.mxu0
    %2942 = vmatpush.msra.mxu0 0.0
    %2943 = vmatpush.msra.mxu0 0.0
    %2944 = vmatpush.msra.mxu0 0.0
    %2945 = vmatpush.msra.mxu0 0.0
    %2946 = vmatpush.msra.mxu0 0.0
    %2947 = vmatpush.msra.mxu0 0.0
    %2948 = vmatpush.msra.mxu0 0.0
    %2949 = vmatpush.msra.mxu0 0.0
    %2950 = vmatpush.msra.mxu0 0.0
    %2951 = vmatpush.msra.mxu0 0.0
    %2952 = vmatpush.msra.mxu0 0.0
    %v2953 = vand.u32 %v68, 4294901760
    %2954 = vmatpush.msra.mxu0 %v2953
    %v2955 = vand.u32 %v67, 4294901760
    %2956 = vmatpush.msra.mxu0 %v2955
    %v2957 = vand.u32 %v66, 4294901760
    %2958 = vmatpush.msra.mxu0 %v2957
    %v2959 = vand.u32 %v65, 4294901760
    %2960 = vmatpush.msra.mxu0 %v2959
    %v2961 = vand.u32 %v64, 4294901760
    %2962 = vmatpush.msra.mxu0 %v2961
    %v2963 = vand.u32 %v2832, 4294901760
    %v2964 = vsub.f32 %v2832, %v2963
    %v2965 = vand.u32 %v2964, 4294901760
    %2966 = vmatmul.f32.gmra.mxu0 %v2965
    %v2967 = vpop.f32.mrf.mxu0
    %v2968 = vadd.f32 %v2940, %v2967
    %2969 = vdwg.mxu0
    %2970 = vmatpush.msra.mxu0 0.0
    %2971 = vmatpush.msra.mxu0 0.0
    %2972 = vmatpush.msra.mxu0 0.0
    %2973 = vmatpush.msra.mxu0 0.0
    %2974 = vmatpush.msra.mxu0 0.0
    %2975 = vmatpush.msra.mxu0 0.0
    %2976 = vmatpush.msra.mxu0 0.0
    %2977 = vmatpush.msra.mxu0 0.0
    %2978 = vmatpush.msra.mxu0 0.0
    %2979 = vmatpush.msra.mxu0 0.0
    %2980 = vmatpush.msra.mxu0 0.0
    %v2981 = vand.u32 %v68, 4294901760
    %v2982 = vsub.f32 %v68, %v2981
    %v2983 = vand.u32 %v2982, 4294901760
    %2984 = vmatpush.msra.mxu0 %v2983
    %v2985 = vand.u32 %v67, 4294901760
    %v2986 = vsub.f32 %v67, %v2985
    %v2987 = vand.u32 %v2986, 4294901760
    %2988 = vmatpush.msra.mxu0 %v2987
    %v2989 = vand.u32 %v66, 4294901760
    %v2990 = vsub.f32 %v66, %v2989
    %v2991 = vand.u32 %v2990, 4294901760
    %2992 = vmatpush.msra.mxu0 %v2991
    %v2993 = vand.u32 %v65, 4294901760
    %v2994 = vsub.f32 %v65, %v2993
    %v2995 = vand.u32 %v2994, 4294901760
    %2996 = vmatpush.msra.mxu0 %v2995
    %v2997 = vand.u32 %v64, 4294901760
    %v2998 = vsub.f32 %v64, %v2997
    %v2999 = vand.u32 %v2998, 4294901760
    %3000 = vmatpush.msra.mxu0 %v2999
    %v3001 = vand.u32 %v2832, 4294901760
    %3002 = vmatmul.f32.gmra.mxu0 %v3001
    %v3003 = vpop.f32.mrf.mxu0
    %v3004 = vadd.f32 %v2968, %v3003
    %3005 = vdwg.mxu0
    %3006 = vmatpush.msra.mxu0 0.0
    %3007 = vmatpush.msra.mxu0 0.0
    %3008 = vmatpush.msra.mxu0 0.0
    %3009 = vmatpush.msra.mxu0 0.0
    %3010 = vmatpush.msra.mxu0 0.0
    %3011 = vmatpush.msra.mxu0 0.0
    %3012 = vmatpush.msra.mxu0 0.0
    %3013 = vmatpush.msra.mxu0 0.0
    %3014 = vmatpush.msra.mxu0 0.0
    %3015 = vmatpush.msra.mxu0 0.0
    %3016 = vmatpush.msra.mxu0 0.0
    %v3017 = vand.u32 %v68, 4294901760
    %3018 = vmatpush.msra.mxu0 %v3017
    %v3019 = vand.u32 %v67, 4294901760
    %3020 = vmatpush.msra.mxu0 %v3019
    %v3021 = vand.u32 %v66, 4294901760
    %3022 = vmatpush.msra.mxu0 %v3021
    %v3023 = vand.u32 %v65, 4294901760
    %3024 = vmatpush.msra.mxu0 %v3023
    %v3025 = vand.u32 %v64, 4294901760
    %3026 = vmatpush.msra.mxu0 %v3025
    %v3027 = vand.u32 %v2832, 4294901760
    %3028 = vmatmul.f32.gmra.mxu0 %v3027
    %v3029 = vpop.f32.mrf.mxu0
    %v3030 = vadd.f32 %v3004, %v3029
    %3031 = vdwg.mxu0
    %v3032 = vxor.u32 %v3030, 2147483648
    %v3033 = vmul.f32 %v3032, 1.442695
    %v3034 = vpow.pop %v3033
    %v3035 = vadd.f32 %v3034, 1.0
    %v3036 = vrcp.pop %v3035
    %v3037 = vmul.f32 %v3035, %v3036
    %v3038 = vsub.f32 1.0, %v3037
    %v3039 = vmul.f32 %v3036, %v3038
    %v3040 = vadd.f32 %v3036, %v3039
    %vm3041 = vweird.f32 %v3035
    %vm3042 = vweird.f32 %v3036
    %vm3043 = vmor %vm3041, %vm3042
    %v3044 = vsel %vm3043, %v3036, %v3040
    %v3045 = vand.u32 2147483647, %v3035
    %vm3046 = vcmp.eq.f32.partialorder %v3045, 8.507059e+37
    %v3047 = vand.u32 %v3035, 2147483648
    %v3048 = vor.u32 1.1754944e-38, %v3047
    %v3049 = vsel %vm3046, %v3048, %v3044
    %v3050 = vmul.f32 1.0, %v3049
    %v3051 = vtanh.pop %v3030
    %v3052 = vmul.f32 %v3050, %v2595
    %3054 = vrot.lane.b32.xlu0 %v3051, 88
    %v3055 = vpop.permute.xlu0 %3054
    %v3057 = vmul.f32 %v3050, %v3055
    %3059 = vrot.lane.b32.xlu0 %v3057, 20
    %v3060 = vpop.permute.xlu0 %3059
    %v3062 = vadd.f32 %v3052, %v3060
    %v3063 = vtanh.pop %v3062
    %3065 = vrot.lane.b32.xlu0 %v3063, 40
    %v3066 = vpop.permute.xlu0 %3065
    %v3068 = vmul.f32 %v3050, %v3066
    %v3069 = vrot.slane %v2819, 2
    %3070 = vrot.lane.b32.xlu0 %v3069, 68
    %v3071 = vpop.permute.xlu0 %3070
    %v3072 = vsel %vm268, %v3071, 0
    %3074 = vmatpush.msra.mxu0 0.0
    %3075 = vmatpush.msra.mxu0 0.0
    %3076 = vmatpush.msra.mxu0 0.0
    %3077 = vmatpush.msra.mxu0 0.0
    %3078 = vmatpush.msra.mxu0 0.0
    %3079 = vmatpush.msra.mxu0 0.0
    %3080 = vmatpush.msra.mxu0 0.0
    %3081 = vmatpush.msra.mxu0 0.0
    %3082 = vmatpush.msra.mxu0 0.0
    %3083 = vmatpush.msra.mxu0 0.0
    %3084 = vmatpush.msra.mxu0 0.0
    %3085 = vmatpush.msra.mxu0 0.0
    %3086 = vmatpush.msra.mxu0 0.0
    %v3087 = vand.u32 %v274, 4294901760
    %3088 = vmatpush.msra.mxu0 %v3087
    %v3089 = vand.u32 %v62, 4294901760
    %3090 = vmatpush.msra.mxu0 %v3089
    %v3091 = vand.u32 %v61, 4294901760
    %3092 = vmatpush.msra.mxu0 %v3091
    %v3093 = vand.u32 %v3072, 4294901760
    %v3094 = vsub.f32 %v3072, %v3093
    %v3095 = vand.u32 %v3094, 4294901760
    %v3096 = vsub.f32 %v3094, %v3095
    %v3097 = vand.u32 %v3096, 4294901760
    %3098 = vmatmul.f32.gmra.mxu0 %v3097
    %v3099 = vpop.f32.mrf.mxu0
    %v3100 = vadd.f32 0.0, %v3099
    %3101 = vdwg.mxu0
    %3102 = vmatpush.msra.mxu0 0.0
    %3103 = vmatpush.msra.mxu0 0.0
    %3104 = vmatpush.msra.mxu0 0.0
    %3105 = vmatpush.msra.mxu0 0.0
    %3106 = vmatpush.msra.mxu0 0.0
    %3107 = vmatpush.msra.mxu0 0.0
    %3108 = vmatpush.msra.mxu0 0.0
    %3109 = vmatpush.msra.mxu0 0.0
    %3110 = vmatpush.msra.mxu0 0.0
    %3111 = vmatpush.msra.mxu0 0.0
    %3112 = vmatpush.msra.mxu0 0.0
    %3113 = vmatpush.msra.mxu0 0.0
    %3114 = vmatpush.msra.mxu0 0.0
    %v3115 = vand.u32 %v274, 4294901760
    %v3116 = vsub.f32 %v274, %v3115
    %v3117 = vand.u32 %v3116, 4294901760
    %v3118 = vsub.f32 %v3116, %v3117
    %v3119 = vand.u32 %v3118, 4294901760
    %3120 = vmatpush.msra.mxu0 %v3119
    %v3121 = vand.u32 %v62, 4294901760
    %v3122 = vsub.f32 %v62, %v3121
    %v3123 = vand.u32 %v3122, 4294901760
    %v3124 = vsub.f32 %v3122, %v3123
    %v3125 = vand.u32 %v3124, 4294901760
    %3126 = vmatpush.msra.mxu0 %v3125
    %v3127 = vand.u32 %v61, 4294901760
    %v3128 = vsub.f32 %v61, %v3127
    %v3129 = vand.u32 %v3128, 4294901760
    %v3130 = vsub.f32 %v3128, %v3129
    %v3131 = vand.u32 %v3130, 4294901760
    %3132 = vmatpush.msra.mxu0 %v3131
    %v3133 = vand.u32 %v3072, 4294901760
    %3134 = vmatmul.f32.gmra.mxu0 %v3133
    %v3135 = vpop.f32.mrf.mxu0
    %v3136 = vadd.f32 %v3100, %v3135
    %3137 = vdwg.mxu0
    %3138 = vmatpush.msra.mxu0 0.0
    %3139 = vmatpush.msra.mxu0 0.0
    %3140 = vmatpush.msra.mxu0 0.0
    %3141 = vmatpush.msra.mxu0 0.0
    %3142 = vmatpush.msra.mxu0 0.0
    %3143 = vmatpush.msra.mxu0 0.0
    %3144 = vmatpush.msra.mxu0 0.0
    %3145 = vmatpush.msra.mxu0 0.0
    %3146 = vmatpush.msra.mxu0 0.0
    %3147 = vmatpush.msra.mxu0 0.0
    %3148 = vmatpush.msra.mxu0 0.0
    %3149 = vmatpush.msra.mxu0 0.0
    %3150 = vmatpush.msra.mxu0 0.0
    %v3151 = vand.u32 %v274, 4294901760
    %v3152 = vsub.f32 %v274, %v3151
    %3153 = vmatpush.msra.mxu0 %v3152
    %v3154 = vand.u32 %v62, 4294901760
    %v3155 = vsub.f32 %v62, %v3154
    %3156 = vmatpush.msra.mxu0 %v3155
    %v3157 = vand.u32 %v61, 4294901760
    %v3158 = vsub.f32 %v61, %v3157
    %3159 = vmatpush.msra.mxu0 %v3158
    %v3160 = vand.u32 %v3072, 4294901760
    %v3161 = vsub.f32 %v3072, %v3160
    %3162 = vmatmul.f32.gmra.mxu0 %v3161
    %v3163 = vpop.f32.mrf.mxu0
    %v3164 = vadd.f32 %v3136, %v3163
    %3165 = vdwg.mxu0
    %3166 = vmatpush.msra.mxu0 0.0
    %3167 = vmatpush.msra.mxu0 0.0
    %3168 = vmatpush.msra.mxu0 0.0
    %3169 = vmatpush.msra.mxu0 0.0
    %3170 = vmatpush.msra.mxu0 0.0
    %3171 = vmatpush.msra.mxu0 0.0
    %3172 = vmatpush.msra.mxu0 0.0
    %3173 = vmatpush.msra.mxu0 0.0
    %3174 = vmatpush.msra.mxu0 0.0
    %3175 = vmatpush.msra.mxu0 0.0
    %3176 = vmatpush.msra.mxu0 0.0
    %3177 = vmatpush.msra.mxu0 0.0
    %3178 = vmatpush.msra.mxu0 0.0
    %v3179 = vand.u32 %v274, 4294901760
    %3180 = vmatpush.msra.mxu0 %v3179
    %v3181 = vand.u32 %v62, 4294901760
    %3182 = vmatpush.msra.mxu0 %v3181
    %v3183 = vand.u32 %v61, 4294901760
    %3184 = vmatpush.msra.mxu0 %v3183
    %v3185 = vand.u32 %v3072, 4294901760
    %v3186 = vsub.f32 %v3072, %v3185
    %v3187 = vand.u32 %v3186, 4294901760
    %3188 = vmatmul.f32.gmra.mxu0 %v3187
    %v3189 = vpop.f32.mrf.mxu0
    %v3190 = vadd.f32 %v3164, %v3189
    %3191 = vdwg.mxu0
    %3192 = vmatpush.msra.mxu0 0.0
    %3193 = vmatpush.msra.mxu0 0.0
    %3194 = vmatpush.msra.mxu0 0.0
    %3195 = vmatpush.msra.mxu0 0.0
    %3196 = vmatpush.msra.mxu0 0.0
    %3197 = vmatpush.msra.mxu0 0.0
    %3198 = vmatpush.msra.mxu0 0.0
    %3199 = vmatpush.msra.mxu0 0.0
    %3200 = vmatpush.msra.mxu0 0.0
    %3201 = vmatpush.msra.mxu0 0.0
    %3202 = vmatpush.msra.mxu0 0.0
    %3203 = vmatpush.msra.mxu0 0.0
    %3204 = vmatpush.msra.mxu0 0.0
    %v3205 = vand.u32 %v274, 4294901760
    %v3206 = vsub.f32 %v274, %v3205
    %v3207 = vand.u32 %v3206, 4294901760
    %3208 = vmatpush.msra.mxu0 %v3207
    %v3209 = vand.u32 %v62, 4294901760
    %v3210 = vsub.f32 %v62, %v3209
    %v3211 = vand.u32 %v3210, 4294901760
    %3212 = vmatpush.msra.mxu0 %v3211
    %v3213 = vand.u32 %v61, 4294901760
    %v3214 = vsub.f32 %v61, %v3213
    %v3215 = vand.u32 %v3214, 4294901760
    %3216 = vmatpush.msra.mxu0 %v3215
    %v3217 = vand.u32 %v3072, 4294901760
    %3218 = vmatmul.f32.gmra.mxu0 %v3217
    %v3219 = vpop.f32.mrf.mxu0
    %v3220 = vadd.f32 %v3190, %v3219
    %3221 = vdwg.mxu0
    %3222 = vmatpush.msra.mxu0 0.0
    %3223 = vmatpush.msra.mxu0 0.0
    %3224 = vmatpush.msra.mxu0 0.0
    %3225 = vmatpush.msra.mxu0 0.0
    %3226 = vmatpush.msra.mxu0 0.0
    %3227 = vmatpush.msra.mxu0 0.0
    %3228 = vmatpush.msra.mxu0 0.0
    %3229 = vmatpush.msra.mxu0 0.0
    %3230 = vmatpush.msra.mxu0 0.0
    %3231 = vmatpush.msra.mxu0 0.0
    %3232 = vmatpush.msra.mxu0 0.0
    %3233 = vmatpush.msra.mxu0 0.0
    %3234 = vmatpush.msra.mxu0 0.0
    %v3235 = vand.u32 %v274, 4294901760
    %3236 = vmatpush.msra.mxu0 %v3235
    %v3237 = vand.u32 %v62, 4294901760
    %3238 = vmatpush.msra.mxu0 %v3237
    %v3239 = vand.u32 %v61, 4294901760
    %3240 = vmatpush.msra.mxu0 %v3239
    %v3241 = vand.u32 %v3072, 4294901760
    %3242 = vmatmul.f32.gmra.mxu0 %v3241
    %v3243 = vpop.f32.mrf.mxu0
    %v3244 = vadd.f32 %v3220, %v3243
    %3245 = vdwg.mxu0
    %v3247 = vrot.slane %v3244, 4
    %v3249 = vadd.f32 %v266, %v3247
    %v3250 = vxor.u32 %v3249, 2147483648
    %v3251 = vmul.f32 %v3250, 1.442695
    %v3252 = vpow.pop %v3251
    %v3253 = vadd.f32 %v3252, 1.0
    %v3254 = vrcp.pop %v3253
    %v3255 = vmul.f32 %v3253, %v3254
    %v3256 = vsub.f32 1.0, %v3255
    %v3257 = vmul.f32 %v3254, %v3256
    %v3258 = vadd.f32 %v3254, %v3257
    %vm3259 = vweird.f32 %v3253
    %vm3260 = vweird.f32 %v3254
    %vm3261 = vmor %vm3259, %vm3260
    %v3262 = vsel %vm3261, %v3254, %v3258
    %v3263 = vand.u32 2147483647, %v3253
    %vm3264 = vcmp.eq.f32.partialorder %v3263, 8.507059e+37
    %v3265 = vand.u32 %v3253, 2147483648
    %v3266 = vor.u32 1.1754944e-38, %v3265
    %v3267 = vsel %vm3264, %v3266, %v3262
    %v3268 = vmul.f32 1.0, %v3267
    %v3269 = vtanh.pop %v3249
    %v3271 = vrot.slane %v2813, 6
    %v3273 = vmul.f32 %v3268, %v3271
    %3275 = vrot.lane.b32.xlu0 %v3269, 88
    %v3276 = vpop.permute.xlu0 %3275
    %v3278 = vmul.f32 %v3268, %v3276
    %3280 = vrot.lane.b32.xlu0 %v3278, 20
    %v3281 = vpop.permute.xlu0 %3280
    %v3283 = vadd.f32 %v3273, %v3281
    %v3284 = vtanh.pop %v3283
    %3286 = vrot.lane.b32.xlu0 %v3284, 40
    %v3287 = vpop.permute.xlu0 %3286
    %v3289 = vmul.f32 %v3268, %v3287
    %3291 = vrot.lane.b32.xlu0 %v3289, 68
    %v3292 = vpop.permute.xlu0 %3291
    %v3295 = vrot.slane %v3068, 4
    %3296 = vrot.lane.b32.xlu0 %v3295, 88
    %v3297 = vpop.permute.xlu0 %3296
    %v3299 = vsel %vm268, %v3292, %v3297
    %v3301 = vrot.slane %v3299, 4
    %v3302 = vsel %vm491, %v3301, 0
    %3304 = vmatpush.msra.mxu0 0.0
    %3305 = vmatpush.msra.mxu0 0.0
    %3306 = vmatpush.msra.mxu0 0.0
    %3307 = vmatpush.msra.mxu0 0.0
    %3308 = vmatpush.msra.mxu0 0.0
    %3309 = vmatpush.msra.mxu0 0.0
    %3310 = vmatpush.msra.mxu0 0.0
    %3311 = vmatpush.msra.mxu0 0.0
    %3312 = vmatpush.msra.mxu0 0.0
    %3313 = vmatpush.msra.mxu0 0.0
    %3314 = vmatpush.msra.mxu0 0.0
    %v3315 = vand.u32 %v68, 4294901760
    %3316 = vmatpush.msra.mxu0 %v3315
    %v3317 = vand.u32 %v67, 4294901760
    %3318 = vmatpush.msra.mxu0 %v3317
    %v3319 = vand.u32 %v66, 4294901760
    %3320 = vmatpush.msra.mxu0 %v3319
    %v3321 = vand.u32 %v65, 4294901760
    %3322 = vmatpush.msra.mxu0 %v3321
    %v3323 = vand.u32 %v64, 4294901760
    %3324 = vmatpush.msra.mxu0 %v3323
    %v3325 = vand.u32 %v3302, 4294901760
    %v3326 = vsub.f32 %v3302, %v3325
    %v3327 = vand.u32 %v3326, 4294901760
    %v3328 = vsub.f32 %v3326, %v3327
    %v3329 = vand.u32 %v3328, 4294901760
    %3330 = vmatmul.f32.gmra.mxu0 %v3329
    %v3331 = vpop.f32.mrf.mxu0
    %v3332 = vadd.f32 %v71, %v3331
    %3333 = vdwg.mxu0
    %3334 = vmatpush.msra.mxu0 0.0
    %3335 = vmatpush.msra.mxu0 0.0
    %3336 = vmatpush.msra.mxu0 0.0
    %3337 = vmatpush.msra.mxu0 0.0
    %3338 = vmatpush.msra.mxu0 0.0
    %3339 = vmatpush.msra.mxu0 0.0
    %3340 = vmatpush.msra.mxu0 0.0
    %3341 = vmatpush.msra.mxu0 0.0
    %3342 = vmatpush.msra.mxu0 0.0
    %3343 = vmatpush.msra.mxu0 0.0
    %3344 = vmatpush.msra.mxu0 0.0
    %v3345 = vand.u32 %v68, 4294901760
    %v3346 = vsub.f32 %v68, %v3345
    %v3347 = vand.u32 %v3346, 4294901760
    %v3348 = vsub.f32 %v3346, %v3347
    %v3349 = vand.u32 %v3348, 4294901760
    %3350 = vmatpush.msra.mxu0 %v3349
    %v3351 = vand.u32 %v67, 4294901760
    %v3352 = vsub.f32 %v67, %v3351
    %v3353 = vand.u32 %v3352, 4294901760
    %v3354 = vsub.f32 %v3352, %v3353
    %v3355 = vand.u32 %v3354, 4294901760
    %3356 = vmatpush.msra.mxu0 %v3355
    %v3357 = vand.u32 %v66, 4294901760
    %v3358 = vsub.f32 %v66, %v3357
    %v3359 = vand.u32 %v3358, 4294901760
    %v3360 = vsub.f32 %v3358, %v3359
    %v3361 = vand.u32 %v3360, 4294901760
    %3362 = vmatpush.msra.mxu0 %v3361
    %v3363 = vand.u32 %v65, 4294901760
    %v3364 = vsub.f32 %v65, %v3363
    %v3365 = vand.u32 %v3364, 4294901760
    %v3366 = vsub.f32 %v3364, %v3365
    %v3367 = vand.u32 %v3366, 4294901760
    %3368 = vmatpush.msra.mxu0 %v3367
    %v3369 = vand.u32 %v64, 4294901760
    %v3370 = vsub.f32 %v64, %v3369
    %v3371 = vand.u32 %v3370, 4294901760
    %v3372 = vsub.f32 %v3370, %v3371
    %v3373 = vand.u32 %v3372, 4294901760
    %3374 = vmatpush.msra.mxu0 %v3373
    %v3375 = vand.u32 %v3302, 4294901760
    %3376 = vmatmul.f32.gmra.mxu0 %v3375
    %v3377 = vpop.f32.mrf.mxu0
    %v3378 = vadd.f32 %v3332, %v3377
    %3379 = vdwg.mxu0
    %3380 = vmatpush.msra.mxu0 0.0
    %3381 = vmatpush.msra.mxu0 0.0
    %3382 = vmatpush.msra.mxu0 0.0
    %3383 = vmatpush.msra.mxu0 0.0
    %3384 = vmatpush.msra.mxu0 0.0
    %3385 = vmatpush.msra.mxu0 0.0
    %3386 = vmatpush.msra.mxu0 0.0
    %3387 = vmatpush.msra.mxu0 0.0
    %3388 = vmatpush.msra.mxu0 0.0
    %3389 = vmatpush.msra.mxu0 0.0
    %3390 = vmatpush.msra.mxu0 0.0
    %v3391 = vand.u32 %v68, 4294901760
    %v3392 = vsub.f32 %v68, %v3391
    %3393 = vmatpush.msra.mxu0 %v3392
    %v3394 = vand.u32 %v67, 4294901760
    %v3395 = vsub.f32 %v67, %v3394
    %3396 = vmatpush.msra.mxu0 %v3395
    %v3397 = vand.u32 %v66, 4294901760
    %v3398 = vsub.f32 %v66, %v3397
    %3399 = vmatpush.msra.mxu0 %v3398
    %v3400 = vand.u32 %v65, 4294901760
    %v3401 = vsub.f32 %v65, %v3400
    %3402 = vmatpush.msra.mxu0 %v3401
    %v3403 = vand.u32 %v64, 4294901760
    %v3404 = vsub.f32 %v64, %v3403
    %3405 = vmatpush.msra.mxu0 %v3404
    %v3406 = vand.u32 %v3302, 4294901760
    %v3407 = vsub.f32 %v3302, %v3406
    %3408 = vmatmul.f32.gmra.mxu0 %v3407
    %v3409 = vpop.f32.mrf.mxu0
    %v3410 = vadd.f32 %v3378, %v3409
    %3411 = vdwg.mxu0
    %3412 = vmatpush.msra.mxu0 0.0
    %3413 = vmatpush.msra.mxu0 0.0
    %3414 = vmatpush.msra.mxu0 0.0
    %3415 = vmatpush.msra.mxu0 0.0
    %3416 = vmatpush.msra.mxu0 0.0
    %3417 = vmatpush.msra.mxu0 0.0
    %3418 = vmatpush.msra.mxu0 0.0
    %3419 = vmatpush.msra.mxu0 0.0
    %3420 = vmatpush.msra.mxu0 0.0
    %3421 = vmatpush.msra.mxu0 0.0
    %3422 = vmatpush.msra.mxu0 0.0
    %v3423 = vand.u32 %v68, 4294901760
    %3424 = vmatpush.msra.mxu0 %v3423
    %v3425 = vand.u32 %v67, 4294901760
    %3426 = vmatpush.msra.mxu0 %v3425
    %v3427 = vand.u32 %v66, 4294901760
    %3428 = vmatpush.msra.mxu0 %v3427
    %v3429 = vand.u32 %v65, 4294901760
    %3430 = vmatpush.msra.mxu0 %v3429
    %v3431 = vand.u32 %v64, 4294901760
    %3432 = vmatpush.msra.mxu0 %v3431
    %v3433 = vand.u32 %v3302, 4294901760
    %v3434 = vsub.f32 %v3302, %v3433
    %v3435 = vand.u32 %v3434, 4294901760
    %3436 = vmatmul.f32.gmra.mxu0 %v3435
    %v3437 = vpop.f32.mrf.mxu0
    %v3438 = vadd.f32 %v3410, %v3437
    %3439 = vdwg.mxu0
    %3440 = vmatpush.msra.mxu0 0.0
    %3441 = vmatpush.msra.mxu0 0.0
    %3442 = vmatpush.msra.mxu0 0.0
    %3443 = vmatpush.msra.mxu0 0.0
    %3444 = vmatpush.msra.mxu0 0.0
    %3445 = vmatpush.msra.mxu0 0.0
    %3446 = vmatpush.msra.mxu0 0.0
    %3447 = vmatpush.msra.mxu0 0.0
    %3448 = vmatpush.msra.mxu0 0.0
    %3449 = vmatpush.msra.mxu0 0.0
    %3450 = vmatpush.msra.mxu0 0.0
    %v3451 = vand.u32 %v68, 4294901760
    %v3452 = vsub.f32 %v68, %v3451
    %v3453 = vand.u32 %v3452, 4294901760
    %3454 = vmatpush.msra.mxu0 %v3453
    %v3455 = vand.u32 %v67, 4294901760
    %v3456 = vsub.f32 %v67, %v3455
    %v3457 = vand.u32 %v3456, 4294901760
    %3458 = vmatpush.msra.mxu0 %v3457
    %v3459 = vand.u32 %v66, 4294901760
    %v3460 = vsub.f32 %v66, %v3459
    %v3461 = vand.u32 %v3460, 4294901760
    %3462 = vmatpush.msra.mxu0 %v3461
    %v3463 = vand.u32 %v65, 4294901760
    %v3464 = vsub.f32 %v65, %v3463
    %v3465 = vand.u32 %v3464, 4294901760
    %3466 = vmatpush.msra.mxu0 %v3465
    %v3467 = vand.u32 %v64, 4294901760
    %v3468 = vsub.f32 %v64, %v3467
    %v3469 = vand.u32 %v3468, 4294901760
    %3470 = vmatpush.msra.mxu0 %v3469
    %v3471 = vand.u32 %v3302, 4294901760
    %3472 = vmatmul.f32.gmra.mxu0 %v3471
    %v3473 = vpop.f32.mrf.mxu0
    %v3474 = vadd.f32 %v3438, %v3473
    %3475 = vdwg.mxu0
    %3476 = vmatpush.msra.mxu0 0.0
    %3477 = vmatpush.msra.mxu0 0.0
    %3478 = vmatpush.msra.mxu0 0.0
    %3479 = vmatpush.msra.mxu0 0.0
    %3480 = vmatpush.msra.mxu0 0.0
    %3481 = vmatpush.msra.mxu0 0.0
    %3482 = vmatpush.msra.mxu0 0.0
    %3483 = vmatpush.msra.mxu0 0.0
    %3484 = vmatpush.msra.mxu0 0.0
    %3485 = vmatpush.msra.mxu0 0.0
    %3486 = vmatpush.msra.mxu0 0.0
    %v3487 = vand.u32 %v68, 4294901760
    %3488 = vmatpush.msra.mxu0 %v3487
    %v3489 = vand.u32 %v67, 4294901760
    %3490 = vmatpush.msra.mxu0 %v3489
    %v3491 = vand.u32 %v66, 4294901760
    %3492 = vmatpush.msra.mxu0 %v3491
    %v3493 = vand.u32 %v65, 4294901760
    %3494 = vmatpush.msra.mxu0 %v3493
    %v3495 = vand.u32 %v64, 4294901760
    %3496 = vmatpush.msra.mxu0 %v3495
    %v3497 = vand.u32 %v3302, 4294901760
    %3498 = vmatmul.f32.gmra.mxu0 %v3497
    %v3499 = vpop.f32.mrf.mxu0
    %v3500 = vadd.f32 %v3474, %v3499
    %3501 = vdwg.mxu0
    %v3502 = vxor.u32 %v3500, 2147483648
    %v3503 = vmul.f32 %v3502, 1.442695
    %v3504 = vpow.pop %v3503
    %v3505 = vadd.f32 %v3504, 1.0
    %v3506 = vrcp.pop %v3505
    %v3507 = vmul.f32 %v3505, %v3506
    %v3508 = vsub.f32 1.0, %v3507
    %v3509 = vmul.f32 %v3506, %v3508
    %v3510 = vadd.f32 %v3506, %v3509
    %vm3511 = vweird.f32 %v3505
    %vm3512 = vweird.f32 %v3506
    %vm3513 = vmor %vm3511, %vm3512
    %v3514 = vsel %vm3513, %v3506, %v3510
    %v3515 = vand.u32 2147483647, %v3505
    %vm3516 = vcmp.eq.f32.partialorder %v3515, 8.507059e+37
    %v3517 = vand.u32 %v3505, 2147483648
    %v3518 = vor.u32 1.1754944e-38, %v3517
    %v3519 = vsel %vm3516, %v3518, %v3514
    %v3520 = vmul.f32 1.0, %v3519
    %v3521 = vtanh.pop %v3500
    %v3522 = vmul.f32 %v3520, %v3062
    %3524 = vrot.lane.b32.xlu0 %v3521, 88
    %v3525 = vpop.permute.xlu0 %3524
    %v3527 = vmul.f32 %v3520, %v3525
    %3529 = vrot.lane.b32.xlu0 %v3527, 20
    %v3530 = vpop.permute.xlu0 %3529
    %v3532 = vadd.f32 %v3522, %v3530
    %v3533 = vtanh.pop %v3532
    %3535 = vrot.lane.b32.xlu0 %v3533, 40
    %v3536 = vpop.permute.xlu0 %3535
    %v3538 = vmul.f32 %v3520, %v3536
    %v3539 = vrot.slane %v3289, 4
    %3540 = vrot.lane.b32.xlu0 %v3539, 68
    %v3541 = vpop.permute.xlu0 %3540
    %v3542 = vsel %vm268, %v3541, 0
    %3544 = vmatpush.msra.mxu0 0.0
    %3545 = vmatpush.msra.mxu0 0.0
    %3546 = vmatpush.msra.mxu0 0.0
    %3547 = vmatpush.msra.mxu0 0.0
    %3548 = vmatpush.msra.mxu0 0.0
    %3549 = vmatpush.msra.mxu0 0.0
    %3550 = vmatpush.msra.mxu0 0.0
    %3551 = vmatpush.msra.mxu0 0.0
    %3552 = vmatpush.msra.mxu0 0.0
    %3553 = vmatpush.msra.mxu0 0.0
    %3554 = vmatpush.msra.mxu0 0.0
    %3555 = vmatpush.msra.mxu0 0.0
    %3556 = vmatpush.msra.mxu0 0.0
    %v3557 = vand.u32 %v274, 4294901760
    %3558 = vmatpush.msra.mxu0 %v3557
    %v3559 = vand.u32 %v62, 4294901760
    %3560 = vmatpush.msra.mxu0 %v3559
    %v3561 = vand.u32 %v61, 4294901760
    %3562 = vmatpush.msra.mxu0 %v3561
    %v3563 = vand.u32 %v3542, 4294901760
    %v3564 = vsub.f32 %v3542, %v3563
    %v3565 = vand.u32 %v3564, 4294901760
    %v3566 = vsub.f32 %v3564, %v3565
    %v3567 = vand.u32 %v3566, 4294901760
    %3568 = vmatmul.f32.gmra.mxu0 %v3567
    %v3569 = vpop.f32.mrf.mxu0
    %v3570 = vadd.f32 0.0, %v3569
    %3571 = vdwg.mxu0
    %3572 = vmatpush.msra.mxu0 0.0
    %3573 = vmatpush.msra.mxu0 0.0
    %3574 = vmatpush.msra.mxu0 0.0
    %3575 = vmatpush.msra.mxu0 0.0
    %3576 = vmatpush.msra.mxu0 0.0
    %3577 = vmatpush.msra.mxu0 0.0
    %3578 = vmatpush.msra.mxu0 0.0
    %3579 = vmatpush.msra.mxu0 0.0
    %3580 = vmatpush.msra.mxu0 0.0
    %3581 = vmatpush.msra.mxu0 0.0
    %3582 = vmatpush.msra.mxu0 0.0
    %3583 = vmatpush.msra.mxu0 0.0
    %3584 = vmatpush.msra.mxu0 0.0
    %v3585 = vand.u32 %v274, 4294901760
    %v3586 = vsub.f32 %v274, %v3585
    %v3587 = vand.u32 %v3586, 4294901760
    %v3588 = vsub.f32 %v3586, %v3587
    %v3589 = vand.u32 %v3588, 4294901760
    %3590 = vmatpush.msra.mxu0 %v3589
    %v3591 = vand.u32 %v62, 4294901760
    %v3592 = vsub.f32 %v62, %v3591
    %v3593 = vand.u32 %v3592, 4294901760
    %v3594 = vsub.f32 %v3592, %v3593
    %v3595 = vand.u32 %v3594, 4294901760
    %3596 = vmatpush.msra.mxu0 %v3595
    %v3597 = vand.u32 %v61, 4294901760
    %v3598 = vsub.f32 %v61, %v3597
    %v3599 = vand.u32 %v3598, 4294901760
    %v3600 = vsub.f32 %v3598, %v3599
    %v3601 = vand.u32 %v3600, 4294901760
    %3602 = vmatpush.msra.mxu0 %v3601
    %v3603 = vand.u32 %v3542, 4294901760
    %3604 = vmatmul.f32.gmra.mxu0 %v3603
    %v3605 = vpop.f32.mrf.mxu0
    %v3606 = vadd.f32 %v3570, %v3605
    %3607 = vdwg.mxu0
    %3608 = vmatpush.msra.mxu0 0.0
    %3609 = vmatpush.msra.mxu0 0.0
    %3610 = vmatpush.msra.mxu0 0.0
    %3611 = vmatpush.msra.mxu0 0.0
    %3612 = vmatpush.msra.mxu0 0.0
    %3613 = vmatpush.msra.mxu0 0.0
    %3614 = vmatpush.msra.mxu0 0.0
    %3615 = vmatpush.msra.mxu0 0.0
    %3616 = vmatpush.msra.mxu0 0.0
    %3617 = vmatpush.msra.mxu0 0.0
    %3618 = vmatpush.msra.mxu0 0.0
    %3619 = vmatpush.msra.mxu0 0.0
    %3620 = vmatpush.msra.mxu0 0.0
    %v3621 = vand.u32 %v274, 4294901760
    %v3622 = vsub.f32 %v274, %v3621
    %3623 = vmatpush.msra.mxu0 %v3622
    %v3624 = vand.u32 %v62, 4294901760
    %v3625 = vsub.f32 %v62, %v3624
    %3626 = vmatpush.msra.mxu0 %v3625
    %v3627 = vand.u32 %v61, 4294901760
    %v3628 = vsub.f32 %v61, %v3627
    %3629 = vmatpush.msra.mxu0 %v3628
    %v3630 = vand.u32 %v3542, 4294901760
    %v3631 = vsub.f32 %v3542, %v3630
    %3632 = vmatmul.f32.gmra.mxu0 %v3631
    %v3633 = vpop.f32.mrf.mxu0
    %v3634 = vadd.f32 %v3606, %v3633
    %3635 = vdwg.mxu0
    %3636 = vmatpush.msra.mxu0 0.0
    %3637 = vmatpush.msra.mxu0 0.0
    %3638 = vmatpush.msra.mxu0 0.0
    %3639 = vmatpush.msra.mxu0 0.0
    %3640 = vmatpush.msra.mxu0 0.0
    %3641 = vmatpush.msra.mxu0 0.0
    %3642 = vmatpush.msra.mxu0 0.0
    %3643 = vmatpush.msra.mxu0 0.0
    %3644 = vmatpush.msra.mxu0 0.0
    %3645 = vmatpush.msra.mxu0 0.0
    %3646 = vmatpush.msra.mxu0 0.0
    %3647 = vmatpush.msra.mxu0 0.0
    %3648 = vmatpush.msra.mxu0 0.0
    %v3649 = vand.u32 %v274, 4294901760
    %3650 = vmatpush.msra.mxu0 %v3649
    %v3651 = vand.u32 %v62, 4294901760
    %3652 = vmatpush.msra.mxu0 %v3651
    %v3653 = vand.u32 %v61, 4294901760
    %3654 = vmatpush.msra.mxu0 %v3653
    %v3655 = vand.u32 %v3542, 4294901760
    %v3656 = vsub.f32 %v3542, %v3655
    %v3657 = vand.u32 %v3656, 4294901760
    %3658 = vmatmul.f32.gmra.mxu0 %v3657
    %v3659 = vpop.f32.mrf.mxu0
    %v3660 = vadd.f32 %v3634, %v3659
    %3661 = vdwg.mxu0
    %3662 = vmatpush.msra.mxu0 0.0
    %3663 = vmatpush.msra.mxu0 0.0
    %3664 = vmatpush.msra.mxu0 0.0
    %3665 = vmatpush.msra.mxu0 0.0
    %3666 = vmatpush.msra.mxu0 0.0
    %3667 = vmatpush.msra.mxu0 0.0
    %3668 = vmatpush.msra.mxu0 0.0
    %3669 = vmatpush.msra.mxu0 0.0
    %3670 = vmatpush.msra.mxu0 0.0
    %3671 = vmatpush.msra.mxu0 0.0
    %3672 = vmatpush.msra.mxu0 0.0
    %3673 = vmatpush.msra.mxu0 0.0
    %3674 = vmatpush.msra.mxu0 0.0
    %v3675 = vand.u32 %v274, 4294901760
    %v3676 = vsub.f32 %v274, %v3675
    %v3677 = vand.u32 %v3676, 4294901760
    %3678 = vmatpush.msra.mxu0 %v3677
    %v3679 = vand.u32 %v62, 4294901760
    %v3680 = vsub.f32 %v62, %v3679
    %v3681 = vand.u32 %v3680, 4294901760
    %3682 = vmatpush.msra.mxu0 %v3681
    %v3683 = vand.u32 %v61, 4294901760
    %v3684 = vsub.f32 %v61, %v3683
    %v3685 = vand.u32 %v3684, 4294901760
    %3686 = vmatpush.msra.mxu0 %v3685
    %v3687 = vand.u32 %v3542, 4294901760
    %3688 = vmatmul.f32.gmra.mxu0 %v3687
    %v3689 = vpop.f32.mrf.mxu0
    %v3690 = vadd.f32 %v3660, %v3689
    %3691 = vdwg.mxu0
    %3692 = vmatpush.msra.mxu0 0.0
    %3693 = vmatpush.msra.mxu0 0.0
    %3694 = vmatpush.msra.mxu0 0.0
    %3695 = vmatpush.msra.mxu0 0.0
    %3696 = vmatpush.msra.mxu0 0.0
    %3697 = vmatpush.msra.mxu0 0.0
    %3698 = vmatpush.msra.mxu0 0.0
    %3699 = vmatpush.msra.mxu0 0.0
    %3700 = vmatpush.msra.mxu0 0.0
    %3701 = vmatpush.msra.mxu0 0.0
    %3702 = vmatpush.msra.mxu0 0.0
    %3703 = vmatpush.msra.mxu0 0.0
    %3704 = vmatpush.msra.mxu0 0.0
    %v3705 = vand.u32 %v274, 4294901760
    %3706 = vmatpush.msra.mxu0 %v3705
    %v3707 = vand.u32 %v62, 4294901760
    %3708 = vmatpush.msra.mxu0 %v3707
    %v3709 = vand.u32 %v61, 4294901760
    %3710 = vmatpush.msra.mxu0 %v3709
    %v3711 = vand.u32 %v3542, 4294901760
    %3712 = vmatmul.f32.gmra.mxu0 %v3711
    %v3713 = vpop.f32.mrf.mxu0
    %v3714 = vadd.f32 %v3690, %v3713
    %3715 = vdwg.mxu0
    %v3717 = vrot.slane %v3714, 2
    %v3719 = vadd.f32 %v266, %v3717
    %v3720 = vxor.u32 %v3719, 2147483648
    %v3721 = vmul.f32 %v3720, 1.442695
    %v3722 = vpow.pop %v3721
    %v3723 = vadd.f32 %v3722, 1.0
    %v3724 = vrcp.pop %v3723
    %v3725 = vmul.f32 %v3723, %v3724
    %v3726 = vsub.f32 1.0, %v3725
    %v3727 = vmul.f32 %v3724, %v3726
    %v3728 = vadd.f32 %v3724, %v3727
    %vm3729 = vweird.f32 %v3723
    %vm3730 = vweird.f32 %v3724
    %vm3731 = vmor %vm3729, %vm3730
    %v3732 = vsel %vm3731, %v3724, %v3728
    %v3733 = vand.u32 2147483647, %v3723
    %vm3734 = vcmp.eq.f32.partialorder %v3733, 8.507059e+37
    %v3735 = vand.u32 %v3723, 2147483648
    %v3736 = vor.u32 1.1754944e-38, %v3735
    %v3737 = vsel %vm3734, %v3736, %v3732
    %v3738 = vmul.f32 1.0, %v3737
    %v3739 = vtanh.pop %v3719
    %v3741 = vrot.slane %v3283, 6
    %v3743 = vmul.f32 %v3738, %v3741
    %3745 = vrot.lane.b32.xlu0 %v3739, 88
    %v3746 = vpop.permute.xlu0 %3745
    %v3748 = vmul.f32 %v3738, %v3746
    %3750 = vrot.lane.b32.xlu0 %v3748, 20
    %v3751 = vpop.permute.xlu0 %3750
    %v3753 = vadd.f32 %v3743, %v3751
    %v3754 = vtanh.pop %v3753
    %3756 = vrot.lane.b32.xlu0 %v3754, 40
    %v3757 = vpop.permute.xlu0 %3756
    %v3759 = vmul.f32 %v3738, %v3757
    %3761 = vrot.lane.b32.xlu0 %v3759, 68
    %v3762 = vpop.permute.xlu0 %3761
    %v3765 = vrot.slane %v3538, 2
    %3766 = vrot.lane.b32.xlu0 %v3765, 88
    %v3767 = vpop.permute.xlu0 %3766
    %v3769 = vsel %vm268, %v3762, %v3767
    %v3771 = vrot.slane %v3769, 6
    %v3772 = vsel %vm491, %v3771, 0
    %3774 = vmatpush.msra.mxu0 0.0
    %3775 = vmatpush.msra.mxu0 0.0
    %3776 = vmatpush.msra.mxu0 0.0
    %3777 = vmatpush.msra.mxu0 0.0
    %3778 = vmatpush.msra.mxu0 0.0
    %3779 = vmatpush.msra.mxu0 0.0
    %3780 = vmatpush.msra.mxu0 0.0
    %3781 = vmatpush.msra.mxu0 0.0
    %3782 = vmatpush.msra.mxu0 0.0
    %3783 = vmatpush.msra.mxu0 0.0
    %3784 = vmatpush.msra.mxu0 0.0
    %v3785 = vand.u32 %v68, 4294901760
    %3786 = vmatpush.msra.mxu0 %v3785
    %v3787 = vand.u32 %v67, 4294901760
    %3788 = vmatpush.msra.mxu0 %v3787
    %v3789 = vand.u32 %v66, 4294901760
    %3790 = vmatpush.msra.mxu0 %v3789
    %v3791 = vand.u32 %v65, 4294901760
    %3792 = vmatpush.msra.mxu0 %v3791
    %v3793 = vand.u32 %v64, 4294901760
    %3794 = vmatpush.msra.mxu0 %v3793
    %v3795 = vand.u32 %v3772, 4294901760
    %v3796 = vsub.f32 %v3772, %v3795
    %v3797 = vand.u32 %v3796, 4294901760
    %v3798 = vsub.f32 %v3796, %v3797
    %v3799 = vand.u32 %v3798, 4294901760
    %3800 = vmatmul.f32.gmra.mxu0 %v3799
    %v3801 = vpop.f32.mrf.mxu0
    %v3802 = vadd.f32 %v71, %v3801
    %3803 = vdwg.mxu0
    %3804 = vmatpush.msra.mxu0 0.0
    %3805 = vmatpush.msra.mxu0 0.0
    %3806 = vmatpush.msra.mxu0 0.0
    %3807 = vmatpush.msra.mxu0 0.0
    %3808 = vmatpush.msra.mxu0 0.0
    %3809 = vmatpush.msra.mxu0 0.0
    %3810 = vmatpush.msra.mxu0 0.0
    %3811 = vmatpush.msra.mxu0 0.0
    %3812 = vmatpush.msra.mxu0 0.0
    %3813 = vmatpush.msra.mxu0 0.0
    %3814 = vmatpush.msra.mxu0 0.0
    %v3815 = vand.u32 %v68, 4294901760
    %v3816 = vsub.f32 %v68, %v3815
    %v3817 = vand.u32 %v3816, 4294901760
    %v3818 = vsub.f32 %v3816, %v3817
    %v3819 = vand.u32 %v3818, 4294901760
    %3820 = vmatpush.msra.mxu0 %v3819
    %v3821 = vand.u32 %v67, 4294901760
    %v3822 = vsub.f32 %v67, %v3821
    %v3823 = vand.u32 %v3822, 4294901760
    %v3824 = vsub.f32 %v3822, %v3823
    %v3825 = vand.u32 %v3824, 4294901760
    %3826 = vmatpush.msra.mxu0 %v3825
    %v3827 = vand.u32 %v66, 4294901760
    %v3828 = vsub.f32 %v66, %v3827
    %v3829 = vand.u32 %v3828, 4294901760
    %v3830 = vsub.f32 %v3828, %v3829
    %v3831 = vand.u32 %v3830, 4294901760
    %3832 = vmatpush.msra.mxu0 %v3831
    %v3833 = vand.u32 %v65, 4294901760
    %v3834 = vsub.f32 %v65, %v3833
    %v3835 = vand.u32 %v3834, 4294901760
    %v3836 = vsub.f32 %v3834, %v3835
    %v3837 = vand.u32 %v3836, 4294901760
    %3838 = vmatpush.msra.mxu0 %v3837
    %v3839 = vand.u32 %v64, 4294901760
    %v3840 = vsub.f32 %v64, %v3839
    %v3841 = vand.u32 %v3840, 4294901760
    %v3842 = vsub.f32 %v3840, %v3841
    %v3843 = vand.u32 %v3842, 4294901760
    %3844 = vmatpush.msra.mxu0 %v3843
    %v3845 = vand.u32 %v3772, 4294901760
    %3846 = vmatmul.f32.gmra.mxu0 %v3845
    %v3847 = vpop.f32.mrf.mxu0
    %v3848 = vadd.f32 %v3802, %v3847
    %3849 = vdwg.mxu0
    %3850 = vmatpush.msra.mxu0 0.0
    %3851 = vmatpush.msra.mxu0 0.0
    %3852 = vmatpush.msra.mxu0 0.0
    %3853 = vmatpush.msra.mxu0 0.0
    %3854 = vmatpush.msra.mxu0 0.0
    %3855 = vmatpush.msra.mxu0 0.0
    %3856 = vmatpush.msra.mxu0 0.0
    %3857 = vmatpush.msra.mxu0 0.0
    %3858 = vmatpush.msra.mxu0 0.0
    %3859 = vmatpush.msra.mxu0 0.0
    %3860 = vmatpush.msra.mxu0 0.0
    %v3861 = vand.u32 %v68, 4294901760
    %v3862 = vsub.f32 %v68, %v3861
    %3863 = vmatpush.msra.mxu0 %v3862
    %v3864 = vand.u32 %v67, 4294901760
    %v3865 = vsub.f32 %v67, %v3864
    %3866 = vmatpush.msra.mxu0 %v3865
    %v3867 = vand.u32 %v66, 4294901760
    %v3868 = vsub.f32 %v66, %v3867
    %3869 = vmatpush.msra.mxu0 %v3868
    %v3870 = vand.u32 %v65, 4294901760
    %v3871 = vsub.f32 %v65, %v3870
    %3872 = vmatpush.msra.mxu0 %v3871
    %v3873 = vand.u32 %v64, 4294901760
    %v3874 = vsub.f32 %v64, %v3873
    %3875 = vmatpush.msra.mxu0 %v3874
    %v3876 = vand.u32 %v3772, 4294901760
    %v3877 = vsub.f32 %v3772, %v3876
    %3878 = vmatmul.f32.gmra.mxu0 %v3877
    %v3879 = vpop.f32.mrf.mxu0
    %v3880 = vadd.f32 %v3848, %v3879
    %3881 = vdwg.mxu0
    %3882 = vmatpush.msra.mxu0 0.0
    %3883 = vmatpush.msra.mxu0 0.0
    %3884 = vmatpush.msra.mxu0 0.0
    %3885 = vmatpush.msra.mxu0 0.0
    %3886 = vmatpush.msra.mxu0 0.0
    %3887 = vmatpush.msra.mxu0 0.0
    %3888 = vmatpush.msra.mxu0 0.0
    %3889 = vmatpush.msra.mxu0 0.0
    %3890 = vmatpush.msra.mxu0 0.0
    %3891 = vmatpush.msra.mxu0 0.0
    %3892 = vmatpush.msra.mxu0 0.0
    %v3893 = vand.u32 %v68, 4294901760
    %3894 = vmatpush.msra.mxu0 %v3893
    %v3895 = vand.u32 %v67, 4294901760
    %3896 = vmatpush.msra.mxu0 %v3895
    %v3897 = vand.u32 %v66, 4294901760
    %3898 = vmatpush.msra.mxu0 %v3897
    %v3899 = vand.u32 %v65, 4294901760
    %3900 = vmatpush.msra.mxu0 %v3899
    %v3901 = vand.u32 %v64, 4294901760
    %3902 = vmatpush.msra.mxu0 %v3901
    %v3903 = vand.u32 %v3772, 4294901760
    %v3904 = vsub.f32 %v3772, %v3903
    %v3905 = vand.u32 %v3904, 4294901760
    %3906 = vmatmul.f32.gmra.mxu0 %v3905
    %v3907 = vpop.f32.mrf.mxu0
    %v3908 = vadd.f32 %v3880, %v3907
    %3909 = vdwg.mxu0
    %3910 = vmatpush.msra.mxu0 0.0
    %3911 = vmatpush.msra.mxu0 0.0
    %3912 = vmatpush.msra.mxu0 0.0
    %3913 = vmatpush.msra.mxu0 0.0
    %3914 = vmatpush.msra.mxu0 0.0
    %3915 = vmatpush.msra.mxu0 0.0
    %3916 = vmatpush.msra.mxu0 0.0
    %3917 = vmatpush.msra.mxu0 0.0
    %3918 = vmatpush.msra.mxu0 0.0
    %3919 = vmatpush.msra.mxu0 0.0
    %3920 = vmatpush.msra.mxu0 0.0
    %v3921 = vand.u32 %v68, 4294901760
    %v3922 = vsub.f32 %v68, %v3921
    %v3923 = vand.u32 %v3922, 4294901760
    %3924 = vmatpush.msra.mxu0 %v3923
    %v3925 = vand.u32 %v67, 4294901760
    %v3926 = vsub.f32 %v67, %v3925
    %v3927 = vand.u32 %v3926, 4294901760
    %3928 = vmatpush.msra.mxu0 %v3927
    %v3929 = vand.u32 %v66, 4294901760
    %v3930 = vsub.f32 %v66, %v3929
    %v3931 = vand.u32 %v3930, 4294901760
    %3932 = vmatpush.msra.mxu0 %v3931
    %v3933 = vand.u32 %v65, 4294901760
    %v3934 = vsub.f32 %v65, %v3933
    %v3935 = vand.u32 %v3934, 4294901760
    %3936 = vmatpush.msra.mxu0 %v3935
    %v3937 = vand.u32 %v64, 4294901760
    %v3938 = vsub.f32 %v64, %v3937
    %v3939 = vand.u32 %v3938, 4294901760
    %3940 = vmatpush.msra.mxu0 %v3939
    %v3941 = vand.u32 %v3772, 4294901760
    %3942 = vmatmul.f32.gmra.mxu0 %v3941
    %v3943 = vpop.f32.mrf.mxu0
    %v3944 = vadd.f32 %v3908, %v3943
    %3945 = vdwg.mxu0
    %3946 = vmatpush.msra.mxu0 0.0
    %3947 = vmatpush.msra.mxu0 0.0
    %3948 = vmatpush.msra.mxu0 0.0
    %3949 = vmatpush.msra.mxu0 0.0
    %3950 = vmatpush.msra.mxu0 0.0
    %3951 = vmatpush.msra.mxu0 0.0
    %3952 = vmatpush.msra.mxu0 0.0
    %3953 = vmatpush.msra.mxu0 0.0
    %3954 = vmatpush.msra.mxu0 0.0
    %3955 = vmatpush.msra.mxu0 0.0
    %3956 = vmatpush.msra.mxu0 0.0
    %v3957 = vand.u32 %v68, 4294901760
    %3958 = vmatpush.msra.mxu0 %v3957
    %v3959 = vand.u32 %v67, 4294901760
    %3960 = vmatpush.msra.mxu0 %v3959
    %v3961 = vand.u32 %v66, 4294901760
    %3962 = vmatpush.msra.mxu0 %v3961
    %v3963 = vand.u32 %v65, 4294901760
    %3964 = vmatpush.msra.mxu0 %v3963
    %v3965 = vand.u32 %v64, 4294901760
    %3966 = vmatpush.msra.mxu0 %v3965
    %v3967 = vand.u32 %v3772, 4294901760
    %3968 = vmatmul.f32.gmra.mxu0 %v3967
    %v3969 = vpop.f32.mrf.mxu0
    %v3970 = vadd.f32 %v3944, %v3969
    %3971 = vdwg.mxu0
    %v3972 = vxor.u32 %v3970, 2147483648
    %v3973 = vmul.f32 %v3972, 1.442695
    %v3974 = vpow.pop %v3973
    %v3975 = vadd.f32 %v3974, 1.0
    %v3976 = vrcp.pop %v3975
    %v3977 = vmul.f32 %v3975, %v3976
    %v3978 = vsub.f32 1.0, %v3977
    %v3979 = vmul.f32 %v3976, %v3978
    %v3980 = vadd.f32 %v3976, %v3979
    %vm3981 = vweird.f32 %v3975
    %vm3982 = vweird.f32 %v3976
    %vm3983 = vmor %vm3981, %vm3982
    %v3984 = vsel %vm3983, %v3976, %v3980
    %v3985 = vand.u32 2147483647, %v3975
    %vm3986 = vcmp.eq.f32.partialorder %v3985, 8.507059e+37
    %v3987 = vand.u32 %v3975, 2147483648
    %v3988 = vor.u32 1.1754944e-38, %v3987
    %v3989 = vsel %vm3986, %v3988, %v3984
    %v3990 = vmul.f32 1.0, %v3989
    %v3991 = vtanh.pop %v3970
    %v3992 = vmul.f32 %v3990, %v3532
    %3994 = vrot.lane.b32.xlu0 %v3991, 88
    %v3995 = vpop.permute.xlu0 %3994
    %v3997 = vmul.f32 %v3990, %v3995
    %3999 = vrot.lane.b32.xlu0 %v3997, 20
    %v4000 = vpop.permute.xlu0 %3999
    %v4002 = vadd.f32 %v3992, %v4000
    %v4003 = vtanh.pop %v4002
    %4005 = vrot.lane.b32.xlu0 %v4003, 40
    %v4006 = vpop.permute.xlu0 %4005
    %v4008 = vmul.f32 %v3990, %v4006
    %v4009 = vld [vmem:[%s6] sm:$0x1]
    %v4011 = vperm.slane %v4009, 0
    %4012 = vrot.lane.b32.xlu0 %v4011, 60
    %v4013 = vpop.permute.xlu0 %4012
    %v4015 = vmul.f32 %v4008, %v4013
    %4017 = vrot.lane.b32.xlu0 %v4015, 68
    %v4018 = vpop.permute.xlu0 %4017
    %vm4020 = vcmask 156672
    %v4021 = vsel %vm4020, %v4018, 0.0
    %4022 = vadd.xlane.f32.xlu0 %v4021
    %v4023 = vpop.xlane.xlu0 %4022
    %v4024 = vld [vmem:[#allocation2] sm:$0x1]
    %v4026 = vperm.slane %v4024, 0
    %v4028 = vadd.f32 %v4023, %v4026
    %vm4029 = vcmask 1024
    %4030 = vst.msk [vmem:[%s8] sm:$0x3] %vm4029, %v4028
    // Predicated region
    $region42: #{tpu_custom_call.1} parent=1 // pred_check
      _
    $region43: #{tpu_custom_call.1} parent=1 // pred_check_branch
      %4032 = sbr.rel (0) target = $region45
    $region44: #{tpu_custom_call.1} parent=1 // pred_region
      _
    $region45: #{tpu_custom_call.1} parent=1 // pred_fallthru
      _
    // Predicated region
    $region46: #{tpu_custom_call.1} parent=1 // pred_check
      _
    $region47: #{tpu_custom_call.1} parent=1 // pred_check_branch
      %4034 = sbr.rel (0) target = $region49
    $region48: #{tpu_custom_call.1} parent=1 // pred_region
      _
    $region49: #{tpu_custom_call.1} parent=1 // pred_fallthru
      _
    %4035 = vsyncpa [#allocation4], 1
    %4036 = vsyncpa [#allocation6], 1

</llo_original>
